<compile_context>
chip_gen: v6e
topology: v6e:2x2x1
jax: 0.10.0
libtpu: 0.0.40
codegen_flags: <defaults>
</compile_context>

<pallas_src>
import functools

import numpy as np
import jax
import jax.numpy as jnp
from jax import lax
from jax.experimental import pallas as pl
from jax.experimental.pallas import tpu as pltpu

_LN_EPS = 1e-5
_MASK = -1e30
_HI = lax.Precision.HIGHEST


# ------------------------------------------------------------------ hardware / budgets

def _dtype_bytes(dt):
    return jnp.dtype(dt).itemsize


@functools.lru_cache(maxsize=None)
def _vmem_capacity_bytes():
    try:
        cap = getattr(pltpu.get_tpu_info(), "vmem_capacity_bytes", None)
        if cap:
            return int(cap)
    except Exception:
        pass
    return 64 * 1024 * 1024          # conservative fallback (v7x per-core VMEM)


@functools.lru_cache(maxsize=None)
def _multi_tensorcore():
    # Best-effort megacore detection; falls back to single-core behaviour.
    try:
        return int(getattr(jax.devices()[0], "num_cores", 1)) > 1
    except Exception:
        return False


def _block_budget_bytes():
    cap = _vmem_capacity_bytes()
    # ~38 MiB on v7x (64 MiB physical), ~77 MiB on v5e/v6e (128 MiB physical).
    return max(8 * 1024 * 1024, min(int(0.6 * cap), cap - 12 * 1024 * 1024))


def _compiler_params(semantics, est_vmem_bytes):
    cap = _vmem_capacity_bytes()
    limit = int(min(max(est_vmem_bytes * 1.3, 32 * 1024 * 1024), 0.9 * cap))
    return pltpu.CompilerParams(dimension_semantics=semantics, vmem_limit_bytes=limit)


def _matmul_resident_bytes(tm, tn, k_in, xb, wb, ob, extra_out_tiles=0):
    # Double-buffered pipeline blocks + in-kernel f32 temporaries.
    blocks = (2 * tm * k_in * xb                       # activation tile
              + 2 * k_in * tn * wb                     # weight tile (still 2-buffered)
              + 2 * (1 + extra_out_tiles) * tm * tn * ob   # out (+ residual) tiles
              + 2 * (2 * k_in + tn + 2) * 4)           # LN gamma/beta, bias row, scalars
    temps = tm * k_in * 4 + 2 * tm * tn * 4            # f32 LN + f32 matmul result
    return blocks + temps


def _plan_matmul_tiles(m, k_in, n_out, xb, wb, ob, extra_out_tiles=0,
                       allow_out_tiling=True):
    """Largest (tile_m, tile_n) whose resident VMEM fits the per-chip budget."""
    budget = _block_budget_bytes()
    want_multi = _multi_tensorcore()
    tm_opts = sorted({t for t in [m, 8, 16, 32, 64, 128, 256, 512, 1024, 2048, 4096]
                      if t <= m and m % t == 0}, reverse=True)
    if allow_out_tiling:
        tn_opts = sorted({n_out} | {t for t in (4096, 2048, 1024, 512, 256, 128)
                                    if t < n_out and n_out % t == 0}, reverse=True)
    else:
        tn_opts = [n_out]
    single_step = None
    for tm in tm_opts:
        for tn in tn_opts:
            est = _matmul_resident_bytes(tm, tn, k_in, xb, wb, ob, extra_out_tiles)
            if est > budget:
                continue
            if want_multi and (m // tm) * (n_out // tn) < 2:
                # megacore: prefer >= 2 grid steps, but remember this as a fallback.
                if single_step is None:
                    single_step = (tm, tn, est)
                continue
            return tm, tn, est
    if single_step is not None:
        return single_step
    tm, tn = tm_opts[-1], tn_opts[-1]
    return tm, tn, _matmul_resident_bytes(tm, tn, k_in, xb, wb, ob, extra_out_tiles)


# --------------------------------------------------------- neighborhood (NATTEN) tables

def _window_start(i, length, k, dilation):
    ns = k // 2
    if dilation <= 1:
        start = max(i - ns, 0)
        if i + ns >= length:
            start += length - i - ns - 1
        return start
    ni = i - ns * dilation
    if ni < 0:
        return i % dilation
    if i + ns * dilation >= length:
        imodd = i % dilation
        a = (length // dilation) * dilation
        b = length - a
        if imodd < b:
            return length - b + imodd - 2 * ns * dilation
        return a + imodd - k * dilation
    return ni


def _pb_start(i, length, k, dilation):
    ns = k // 2
    if dilation <= 1:
        pi = ns
        if i < ns:
            pi += ns - i
        if i + ns >= length:
            pi += length - i - 1 - ns
        return pi
    if i - ns * dilation < 0:
        return k - 1 - (i // dilation)
    if i + ns * dilation >= length:
        return (length - i - 1) // dilation
    return ns


@functools.lru_cache(maxsize=None)
def _build_neighborhood_maps(H, W, k, dilation):
    """Static (numpy) neighbor / rpb index tables: shapes (N, k*k)."""
    assert H >= k * dilation and W >= k * dilation, "feature map smaller than window"
    N, KK = H * W, k * k
    nbr = np.zeros((N, KK), dtype=np.int32)
    rpb = np.zeros((N, KK), dtype=np.int32)
    for i in range(H):
        wi, pi = _window_start(i, H, k, dilation), _pb_start(i, H, k, dilation)
        for j in range(W):
            wj, pj = _window_start(j, W, k, dilation), _pb_start(j, W, k, dilation)
            t = i * W + j
            for ki in range(k):
                for kj in range(k):
                    m = ki * k + kj
                    nbr[t, m] = (wi + ki * dilation) * W + (wj + kj * dilation)
                    rpb[t, m] = (pi + ki) * (2 * k - 1) + (pj + kj)
    return nbr, rpb


@functools.lru_cache(maxsize=None)
def _plan_neighborhood(H, W, kernel_size, dilation, target_q_tokens=512):
    """Static banded-attention plan: query tiling, key-band starts, bias index maps."""
    nbr, rpb_idx = _build_neighborhood_maps(H, W, kernel_size, dilation)
    N, KK = nbr.shape

    # Query rows per tile: divisor of H, tq = qr*W a multiple of 8 (or the full map).
    qr = None
    for r in sorted([d for d in range(1, H + 1) if H % d == 0], reverse=True):
        tq_r = r * W
        if tq_r <= max(target_q_tokens, W) and (tq_r % 8 == 0 or r == H):
            qr = r
            break
    if qr is None:
        qr = next((d for d in sorted([d for d in range(1, H + 1) if H % d == 0])
                   if (d * W) % 8 == 0), H)
    tq = qr * W
    n_qt = H // qr

    nbr3 = nbr.reshape(n_qt, tq, KK).astype(np.int64)
    mins = nbr3.min(axis=(1, 2))
    maxs = nbr3.max(axis=(1, 2))
    start = np.maximum(mins - (mins % 8), 0)               # sublane-align band start
    kb_tok = int((maxs - start + 1).max())
    kb_tok = min(N, -(-kb_tok // 8) * 8)                   # band width -> multiple of 8
    start = np.clip(start, 0, N - kb_tok)
    assert np.all(mins >= start) and np.all(maxs < start + kb_tok)

    local = nbr - np.repeat(start, tq)[:, None]            # column index inside the band
    assert local.min() >= 0 and local.max() < kb_tok

    return dict(N=N, KK=KK, tq=int(tq), n_qt=int(n_qt), kb_tok=int(kb_tok),
                band_start=start.astype(np.int32), local_map=local.astype(np.int32),
                rpb_map=rpb_idx, aligned8=bool(np.all(start % 8 == 0)))


def _build_banded_bias(rpb, plan):
    """(heads, N, band) additive bias: rpb inside the window, -1e30 outside.

    Depends only on rpb + static maps -> constant across forward calls; real callers
    should hoist/cache it (see TODO at top of file)."""
    num_heads = rpb.shape[0]
    rpb_flat = rpb.reshape(num_heads, -1).astype(jnp.float32)
    vals = rpb_flat[:, plan["rpb_map"]]                                # (h, N, KK)
    bias = jnp.full((num_heads, plan["N"], plan["kb_tok"]), _MASK, dtype=jnp.float32)
    rows = np.arange(plan["N"])[:, None]
    return bias.at[:, rows, plan["local_map"]].set(vals)


# ----------------------------------------------------------------------------- kernels

def _layernorm_f32(x_ref, g_ref, b_ref):
    x = x_ref[...].astype(jnp.float32)
    mean = jnp.mean(x, axis=-1, keepdims=True)
    xc = x - mean
    var = jnp.mean(xc * xc, axis=-1, keepdims=True)
    y = xc * lax.rsqrt(var + _LN_EPS)
    return y * g_ref[...].astype(jnp.float32) + b_ref[...].astype(jnp.float32)


def _ln_qkv_kernel(x_ref, g_ref, b_ref, w_ref, wb_ref, q_ref, k_ref, v_ref):
    C = x_ref.shape[-1]
    y = _layernorm_f32(x_ref, g_ref, b_ref).astype(w_ref.dtype)
    z = jnp.dot(y, w_ref[...], preferred_element_type=jnp.float32)
    z = (z + wb_ref[...].astype(jnp.float32)).astype(q_ref.dtype)
    # torch qkv layout along the channel axis is [3, heads, Dh] -> these slices are
    # exactly Q/K/V in all-heads (h*Dh + d) order; no wrapper transpose needed.
    q_ref[...] = z[:, :C]
    k_ref[...] = z[:, C:2 * C]
    v_ref[...] = z[:, 2 * C:]


def _ln_matmul_kernel(x_ref, g_ref, b_ref, w_ref, wb_ref, o_ref):
    y = _layernorm_f32(x_ref, g_ref, b_ref).astype(w_ref.dtype)
    z = jnp.dot(y, w_ref[...], preferred_element_type=jnp.float32)
    o_ref[...] = (z + wb_ref[...].astype(jnp.float32)).astype(o_ref.dtype)


def _ln_matmul_star_kernel(x_ref, g_ref, b_ref, w_ref, wb_ref, s_ref, sb_ref, o_ref):
    y = _layernorm_f32(x_ref, g_ref, b_ref).astype(w_ref.dtype)
    z = jnp.dot(y, w_ref[...], preferred_element_type=jnp.float32)
    z = z + wb_ref[...].astype(jnp.float32)
    z = jnp.maximum(z, 0.0)
    z = s_ref[0, 0] * z * z + sb_ref[0, 0]                 # StarReLU: s*relu(z)^2 + b
    o_ref[...] = z.astype(o_ref.dtype)


def _matmul_bias_res_kernel(x_ref, w_ref, wb_ref, r_ref, o_ref):
    z = jnp.dot(x_ref[...].astype(w_ref.dtype), w_ref[...],
                preferred_element_type=jnp.float32)
    z = z + wb_ref[...].astype(jnp.float32) + r_ref[...].astype(jnp.float32)
    o_ref[...] = z.astype(o_ref.dtype)


def _na_attn_kernel(band_ref, q_ref, k_ref, v_ref, bias_ref, o_ref, *,
                    scale, num_heads, head_dim, kb_tok, aligned8):
    """Banded neighborhood attention for one (batch, query-tile) step, all heads."""
    t = pl.program_id(1)
    start = band_ref[t]                              # key-band start token (SMEM scalar)
    if aligned8:
        start = pl.multiple_of(start, 8)
    kband = k_ref[pl.ds(start, kb_tok), :]           # (band, C)
    vband = v_ref[pl.ds(start, kb_tok), :]
    q = q_ref[...]                                   # (tq, C)
    outs = []
    for h in range(num_heads):                       # small, unrolled
        sl = slice(h * head_dim, (h + 1) * head_dim)
        # einsum with contracting last dims is the standard MXU-friendly QK^T pattern.
        logits = jnp.einsum("qd,kd->qk", q[:, sl], kband[:, sl],
                            preferred_element_type=jnp.float32)
        logits = logits * scale + bias_ref[h]        # rpb inside window, -1e30 outside
        m = jnp.max(logits, axis=-1, keepdims=True)  # every row has >=1 unmasked entry
        p = jnp.exp(logits - m)
        inv = pl.reciprocal(jnp.sum(p, axis=-1, keepdims=True), approx=True)
        o_h = jnp.dot(p.astype(vband.dtype), vband[:, sl],
                      preferred_element_type=jnp.float32)
        outs.append((o_h * inv).astype(o_ref.dtype))
    o_ref[...] = jnp.concatenate(outs, axis=-1)      # lane-dense (tq, C) store


# --------------------------------------------------------------------------- wrappers

def _ln_qkv(x, g, b, w, wb):
    M, C = x.shape
    out3 = w.shape[1]
    xb, wbt = _dtype_bytes(x.dtype), _dtype_bytes(w.dtype)
    tm, _, est = _plan_matmul_tiles(M, C, out3, xb, wbt, xb, allow_out_tiling=False)
    grid = (M // tm,)
    cspec = pl.BlockSpec((tm, C), lambda i: (i, 0))
    cost = pl.CostEstimate(
        flops=int(2 * M * C * out3 + 10 * M * C), transcendentals=int(M),
        bytes_accessed=int(xb * M * C * 4 + wbt * C * out3 + 4 * (2 * C + out3)))
    return pl.pallas_call(
        _ln_qkv_kernel,
        out_shape=(jax.ShapeDtypeStruct((M, C), x.dtype),) * 3,
        grid_spec=pltpu.PrefetchScalarGridSpec(
            num_scalar_prefetch=0, grid=grid,
            in_specs=[cspec,
                      pl.BlockSpec((1, C), lambda i: (0, 0)),
                      pl.BlockSpec((1, C), lambda i: (0, 0)),
                      pl.BlockSpec((C, out3), lambda i: (0, 0)),
                      pl.BlockSpec((1, out3), lambda i: (0, 0))],
            out_specs=(cspec, cspec, cspec)),
        compiler_params=_compiler_params(("parallel",), est),
        cost_estimate=cost,
    )(x, g.reshape(1, C), b.reshape(1, C), w, wb.reshape(1, out3))


def _ln_matmul(x, g, b, w, wbias, *, star=None):
    M, C = x.shape
    OUT = w.shape[1]
    xb, wbt = _dtype_bytes(x.dtype), _dtype_bytes(w.dtype)
    tm, tn, est = _plan_matmul_tiles(M, C, OUT, xb, wbt, xb)
    grid = (M // tm, OUT // tn)
    in_specs = [pl.BlockSpec((tm, C), lambda i, j: (i, 0)),
                pl.BlockSpec((1, C), lambda i, j: (0, 0)),
                pl.BlockSpec((1, C), lambda i, j: (0, 0)),
                pl.BlockSpec((C, tn), lambda i, j: (0, j)),
                pl.BlockSpec((1, tn), lambda i, j: (0, j))]
    args = [x, g.reshape(1, C), b.reshape(1, C), w, wbias.reshape(1, OUT)]
    kernel = _ln_matmul_kernel
    if star is not None:
        s, sb = star
        one = pl.BlockSpec((1, 1), lambda i, j: (0, 0))
        in_specs += [one, one]
        args += [jnp.reshape(s, (1, 1)).astype(jnp.float32),
                 jnp.reshape(sb, (1, 1)).astype(jnp.float32)]
        kernel = _ln_matmul_star_kernel
    cost = pl.CostEstimate(
        flops=int(2 * M * C * OUT + 12 * M * C + 4 * M * OUT), transcendentals=int(M),
        bytes_accessed=int(xb * M * (C + OUT) + wbt * C * OUT + 4 * (2 * C + OUT)))
    return pl.pallas_call(
        kernel,
        out_shape=jax.ShapeDtypeStruct((M, OUT), x.dtype),
        grid_spec=pltpu.PrefetchScalarGridSpec(
            num_scalar_prefetch=0, grid=grid, in_specs=in_specs,
            out_specs=pl.BlockSpec((tm, tn), lambda i, j: (i, j))),
        compiler_params=_compiler_params(("parallel", "parallel"), est),
        cost_estimate=cost,
    )(*args)


def _matmul_bias_res(x, w, wbias, res):
    M, IN = x.shape
    OUT = w.shape[1]
    xb, wbt = _dtype_bytes(x.dtype), _dtype_bytes(w.dtype)
    tm, tn, est = _plan_matmul_tiles(M, IN, OUT, xb, wbt, xb, extra_out_tiles=1)
    grid = (M // tm, OUT // tn)
    cost = pl.CostEstimate(
        flops=int(2 * M * IN * OUT + 2 * M * OUT), transcendentals=0,
        bytes_accessed=int(xb * (M * IN + 2 * M * OUT) + wbt * IN * OUT + 4 * OUT))
    return pl.pallas_call(
        _matmul_bias_res_kernel,
        out_shape=jax.ShapeDtypeStruct((M, OUT), x.dtype),
        grid_spec=pltpu.PrefetchScalarGridSpec(
            num_scalar_prefetch=0, grid=grid,
            in_specs=[pl.BlockSpec((tm, IN), lambda i, j: (i, 0)),
                      pl.BlockSpec((IN, tn), lambda i, j: (0, j)),
                      pl.BlockSpec((1, tn), lambda i, j: (0, j)),
                      pl.BlockSpec((tm, tn), lambda i, j: (i, j))],
            out_specs=pl.BlockSpec((tm, tn), lambda i, j: (i, j))),
        compiler_params=_compiler_params(("parallel", "parallel"), est),
        cost_estimate=cost,
    )(x, w, wbias.reshape(1, OUT), res)


def _na_attention(q, k, v, bias, band_start, *, scale, num_heads, plan):
    B, N, C = q.shape
    tq, kb_tok, n_qt = plan["tq"], plan["kb_tok"], plan["n_qt"]
    xb = _dtype_bytes(q.dtype)
    # Grid (B, query-tile): K/V block index depends only on b -> DMA'd once per batch;
    # only the much smaller (heads, tq, band) bias slab is fetched per step.
    qo_spec = pl.BlockSpec((None, tq, C), lambda b, t, bs: (b, t, 0))
    kv_spec = pl.BlockSpec((None, N, C), lambda b, t, bs: (b, 0, 0))
    bias_spec = pl.BlockSpec((num_heads, tq, kb_tok), lambda b, t, bs: (0, t, 0))
    est = (4 * tq * C * xb + 4 * N * C * xb + 2 * num_heads * tq * kb_tok * 4
           + 2 * kb_tok * C * 4 + 3 * tq * kb_tok * 4 + 2 * tq * C * 4)
    cost = pl.CostEstimate(
        flops=int(4 * B * N * kb_tok * C + 6 * B * num_heads * N * kb_tok),
        transcendentals=int(B * num_heads * N * kb_tok),
        bytes_accessed=int(xb * (2 * B * N * C + 2 * B * N * C)
                           + 4 * B * num_heads * N * kb_tok))
    # TODO(synk): for very large N*C, band the K/V DMA itself (pl.Element / manual copy)
    #             instead of keeping the full per-batch K/V resident in VMEM.
    return pl.pallas_call(
        functools.partial(_na_attn_kernel, scale=scale, num_heads=num_heads,
                          head_dim=C // num_heads, kb_tok=kb_tok,
                          aligned8=plan["aligned8"]),
        out_shape=jax.ShapeDtypeStruct((B, N, C), q.dtype),
        grid_spec=pltpu.PrefetchScalarGridSpec(
            num_scalar_prefetch=1, grid=(B, n_qt),
            in_specs=[qo_spec, kv_spec, kv_spec, bias_spec],
            out_specs=qo_spec),
        compiler_params=_compiler_params(("parallel", "parallel"), est),
        cost_estimate=cost,
    )(band_start, q, k, v, bias)


# --------------------------------------------------------------------------- forward

@functools.partial(jax.jit,
                   static_argnames=("x_size", "num_heads", "kernel_size", "dilation"))
def na_transformer_layer_forward(x, params, *, x_size, num_heads,
                                 kernel_size=7, dilation=1):
    """x: (B, H*W, C) tokens; returns (B, H*W, C). Matches NATransformerLayer.forward."""
    H, W = x_size
    B, N, C = x.shape
    assert N == H * W, "input feature has wrong size"
    assert C % num_heads == 0
    head_dim = C // num_heads
    scale = float(head_dim) ** -0.5                 # qk_scale=None -> head_dim ** -0.5
    M = B * N

    x2 = x.reshape(M, C)

    # --- norm1 + qkv projection (fused LN + matmul, Q/K/V written separately) ---
    q, k, v = _ln_qkv(x2, params["g1"], params["b1"], params["w_qkv"], params["b_qkv"])

    # --- banded neighborhood attention (exact NATTEN semantics via masked band) ---
    plan = _plan_neighborhood(H, W, kernel_size, dilation)
    bias = _build_banded_bias(params["rpb"], plan)                 # (heads, N, band)
    band_start = jnp.asarray(plan["band_start"], dtype=jnp.int32)  # scalar prefetch
    attn = _na_attention(q.reshape(B, N, C), k.reshape(B, N, C), v.reshape(B, N, C),
                         bias, band_start, scale=scale, num_heads=num_heads, plan=plan)

    # --- attention output projection + shortcut residual (heads already merged) ---
    x1 = _matmul_bias_res(attn.reshape(M, C), params["w_proj"], params["b_proj"], x2)

    # --- norm2 + fc1 + StarReLU (fused), then fc2 + residual ---
    # Dropout / DropPath are identity here (p = 0 / eval mode), as in the reference.
    h = _ln_matmul(x1, params["g2"], params["b2"], params["w_fc1"], params["b_fc1"],
                   star=(params["star_s"], params["star_b"]))
    out = _matmul_bias_res(h, params["w_fc2"], params["b_fc2"], x1)
    return out.reshape(B, N, C)


# -------------------------------------------------------------------- pure-JAX reference

def _reference_forward(x, p, *, x_size, num_heads, kernel_size=7, dilation=1):
    H, W = x_size
    B, N, C = x.shape
    Dh = C // num_heads
    scale = float(Dh) ** -0.5
    nbr_map, rpb_map = _build_neighborhood_maps(H, W, kernel_size, dilation)

    def ln(z, g, b):
        mu = z.mean(-1, keepdims=True)
        var = ((z - mu) ** 2).mean(-1, keepdims=True)
        return (z - mu) * lax.rsqrt(var + _LN_EPS) * g + b

    xf = x.astype(jnp.float32)
    y = ln(xf, p["g1"], p["b1"])
    qkv = jnp.dot(y, p["w_qkv"], precision=_HI) + p["b_qkv"]
    qkv = qkv.reshape(B, N, 3, num_heads, Dh).transpose(2, 0, 3, 1, 4)
    q, k, v = qkv[0] * scale, qkv[1], qkv[2]                       # (B, h, N, Dh)
    k_nbr = k[:, :, nbr_map]                                       # (B, h, N, KK, Dh)
    v_nbr = v[:, :, nbr_map]
    rpb_bias = p["rpb"].reshape(num_heads, -1)[:, rpb_map]         # (h, N, KK)
    logits = jnp.einsum("bhnd,bhnmd->bhnm", q, k_nbr, precision=_HI) + rpb_bias[None]
    a = jax.nn.softmax(logits, axis=-1)
    o = jnp.einsum("bhnm,bhnmd->bhnd", a, v_nbr, precision=_HI)
    o = o.transpose(0, 2, 1, 3).reshape(B, N, C)
    x1 = xf + (jnp.dot(o, p["w_proj"], precision=_HI) + p["b_proj"])
    h1 = jnp.dot(ln(x1, p["g2"], p["b2"]), p["w_fc1"], precision=_HI) + p["b_fc1"]
    h1 = p["star_s"][0] * jnp.maximum(h1, 0.0) ** 2 + p["star_b"][0]
    out = x1 + (jnp.dot(h1, p["w_fc2"], precision=_HI) + p["b_fc2"])
    return out.astype(x.dtype)


# --------------------------------------------------------------------------------- main

if __name__ == "__main__":
    B, C, H, W = 2, 32, 8, 8
    num_heads = 2
    kernel_size = 7
    dilation = 1
    hidden = int(C * 4.0)          # mlp_ratio = 4.0
    N = H * W

    key = jax.random.PRNGKey(0)
    ks = jax.random.split(key, 16)

    def rnd(k, shape, s=1.0):
        return s * jax.random.normal(k, shape, dtype=jnp.float32)

    x = rnd(ks[0], (B, N, C))
    # Weights stored as (in, out) == transpose of torch.nn.Linear's (out, in); same map.
    params = {
        "g1": 1.0 + 0.1 * rnd(ks[1], (C,)),
        "b1": 0.1 * rnd(ks[2], (C,)),
        "w_qkv": 0.15 * rnd(ks[3], (C, 3 * C)),
        "b_qkv": 0.05 * rnd(ks[4], (3 * C,)),
        "rpb": 0.2 * rnd(ks[5], (num_heads, 2 * kernel_size - 1, 2 * kernel_size - 1)),
        "w_proj": 0.15 * rnd(ks[6], (C, C)),
        "b_proj": 0.05 * rnd(ks[7], (C,)),
        "g2": 1.0 + 0.1 * rnd(ks[8], (C,)),
        "b2": 0.1 * rnd(ks[9], (C,)),
        "w_fc1": 0.15 * rnd(ks[10], (C, hidden)),
        "b_fc1": 0.05 * rnd(ks[11], (hidden,)),
        "star_s": jnp.array([1.25], dtype=jnp.float32),
        "star_b": jnp.array([-0.05], dtype=jnp.float32),
        "w_fc2": 0.15 * rnd(ks[12], (hidden, C)),
        "b_fc2": 0.05 * rnd(ks[13], (C,)),
    }

    out = na_transformer_layer_forward(
        x, params, x_size=(H, W), num_heads=num_heads,
        kernel_size=kernel_size, dilation=dilation)
    out = jax.block_until_ready(out)

    ref = _reference_forward(
        x, params, x_size=(H, W), num_heads=num_heads,
        kernel_size=kernel_size, dilation=dilation)

    assert out.shape == (B, N, C), out.shape
    max_err = float(jnp.max(jnp.abs(out.astype(jnp.float32) - ref.astype(jnp.float32))))
    assert max_err < 2e-2, f"mismatch vs reference: max abs err = {max_err}"
    print("KERNEL_OK")
</pallas_src>

<mosaic_0001>
module attributes {stable_mosaic.version = 11 : i64} {
  func.func @_ln_qkv_kernel(%arg0: i32, %arg1: memref<128x32xf32, #tpu.memory_space<vmem>>, %arg2: memref<1x32xf32, #tpu.memory_space<vmem>>, %arg3: memref<1x32xf32, #tpu.memory_space<vmem>>, %arg4: memref<32x96xf32, #tpu.memory_space<vmem>>, %arg5: memref<1x96xf32, #tpu.memory_space<vmem>>, %arg6: memref<128x32xf32, #tpu.memory_space<vmem>>, %arg7: memref<128x32xf32, #tpu.memory_space<vmem>>, %arg8: memref<128x32xf32, #tpu.memory_space<vmem>>) attributes {dimension_semantics = [#tpu.dimension_semantics<parallel>], iteration_bounds = array<i64: 1>, scalar_prefetch = 0 : i64, scratch_operands = 0 : i64, tpu.core_type = #tpu.core_type<tc>, window_params = [{transform_indices = @transform_0, window_bounds = array<i64: 128, 32>}, {pipeline_mode = #tpu.pipeline_mode<synchronous>, transform_indices = @transform_1, window_bounds = array<i64: 1, 32>}, {pipeline_mode = #tpu.pipeline_mode<synchronous>, transform_indices = @transform_2, window_bounds = array<i64: 1, 32>}, {pipeline_mode = #tpu.pipeline_mode<synchronous>, transform_indices = @transform_3, window_bounds = array<i64: 32, 96>}, {pipeline_mode = #tpu.pipeline_mode<synchronous>, transform_indices = @transform_4, window_bounds = array<i64: 1, 96>}, {transform_indices = @transform_5, window_bounds = array<i64: 128, 32>}, {transform_indices = @transform_6, window_bounds = array<i64: 128, 32>}, {transform_indices = @transform_7, window_bounds = array<i64: 128, 32>}]} {
    %c0 = arith.constant 0 : index
    %c0_0 = arith.constant 0 : index
    %0 = vector.load %arg1[%c0, %c0_0] : memref<128x32xf32, #tpu.memory_space<vmem>>, vector<128x32xf32>
    %cst = arith.constant dense<0.000000e+00> : vector<128xf32>
    %1 = vector.multi_reduction <add>, %0, %cst [1] : vector<128x32xf32> to vector<128xf32>
    %2 = vector.shape_cast %1 : vector<128xf32> to vector<128x1xf32>
    %cst_1 = arith.constant 3.200000e+01 : f32
    %3 = vector.broadcast %cst_1 : f32 to vector<128x1xf32>
    %4 = arith.divf %2, %3 : vector<128x1xf32>
    %5 = vector.broadcast %4 : vector<128x1xf32> to vector<128x32xf32>
    %6 = arith.subf %0, %5 : vector<128x32xf32>
    %7 = arith.mulf %6, %6 : vector<128x32xf32>
    %cst_2 = arith.constant dense<0.000000e+00> : vector<128xf32>
    %8 = vector.multi_reduction <add>, %7, %cst_2 [1] : vector<128x32xf32> to vector<128xf32>
    %9 = vector.shape_cast %8 : vector<128xf32> to vector<128x1xf32>
    %cst_3 = arith.constant 3.200000e+01 : f32
    %10 = vector.broadcast %cst_3 : f32 to vector<128x1xf32>
    %11 = arith.divf %9, %10 : vector<128x1xf32>
    %cst_4 = arith.constant 9.99999974E-6 : f32
    %12 = vector.broadcast %cst_4 : f32 to vector<128x1xf32>
    %13 = arith.addf %11, %12 : vector<128x1xf32>
    %14 = math.rsqrt %13 : vector<128x1xf32>
    %15 = vector.broadcast %14 : vector<128x1xf32> to vector<128x32xf32>
    %16 = arith.mulf %6, %15 : vector<128x32xf32>
    %c0_5 = arith.constant 0 : index
    %c0_6 = arith.constant 0 : index
    %17 = vector.load %arg2[%c0_5, %c0_6] : memref<1x32xf32, #tpu.memory_space<vmem>>, vector<1x32xf32>
    %18 = vector.broadcast %17 : vector<1x32xf32> to vector<128x32xf32>
    %19 = arith.mulf %16, %18 : vector<128x32xf32>
    %c0_7 = arith.constant 0 : index
    %c0_8 = arith.constant 0 : index
    %20 = vector.load %arg3[%c0_7, %c0_8] : memref<1x32xf32, #tpu.memory_space<vmem>>, vector<1x32xf32>
    %21 = vector.broadcast %20 : vector<1x32xf32> to vector<128x32xf32>
    %22 = arith.addf %19, %21 : vector<128x32xf32>
    %c0_9 = arith.constant 0 : index
    %c0_10 = arith.constant 0 : index
    %23 = vector.load %arg4[%c0_9, %c0_10] : memref<32x96xf32, #tpu.memory_space<vmem>>, vector<32x96xf32>
    %cst_11 = arith.constant dense<0.000000e+00> : vector<128x96xf32>
    %24 = tpu.matmul %22, %23, %cst_11 {dimension_numbers = #tpu.dot_dimension_numbers<[1], [0], [0], [1], [0, 0, 1, 1], [], []>} : vector<128x32xf32>, vector<32x96xf32>, vector<128x96xf32> -> vector<128x96xf32>
    %c0_12 = arith.constant 0 : index
    %c0_13 = arith.constant 0 : index
    %25 = vector.load %arg5[%c0_12, %c0_13] : memref<1x96xf32, #tpu.memory_space<vmem>>, vector<1x96xf32>
    %26 = vector.broadcast %25 : vector<1x96xf32> to vector<128x96xf32>
    %27 = arith.addf %24, %26 : vector<128x96xf32>
    %28 = vector.extract_strided_slice %27 {offsets = [0, 0], sizes = [128, 32], strides = [1, 1]} : vector<128x96xf32> to vector<128x32xf32>
    %c0_14 = arith.constant 0 : index
    %c0_15 = arith.constant 0 : index
    %29 = vector.load %arg6[%c0_14, %c0_15] : memref<128x32xf32, #tpu.memory_space<vmem>>, vector<128x32xf32>
    tpu.vector_store %arg6[%c0_14, %c0_15], %28 {strides = array<i32>} : memref<128x32xf32, #tpu.memory_space<vmem>>, vector<128x32xf32>,
    %30 = vector.extract_strided_slice %27 {offsets = [0, 32], sizes = [128, 32], strides = [1, 1]} : vector<128x96xf32> to vector<128x32xf32>
    %c0_16 = arith.constant 0 : index
    %c0_17 = arith.constant 0 : index
    %31 = vector.load %arg7[%c0_16, %c0_17] : memref<128x32xf32, #tpu.memory_space<vmem>>, vector<128x32xf32>
    tpu.vector_store %arg7[%c0_16, %c0_17], %30 {strides = array<i32>} : memref<128x32xf32, #tpu.memory_space<vmem>>, vector<128x32xf32>,
    %32 = vector.extract_strided_slice %27 {offsets = [0, 64], sizes = [128, 32], strides = [1, 1]} : vector<128x96xf32> to vector<128x32xf32>
    %c0_18 = arith.constant 0 : index
    %c0_19 = arith.constant 0 : index
    %33 = vector.load %arg8[%c0_18, %c0_19] : memref<128x32xf32, #tpu.memory_space<vmem>>, vector<128x32xf32>
    tpu.vector_store %arg8[%c0_18, %c0_19], %32 {strides = array<i32>} : memref<128x32xf32, #tpu.memory_space<vmem>>, vector<128x32xf32>,
    return
  }
  func.func @transform_0(%arg0: i32) -> (i32, i32) {
    %c0_i32 = arith.constant 0 : i32
    %c0_i32_0 = arith.constant 0 : i32
    return %arg0, %c0_i32 : i32, i32
  }
  func.func @transform_1(%arg0: i32) -> (i32, i32) {
    %c0_i32 = arith.constant 0 : i32
    %c0_i32_0 = arith.constant 0 : i32
    %c0_i32_1 = arith.constant 0 : i32
    return %c0_i32, %c0_i32_0 : i32, i32
  }
  func.func @transform_2(%arg0: i32) -> (i32, i32) {
    %c0_i32 = arith.constant 0 : i32
    %c0_i32_0 = arith.constant 0 : i32
    %c0_i32_1 = arith.constant 0 : i32
    return %c0_i32, %c0_i32_0 : i32, i32
  }
  func.func @transform_3(%arg0: i32) -> (i32, i32) {
    %c0_i32 = arith.constant 0 : i32
    %c0_i32_0 = arith.constant 0 : i32
    %c0_i32_1 = arith.constant 0 : i32
    return %c0_i32, %c0_i32_0 : i32, i32
  }
  func.func @transform_4(%arg0: i32) -> (i32, i32) {
    %c0_i32 = arith.constant 0 : i32
    %c0_i32_0 = arith.constant 0 : i32
    %c0_i32_1 = arith.constant 0 : i32
    return %c0_i32, %c0_i32_0 : i32, i32
  }
  func.func @transform_5(%arg0: i32) -> (i32, i32) {
    %c0_i32 = arith.constant 0 : i32
    %c0_i32_0 = arith.constant 0 : i32
    return %arg0, %c0_i32 : i32, i32
  }
  func.func @transform_6(%arg0: i32) -> (i32, i32) {
    %c0_i32 = arith.constant 0 : i32
    %c0_i32_0 = arith.constant 0 : i32
    return %arg0, %c0_i32 : i32, i32
  }
  func.func @transform_7(%arg0: i32) -> (i32, i32) {
    %c0_i32 = arith.constant 0 : i32
    %c0_i32_0 = arith.constant 0 : i32
    return %arg0, %c0_i32 : i32, i32
  }
}

module attributes {stable_mosaic.version = 11 : i64} {
  func.func @_na_attn_kernel(%arg0: i32, %arg1: i32, %arg2: memref<1xi32, #tpu.memory_space<smem>>, %arg3: memref<1x64x32xf32, #tpu.memory_space<vmem>>, %arg4: memref<1x64x32xf32, #tpu.memory_space<vmem>>, %arg5: memref<1x64x32xf32, #tpu.memory_space<vmem>>, %arg6: memref<2x64x64xf32, #tpu.memory_space<vmem>>, %arg7: memref<1x64x32xf32, #tpu.memory_space<vmem>>) attributes {dimension_semantics = [#tpu.dimension_semantics<parallel>, #tpu.dimension_semantics<parallel>], iteration_bounds = array<i64: 2, 1>, scalar_prefetch = 1 : i64, scratch_operands = 0 : i64, tpu.core_type = #tpu.core_type<tc>, window_params = [{transform_indices = @transform_0, window_bounds = array<i64: 1, 64, 32>}, {transform_indices = @transform_1, window_bounds = array<i64: 1, 64, 32>}, {transform_indices = @transform_2, window_bounds = array<i64: 1, 64, 32>}, {transform_indices = @transform_3, window_bounds = array<i64: 2, 64, 64>}, {transform_indices = @transform_4, window_bounds = array<i64: 1, 64, 32>}]} {
    %0 = arith.index_cast %arg1 : i32 to index
    %1 = memref.load %arg2[%0] : memref<1xi32, #tpu.memory_space<smem>>
    %2 = tpu.assume_multiple %1, 8 : i32
    %c0 = arith.constant 0 : index
    %3 = arith.index_cast %2 : i32 to index
    %c0_0 = arith.constant 0 : index
    %4 = vector.load %arg4[%c0, %3, %c0_0] : memref<1x64x32xf32, #tpu.memory_space<vmem>>, vector<1x64x32xf32>
    %5 = vector.shape_cast %4 : vector<1x64x32xf32> to vector<64x32xf32>
    %c0_1 = arith.constant 0 : index
    %6 = arith.index_cast %2 : i32 to index
    %c0_2 = arith.constant 0 : index
    %7 = vector.load %arg5[%c0_1, %6, %c0_2] : memref<1x64x32xf32, #tpu.memory_space<vmem>>, vector<1x64x32xf32>
    %8 = vector.shape_cast %7 : vector<1x64x32xf32> to vector<64x32xf32>
    %c0_3 = arith.constant 0 : index
    %c0_4 = arith.constant 0 : index
    %c0_5 = arith.constant 0 : index
    %9 = vector.load %arg3[%c0_3, %c0_4, %c0_5] : memref<1x64x32xf32, #tpu.memory_space<vmem>>, vector<1x64x32xf32>
    %10 = vector.shape_cast %9 : vector<1x64x32xf32> to vector<64x32xf32>
    %11 = vector.extract_strided_slice %10 {offsets = [0, 0], sizes = [64, 16], strides = [1, 1]} : vector<64x32xf32> to vector<64x16xf32>
    %12 = vector.extract_strided_slice %5 {offsets = [0, 0], sizes = [64, 16], strides = [1, 1]} : vector<64x32xf32> to vector<64x16xf32>
    "tpu.trace_start"() <{level = 10 : i32, message = "qd,kd->qk"}> : () -> ()
    %cst = arith.constant dense<0.000000e+00> : vector<64x64xf32>
    %13 = tpu.matmul %11, %12, %cst {dimension_numbers = #tpu.dot_dimension_numbers<[1], [1], [0], [0], [0, 0, 1, 0], [], []>} : vector<64x16xf32>, vector<64x16xf32>, vector<64x64xf32> -> vector<64x64xf32>
    "tpu.trace_stop"() : () -> ()
    %cst_6 = arith.constant 2.500000e-01 : f32
    %14 = vector.broadcast %cst_6 : f32 to vector<64x64xf32>
    %15 = arith.mulf %13, %14 : vector<64x64xf32>
    %c0_7 = arith.constant 0 : index
    %c0_8 = arith.constant 0 : index
    %c0_9 = arith.constant 0 : index
    %16 = vector.load %arg6[%c0_7, %c0_8, %c0_9] : memref<2x64x64xf32, #tpu.memory_space<vmem>>, vector<1x64x64xf32>
    %17 = vector.shape_cast %16 : vector<1x64x64xf32> to vector<64x64xf32>
    %18 = arith.addf %15, %17 : vector<64x64xf32>
    %cst_10 = arith.constant dense<0xFF800000> : vector<64xf32>
    %19 = vector.multi_reduction <maximumf>, %18, %cst_10 [1] : vector<64x64xf32> to vector<64xf32>
    %20 = vector.shape_cast %19 : vector<64xf32> to vector<64x1xf32>
    %21 = vector.broadcast %20 : vector<64x1xf32> to vector<64x64xf32>
    %22 = arith.subf %18, %21 : vector<64x64xf32>
    %23 = math.exp %22 : vector<64x64xf32>
    %cst_11 = arith.constant dense<0.000000e+00> : vector<64xf32>
    %24 = vector.multi_reduction <add>, %23, %cst_11 [1] : vector<64x64xf32> to vector<64xf32>
    %25 = vector.shape_cast %24 : vector<64xf32> to vector<64x1xf32>
    %26 = tpu.reciprocal %25 {approx = true} : vector<64x1xf32> -> vector<64x1xf32>
    %27 = vector.extract_strided_slice %8 {offsets = [0, 0], sizes = [64, 16], strides = [1, 1]} : vector<64x32xf32> to vector<64x16xf32>
    %cst_12 = arith.constant dense<0.000000e+00> : vector<64x16xf32>
    %28 = tpu.matmul %23, %27, %cst_12 {dimension_numbers = #tpu.dot_dimension_numbers<[1], [0], [0], [1], [0, 0, 1, 1], [], []>} : vector<64x64xf32>, vector<64x16xf32>, vector<64x16xf32> -> vector<64x16xf32>
    %29 = vector.broadcast %26 : vector<64x1xf32> to vector<64x16xf32>
    %30 = arith.mulf %28, %29 : vector<64x16xf32>
    %31 = vector.extract_strided_slice %10 {offsets = [0, 16], sizes = [64, 16], strides = [1, 1]} : vector<64x32xf32> to vector<64x16xf32>
    %32 = vector.extract_strided_slice %5 {offsets = [0, 16], sizes = [64, 16], strides = [1, 1]} : vector<64x32xf32> to vector<64x16xf32>
    "tpu.trace_start"() <{level = 10 : i32, message = "qd,kd->qk"}> : () -> ()
    %cst_13 = arith.constant dense<0.000000e+00> : vector<64x64xf32>
    %33 = tpu.matmul %31, %32, %cst_13 {dimension_numbers = #tpu.dot_dimension_numbers<[1], [1], [0], [0], [0, 0, 1, 0], [], []>} : vector<64x16xf32>, vector<64x16xf32>, vector<64x64xf32> -> vector<64x64xf32>
    "tpu.trace_stop"() : () -> ()
    %cst_14 = arith.constant 2.500000e-01 : f32
    %34 = vector.broadcast %cst_14 : f32 to vector<64x64xf32>
    %35 = arith.mulf %33, %34 : vector<64x64xf32>
    %c1 = arith.constant 1 : index
    %c0_15 = arith.constant 0 : index
    %c0_16 = arith.constant 0 : index
    %36 = vector.load %arg6[%c1, %c0_15, %c0_16] : memref<2x64x64xf32, #tpu.memory_space<vmem>>, vector<1x64x64xf32>
    %37 = vector.shape_cast %36 : vector<1x64x64xf32> to vector<64x64xf32>
    %38 = arith.addf %35, %37 : vector<64x64xf32>
    %cst_17 = arith.constant dense<0xFF800000> : vector<64xf32>
    %39 = vector.multi_reduction <maximumf>, %38, %cst_17 [1] : vector<64x64xf32> to vector<64xf32>
    %40 = vector.shape_cast %39 : vector<64xf32> to vector<64x1xf32>
    %41 = vector.broadcast %40 : vector<64x1xf32> to vector<64x64xf32>
    %42 = arith.subf %38, %41 : vector<64x64xf32>
    %43 = math.exp %42 : vector<64x64xf32>
    %cst_18 = arith.constant dense<0.000000e+00> : vector<64xf32>
    %44 = vector.multi_reduction <add>, %43, %cst_18 [1] : vector<64x64xf32> to vector<64xf32>
    %45 = vector.shape_cast %44 : vector<64xf32> to vector<64x1xf32>
    %46 = tpu.reciprocal %45 {approx = true} : vector<64x1xf32> -> vector<64x1xf32>
    %47 = vector.extract_strided_slice %8 {offsets = [0, 16], sizes = [64, 16], strides = [1, 1]} : vector<64x32xf32> to vector<64x16xf32>
    %cst_19 = arith.constant dense<0.000000e+00> : vector<64x16xf32>
    %48 = tpu.matmul %43, %47, %cst_19 {dimension_numbers = #tpu.dot_dimension_numbers<[1], [0], [0], [1], [0, 0, 1, 1], [], []>} : vector<64x64xf32>, vector<64x16xf32>, vector<64x16xf32> -> vector<64x16xf32>
    %49 = vector.broadcast %46 : vector<64x1xf32> to vector<64x16xf32>
    %50 = arith.mulf %48, %49 : vector<64x16xf32>
    %51 = tpu.concatenate %30, %50 in 1 : vector<64x16xf32>, vector<64x16xf32> -> vector<64x32xf32>
    %c0_20 = arith.constant 0 : index
    %c0_21 = arith.constant 0 : index
    %c0_22 = arith.constant 0 : index
    %52 = vector.load %arg7[%c0_20, %c0_21, %c0_22] : memref<1x64x32xf32, #tpu.memory_space<vmem>>, vector<1x64x32xf32>
    %53 = vector.shape_cast %52 : vector<1x64x32xf32> to vector<64x32xf32>
    %54 = vector.shape_cast %51 : vector<64x32xf32> to vector<1x64x32xf32>
    tpu.vector_store %arg7[%c0_20, %c0_21, %c0_22], %54 {strides = array<i32>} : memref<1x64x32xf32, #tpu.memory_space<vmem>>, vector<1x64x32xf32>,
    return
  }
  func.func @transform_0(%arg0: i32, %arg1: i32, %arg2: memref<1xi32, #tpu.memory_space<smem>>) -> (i32, i32, i32) {
    %c0_i32 = arith.constant 0 : i32
    %c0_i32_0 = arith.constant 0 : i32
    return %arg0, %arg1, %c0_i32 : i32, i32, i32
  }
  func.func @transform_1(%arg0: i32, %arg1: i32, %arg2: memref<1xi32, #tpu.memory_space<smem>>) -> (i32, i32, i32) {
    %c0_i32 = arith.constant 0 : i32
    %c0_i32_0 = arith.constant 0 : i32
    %c0_i32_1 = arith.constant 0 : i32
    return %arg0, %c0_i32, %c0_i32_0 : i32, i32, i32
  }
  func.func @transform_2(%arg0: i32, %arg1: i32, %arg2: memref<1xi32, #tpu.memory_space<smem>>) -> (i32, i32, i32) {
    %c0_i32 = arith.constant 0 : i32
    %c0_i32_0 = arith.constant 0 : i32
    %c0_i32_1 = arith.constant 0 : i32
    return %arg0, %c0_i32, %c0_i32_0 : i32, i32, i32
  }
  func.func @transform_3(%arg0: i32, %arg1: i32, %arg2: memref<1xi32, #tpu.memory_space<smem>>) -> (i32, i32, i32) {
    %c0_i32 = arith.constant 0 : i32
    %c0_i32_0 = arith.constant 0 : i32
    %c0_i32_1 = arith.constant 0 : i32
    return %c0_i32, %arg1, %c0_i32_0 : i32, i32, i32
  }
  func.func @transform_4(%arg0: i32, %arg1: i32, %arg2: memref<1xi32, #tpu.memory_space<smem>>) -> (i32, i32, i32) {
    %c0_i32 = arith.constant 0 : i32
    %c0_i32_0 = arith.constant 0 : i32
    return %arg0, %arg1, %c0_i32 : i32, i32, i32
  }
}

module attributes {stable_mosaic.version = 11 : i64} {
  func.func @_matmul_bias_res_kernel(%arg0: i32, %arg1: i32, %arg2: memref<128x32xf32, #tpu.memory_space<vmem>>, %arg3: memref<32x32xf32, #tpu.memory_space<vmem>>, %arg4: memref<1x32xf32, #tpu.memory_space<vmem>>, %arg5: memref<128x32xf32, #tpu.memory_space<vmem>>, %arg6: memref<128x32xf32, #tpu.memory_space<vmem>>) attributes {dimension_semantics = [#tpu.dimension_semantics<parallel>, #tpu.dimension_semantics<parallel>], iteration_bounds = array<i64: 1, 1>, scalar_prefetch = 0 : i64, scratch_operands = 0 : i64, tpu.core_type = #tpu.core_type<tc>, window_params = [{transform_indices = @transform_0, window_bounds = array<i64: 128, 32>}, {transform_indices = @transform_1, window_bounds = array<i64: 32, 32>}, {transform_indices = @transform_2, window_bounds = array<i64: 1, 32>}, {transform_indices = @transform_3, window_bounds = array<i64: 128, 32>}, {transform_indices = @transform_4, window_bounds = array<i64: 128, 32>}]} {
    %c0 = arith.constant 0 : index
    %c0_0 = arith.constant 0 : index
    %0 = vector.load %arg2[%c0, %c0_0] : memref<128x32xf32, #tpu.memory_space<vmem>>, vector<128x32xf32>
    %c0_1 = arith.constant 0 : index
    %c0_2 = arith.constant 0 : index
    %1 = vector.load %arg3[%c0_1, %c0_2] : memref<32x32xf32, #tpu.memory_space<vmem>>, vector<32x32xf32>
    %cst = arith.constant dense<0.000000e+00> : vector<128x32xf32>
    %2 = tpu.matmul %0, %1, %cst {dimension_numbers = #tpu.dot_dimension_numbers<[1], [0], [0], [1], [0, 0, 1, 1], [], []>} : vector<128x32xf32>, vector<32x32xf32>, vector<128x32xf32> -> vector<128x32xf32>
    %c0_3 = arith.constant 0 : index
    %c0_4 = arith.constant 0 : index
    %3 = vector.load %arg4[%c0_3, %c0_4] : memref<1x32xf32, #tpu.memory_space<vmem>>, vector<1x32xf32>
    %4 = vector.broadcast %3 : vector<1x32xf32> to vector<128x32xf32>
    %5 = arith.addf %2, %4 : vector<128x32xf32>
    %c0_5 = arith.constant 0 : index
    %c0_6 = arith.constant 0 : index
    %6 = vector.load %arg5[%c0_5, %c0_6] : memref<128x32xf32, #tpu.memory_space<vmem>>, vector<128x32xf32>
    %7 = arith.addf %5, %6 : vector<128x32xf32>
    %c0_7 = arith.constant 0 : index
    %c0_8 = arith.constant 0 : index
    %8 = vector.load %arg6[%c0_7, %c0_8] : memref<128x32xf32, #tpu.memory_space<vmem>>, vector<128x32xf32>
    tpu.vector_store %arg6[%c0_7, %c0_8], %7 {strides = array<i32>} : memref<128x32xf32, #tpu.memory_space<vmem>>, vector<128x32xf32>,
    return
  }
  func.func @transform_0(%arg0: i32, %arg1: i32) -> (i32, i32) {
    %c0_i32 = arith.constant 0 : i32
    %c0_i32_0 = arith.constant 0 : i32
    return %arg0, %c0_i32 : i32, i32
  }
  func.func @transform_1(%arg0: i32, %arg1: i32) -> (i32, i32) {
    %c0_i32 = arith.constant 0 : i32
    %c0_i32_0 = arith.constant 0 : i32
    return %c0_i32, %arg1 : i32, i32
  }
  func.func @transform_2(%arg0: i32, %arg1: i32) -> (i32, i32) {
    %c0_i32 = arith.constant 0 : i32
    %c0_i32_0 = arith.constant 0 : i32
    return %c0_i32, %arg1 : i32, i32
  }
  func.func @transform_3(%arg0: i32, %arg1: i32) -> (i32, i32) {
    %c0_i32 = arith.constant 0 : i32
    return %arg0, %arg1 : i32, i32
  }
  func.func @transform_4(%arg0: i32, %arg1: i32) -> (i32, i32) {
    %c0_i32 = arith.constant 0 : i32
    return %arg0, %arg1 : i32, i32
  }
}

module attributes {stable_mosaic.version = 11 : i64} {
  func.func @_ln_matmul_star_kernel(%arg0: i32, %arg1: i32, %arg2: memref<128x32xf32, #tpu.memory_space<vmem>>, %arg3: memref<1x32xf32, #tpu.memory_space<vmem>>, %arg4: memref<1x32xf32, #tpu.memory_space<vmem>>, %arg5: memref<32x128xf32, #tpu.memory_space<vmem>>, %arg6: memref<1x128xf32, #tpu.memory_space<vmem>>, %arg7: memref<1x1xf32, #tpu.memory_space<vmem>>, %arg8: memref<1x1xf32, #tpu.memory_space<vmem>>, %arg9: memref<128x128xf32, #tpu.memory_space<vmem>>) attributes {dimension_semantics = [#tpu.dimension_semantics<parallel>, #tpu.dimension_semantics<parallel>], iteration_bounds = array<i64: 1, 1>, scalar_prefetch = 0 : i64, scratch_operands = 0 : i64, tpu.core_type = #tpu.core_type<tc>, window_params = [{transform_indices = @transform_0, window_bounds = array<i64: 128, 32>}, {pipeline_mode = #tpu.pipeline_mode<synchronous>, transform_indices = @transform_1, window_bounds = array<i64: 1, 32>}, {pipeline_mode = #tpu.pipeline_mode<synchronous>, transform_indices = @transform_2, window_bounds = array<i64: 1, 32>}, {transform_indices = @transform_3, window_bounds = array<i64: 32, 128>}, {transform_indices = @transform_4, window_bounds = array<i64: 1, 128>}, {pipeline_mode = #tpu.pipeline_mode<synchronous>, transform_indices = @transform_5, window_bounds = array<i64: 1, 1>}, {pipeline_mode = #tpu.pipeline_mode<synchronous>, transform_indices = @transform_6, window_bounds = array<i64: 1, 1>}, {transform_indices = @transform_7, window_bounds = array<i64: 128, 128>}]} {
    %c0 = arith.constant 0 : index
    %c0_0 = arith.constant 0 : index
    %0 = vector.load %arg2[%c0, %c0_0] : memref<128x32xf32, #tpu.memory_space<vmem>>, vector<128x32xf32>
    %cst = arith.constant dense<0.000000e+00> : vector<128xf32>
    %1 = vector.multi_reduction <add>, %0, %cst [1] : vector<128x32xf32> to vector<128xf32>
    %2 = vector.shape_cast %1 : vector<128xf32> to vector<128x1xf32>
    %cst_1 = arith.constant 3.200000e+01 : f32
    %3 = vector.broadcast %cst_1 : f32 to vector<128x1xf32>
    %4 = arith.divf %2, %3 : vector<128x1xf32>
    %5 = vector.broadcast %4 : vector<128x1xf32> to vector<128x32xf32>
    %6 = arith.subf %0, %5 : vector<128x32xf32>
    %7 = arith.mulf %6, %6 : vector<128x32xf32>
    %cst_2 = arith.constant dense<0.000000e+00> : vector<128xf32>
    %8 = vector.multi_reduction <add>, %7, %cst_2 [1] : vector<128x32xf32> to vector<128xf32>
    %9 = vector.shape_cast %8 : vector<128xf32> to vector<128x1xf32>
    %cst_3 = arith.constant 3.200000e+01 : f32
    %10 = vector.broadcast %cst_3 : f32 to vector<128x1xf32>
    %11 = arith.divf %9, %10 : vector<128x1xf32>
    %cst_4 = arith.constant 9.99999974E-6 : f32
    %12 = vector.broadcast %cst_4 : f32 to vector<128x1xf32>
    %13 = arith.addf %11, %12 : vector<128x1xf32>
    %14 = math.rsqrt %13 : vector<128x1xf32>
    %15 = vector.broadcast %14 : vector<128x1xf32> to vector<128x32xf32>
    %16 = arith.mulf %6, %15 : vector<128x32xf32>
    %c0_5 = arith.constant 0 : index
    %c0_6 = arith.constant 0 : index
    %17 = vector.load %arg3[%c0_5, %c0_6] : memref<1x32xf32, #tpu.memory_space<vmem>>, vector<1x32xf32>
    %18 = vector.broadcast %17 : vector<1x32xf32> to vector<128x32xf32>
    %19 = arith.mulf %16, %18 : vector<128x32xf32>
    %c0_7 = arith.constant 0 : index
    %c0_8 = arith.constant 0 : index
    %20 = vector.load %arg4[%c0_7, %c0_8] : memref<1x32xf32, #tpu.memory_space<vmem>>, vector<1x32xf32>
    %21 = vector.broadcast %20 : vector<1x32xf32> to vector<128x32xf32>
    %22 = arith.addf %19, %21 : vector<128x32xf32>
    %c0_9 = arith.constant 0 : index
    %c0_10 = arith.constant 0 : index
    %23 = vector.load %arg5[%c0_9, %c0_10] : memref<32x128xf32, #tpu.memory_space<vmem>>, vector<32x128xf32>
    %cst_11 = arith.constant dense<0.000000e+00> : vector<128x128xf32>
    %24 = tpu.matmul %22, %23, %cst_11 {dimension_numbers = #tpu.dot_dimension_numbers<[1], [0], [0], [1], [0, 0, 1, 1], [], []>} : vector<128x32xf32>, vector<32x128xf32>, vector<128x128xf32> -> vector<128x128xf32>
    %c0_12 = arith.constant 0 : index
    %c0_13 = arith.constant 0 : index
    %25 = vector.load %arg6[%c0_12, %c0_13] : memref<1x128xf32, #tpu.memory_space<vmem>>, vector<1x128xf32>
    %26 = vector.broadcast %25 : vector<1x128xf32> to vector<128x128xf32>
    %27 = arith.addf %24, %26 : vector<128x128xf32>
    %cst_14 = arith.constant 0.000000e+00 : f32
    %28 = vector.broadcast %cst_14 : f32 to vector<128x128xf32>
    %29 = arith.maximumf %27, %28 : vector<128x128xf32>
    %c0_15 = arith.constant 0 : index
    %c0_16 = arith.constant 0 : index
    %30 = vector.load %arg7[%c0_15, %c0_16] : memref<1x1xf32, #tpu.memory_space<vmem>>, vector<1x1xf32>
    %31 = vector.extract %30[0, 0] : f32 from vector<1x1xf32>
    %32 = vector.broadcast %31 : f32 to vector<128x128xf32>
    %33 = arith.mulf %32, %29 : vector<128x128xf32>
    %34 = arith.mulf %33, %29 : vector<128x128xf32>
    %c0_17 = arith.constant 0 : index
    %c0_18 = arith.constant 0 : index
    %35 = vector.load %arg8[%c0_17, %c0_18] : memref<1x1xf32, #tpu.memory_space<vmem>>, vector<1x1xf32>
    %36 = vector.extract %35[0, 0] : f32 from vector<1x1xf32>
    %37 = vector.broadcast %36 : f32 to vector<128x128xf32>
    %38 = arith.addf %34, %37 : vector<128x128xf32>
    %c0_19 = arith.constant 0 : index
    %c0_20 = arith.constant 0 : index
    %39 = vector.load %arg9[%c0_19, %c0_20] : memref<128x128xf32, #tpu.memory_space<vmem>>, vector<128x128xf32>
    tpu.vector_store %arg9[%c0_19, %c0_20], %38 {strides = array<i32>} : memref<128x128xf32, #tpu.memory_space<vmem>>, vector<128x128xf32>,
    return
  }
  func.func @transform_0(%arg0: i32, %arg1: i32) -> (i32, i32) {
    %c0_i32 = arith.constant 0 : i32
    %c0_i32_0 = arith.constant 0 : i32
    return %arg0, %c0_i32 : i32, i32
  }
  func.func @transform_1(%arg0: i32, %arg1: i32) -> (i32, i32) {
    %c0_i32 = arith.constant 0 : i32
    %c0_i32_0 = arith.constant 0 : i32
    %c0_i32_1 = arith.constant 0 : i32
    return %c0_i32, %c0_i32_0 : i32, i32
  }
  func.func @transform_2(%arg0: i32, %arg1: i32) -> (i32, i32) {
    %c0_i32 = arith.constant 0 : i32
    %c0_i32_0 = arith.constant 0 : i32
    %c0_i32_1 = arith.constant 0 : i32
    return %c0_i32, %c0_i32_0 : i32, i32
  }
  func.func @transform_3(%arg0: i32, %arg1: i32) -> (i32, i32) {
    %c0_i32 = arith.constant 0 : i32
    %c0_i32_0 = arith.constant 0 : i32
    return %c0_i32, %arg1 : i32, i32
  }
  func.func @transform_4(%arg0: i32, %arg1: i32) -> (i32, i32) {
    %c0_i32 = arith.constant 0 : i32
    %c0_i32_0 = arith.constant 0 : i32
    return %c0_i32, %arg1 : i32, i32
  }
  func.func @transform_5(%arg0: i32, %arg1: i32) -> (i32, i32) {
    %c0_i32 = arith.constant 0 : i32
    %c0_i32_0 = arith.constant 0 : i32
    %c0_i32_1 = arith.constant 0 : i32
    return %c0_i32, %c0_i32_0 : i32, i32
  }
  func.func @transform_6(%arg0: i32, %arg1: i32) -> (i32, i32) {
    %c0_i32 = arith.constant 0 : i32
    %c0_i32_0 = arith.constant 0 : i32
    %c0_i32_1 = arith.constant 0 : i32
    return %c0_i32, %c0_i32_0 : i32, i32
  }
  func.func @transform_7(%arg0: i32, %arg1: i32) -> (i32, i32) {
    %c0_i32 = arith.constant 0 : i32
    return %arg0, %arg1 : i32, i32
  }
}

module attributes {stable_mosaic.version = 11 : i64} {
  func.func @_matmul_bias_res_kernel(%arg0: i32, %arg1: i32, %arg2: memref<128x128xf32, #tpu.memory_space<vmem>>, %arg3: memref<128x32xf32, #tpu.memory_space<vmem>>, %arg4: memref<1x32xf32, #tpu.memory_space<vmem>>, %arg5: memref<128x32xf32, #tpu.memory_space<vmem>>, %arg6: memref<128x32xf32, #tpu.memory_space<vmem>>) attributes {dimension_semantics = [#tpu.dimension_semantics<parallel>, #tpu.dimension_semantics<parallel>], iteration_bounds = array<i64: 1, 1>, scalar_prefetch = 0 : i64, scratch_operands = 0 : i64, tpu.core_type = #tpu.core_type<tc>, window_params = [{transform_indices = @transform_0, window_bounds = array<i64: 128, 128>}, {transform_indices = @transform_1, window_bounds = array<i64: 128, 32>}, {transform_indices = @transform_2, window_bounds = array<i64: 1, 32>}, {transform_indices = @transform_3, window_bounds = array<i64: 128, 32>}, {transform_indices = @transform_4, window_bounds = array<i64: 128, 32>}]} {
    %c0 = arith.constant 0 : index
    %c0_0 = arith.constant 0 : index
    %0 = vector.load %arg2[%c0, %c0_0] : memref<128x128xf32, #tpu.memory_space<vmem>>, vector<128x128xf32>
    %c0_1 = arith.constant 0 : index
    %c0_2 = arith.constant 0 : index
    %1 = vector.load %arg3[%c0_1, %c0_2] : memref<128x32xf32, #tpu.memory_space<vmem>>, vector<128x32xf32>
    %cst = arith.constant dense<0.000000e+00> : vector<128x32xf32>
    %2 = tpu.matmul %0, %1, %cst {dimension_numbers = #tpu.dot_dimension_numbers<[1], [0], [0], [1], [0, 0, 1, 1], [], []>} : vector<128x128xf32>, vector<128x32xf32>, vector<128x32xf32> -> vector<128x32xf32>
    %c0_3 = arith.constant 0 : index
    %c0_4 = arith.constant 0 : index
    %3 = vector.load %arg4[%c0_3, %c0_4] : memref<1x32xf32, #tpu.memory_space<vmem>>, vector<1x32xf32>
    %4 = vector.broadcast %3 : vector<1x32xf32> to vector<128x32xf32>
    %5 = arith.addf %2, %4 : vector<128x32xf32>
    %c0_5 = arith.constant 0 : index
    %c0_6 = arith.constant 0 : index
    %6 = vector.load %arg5[%c0_5, %c0_6] : memref<128x32xf32, #tpu.memory_space<vmem>>, vector<128x32xf32>
    %7 = arith.addf %5, %6 : vector<128x32xf32>
    %c0_7 = arith.constant 0 : index
    %c0_8 = arith.constant 0 : index
    %8 = vector.load %arg6[%c0_7, %c0_8] : memref<128x32xf32, #tpu.memory_space<vmem>>, vector<128x32xf32>
    tpu.vector_store %arg6[%c0_7, %c0_8], %7 {strides = array<i32>} : memref<128x32xf32, #tpu.memory_space<vmem>>, vector<128x32xf32>,
    return
  }
  func.func @transform_0(%arg0: i32, %arg1: i32) -> (i32, i32) {
    %c0_i32 = arith.constant 0 : i32
    %c0_i32_0 = arith.constant 0 : i32
    return %arg0, %c0_i32 : i32, i32
  }
  func.func @transform_1(%arg0: i32, %arg1: i32) -> (i32, i32) {
    %c0_i32 = arith.constant 0 : i32
    %c0_i32_0 = arith.constant 0 : i32
    return %c0_i32, %arg1 : i32, i32
  }
  func.func @transform_2(%arg0: i32, %arg1: i32) -> (i32, i32) {
    %c0_i32 = arith.constant 0 : i32
    %c0_i32_0 = arith.constant 0 : i32
    return %c0_i32, %arg1 : i32, i32
  }
  func.func @transform_3(%arg0: i32, %arg1: i32) -> (i32, i32) {
    %c0_i32 = arith.constant 0 : i32
    return %arg0, %arg1 : i32, i32
  }
  func.func @transform_4(%arg0: i32, %arg1: i32) -> (i32, i32) {
    %c0_i32 = arith.constant 0 : i32
    return %arg0, %arg1 : i32, i32
  }
}

</mosaic_0001>

<llo_original>
// kernel: na_transformer_layer_forward.5
$region0: #{na_transformer_layer_forward.5}
  #allocation0 [shape = 'u32[]', space=smem, size = 0x4, offset = 0x4, fixed_abs, tag = 'smem constant byte address 0x4 - core index']
  #allocation1 [shape = 'u32[144,128]{1,0:T(1,128)}', space=vmem, size = 0x12000, scoped, tag = 'internal scratch']
  %s0 = inlined_call_operand.vmem [shape: f32[128,32], index: 0, kind: input, shape index: {}]
  %s1 = inlined_call_operand.hbm [shape: f32[1,32], index: 1, kind: input, shape index: {}]
  %s2 = inlined_call_operand.hbm [shape: f32[1,32], index: 2, kind: input, shape index: {}]
  %s3 = inlined_call_operand.hbm [shape: f32[32,96], index: 3, kind: input, shape index: {}]
  %s4 = inlined_call_operand.hbm [shape: f32[1,96], index: 4, kind: input, shape index: {}]
  %s5 = inlined_call_operand.vmem [shape: f32[128,32], index: 5, kind: output, shape index: {0}]
  %s6 = inlined_call_operand.vmem [shape: f32[128,32], index: 6, kind: output, shape index: {1}]
  %s7 = inlined_call_operand.vmem [shape: f32[128,32], index: 7, kind: output, shape index: {2}]
  %8 = xla_tuple %s5, %s6, %s7
  %s9 = sld [smem:[#allocation0]]
  $region62: #{na_transformer_layer_forward.5} parent=0
    _
  %s11 = ssub.s32 1, %s9
  %s12 = scalar_select 0, %s11, %s9
  $region1: #{na_transformer_layer_forward.5} parent=0
    #allocation2 [shape = 'u8[512]{0}', space=vmem, size = 0x400, scoped, tag = 'input window, operand 1, single buffered']
    #allocation3 [shape = 's32[1]{0}', space=sflag, size = 0x4, scoped, tag = 'scoped memory for na_transformer_layer_forward.5']
    #allocation4 [shape = 'u8[512]{0}', space=vmem, size = 0x400, scoped, tag = 'input window, operand 2, single buffered']
    #allocation5 [shape = 's32[1]{0}', space=sflag, size = 0x4, scoped, tag = 'scoped memory for na_transformer_layer_forward.5']
    #allocation6 [shape = 'u8[16384]{0}', space=vmem, size = 0x4000, scoped, tag = 'input window, operand 3, single buffered']
    #allocation7 [shape = 'u8[512]{0}', space=vmem, size = 0x400, scoped, tag = 'input window, operand 4, single buffered']
    #allocation8 [shape = 's32[1]{0}', space=sflag, size = 0x4, scoped, tag = 'scoped memory for na_transformer_layer_forward.5']
    %13 = vsyncpa [#allocation3], 0
    %14 = vsyncpa [#allocation5], 0
    %15 = vsyncpa [#allocation8], 0
    // Predicated region
    $region2: #{na_transformer_layer_forward.5} parent=1 // pred_check
      _
    $region3: #{na_transformer_layer_forward.5} parent=1 // pred_check_branch
      %17 = sbr.rel (0) target = $region5
    $region4: #{na_transformer_layer_forward.5} parent=1 // pred_region
      _
    $region5: #{na_transformer_layer_forward.5} parent=1 // pred_fallthru
      _
    // Predicated region
    $region6: #{na_transformer_layer_forward.5} parent=1 // pred_check
      _
    $region7: #{na_transformer_layer_forward.5} parent=1 // pred_check_branch
      %19 = sbr.rel (0) target = $region9
    $region8: #{na_transformer_layer_forward.5} parent=1 // pred_region
      %s21 = ssub.s32 16, 16
      %22 = vsyncadd [#allocation3], %s21
      %s24 = sshll.u32 [#allocation2], 4
      %s25 = int_to_ptr.vmem [resolvable:$true] %s24
      %27 = dma.hbm_to_vmem [thread:$0]  %s1, 16, %s25, [#allocation3]
    $region9: #{na_transformer_layer_forward.5} parent=1 // pred_fallthru
      _
    // Predicated region
    $region10: #{na_transformer_layer_forward.5} parent=1 // pred_check
      _
    $region11: #{na_transformer_layer_forward.5} parent=1 // pred_check_branch
      %29 = sbr.rel (0) target = $region13
    $region12: #{na_transformer_layer_forward.5} parent=1 // pred_region
      %s31 = ssub.s32 16, 16
      %32 = vsyncadd [#allocation5], %s31
      %s34 = sshll.u32 [#allocation4], 4
      %s35 = int_to_ptr.vmem [resolvable:$true] %s34
      %37 = dma.hbm_to_vmem [thread:$0]  %s2, 16, %s35, [#allocation5]
    $region13: #{na_transformer_layer_forward.5} parent=1 // pred_fallthru
      _
    // Predicated region
    $region14: #{na_transformer_layer_forward.5} parent=1 // pred_check
      _
    $region15: #{na_transformer_layer_forward.5} parent=1 // pred_check_branch
      %39 = sbr.rel (0) target = $region17
    $region16: #{na_transformer_layer_forward.5} parent=1 // pred_region
      %s41 = ssub.s32 512, 512
      %42 = vsyncadd [#allocation5], %s41
      %s43 = sshll.u32 [#allocation6], 4
      %s44 = int_to_ptr.vmem [resolvable:$true] %s43
      %49 = dma.hbm_to_vmem [thread:$0]  %s3, 512, %s44, [#allocation5], 128, 128, 8
    $region17: #{na_transformer_layer_forward.5} parent=1 // pred_fallthru
      _
    // Predicated region
    $region18: #{na_transformer_layer_forward.5} parent=1 // pred_check
      _
    $region19: #{na_transformer_layer_forward.5} parent=1 // pred_check_branch
      %51 = sbr.rel (0) target = $region21
    $region20: #{na_transformer_layer_forward.5} parent=1 // pred_region
      %s53 = ssub.s32 16, 16
      %54 = vsyncadd [#allocation8], %s53
      %s56 = sshll.u32 [#allocation7], 4
      %s57 = int_to_ptr.vmem [resolvable:$true] %s56
      %59 = dma.hbm_to_vmem [thread:$0]  %s4, 16, %s57, [#allocation8]
    $region21: #{na_transformer_layer_forward.5} parent=1 // pred_fallthru
      _
    // Predicated region
    $region22: #{na_transformer_layer_forward.5} parent=1 // pred_check
      _
    $region23: #{na_transformer_layer_forward.5} parent=1 // pred_check_branch
      %61 = sbr.rel (0) target = $region25
    $region24: #{na_transformer_layer_forward.5} parent=1 // pred_region
      %62 = dma.done [#allocation3], 16
    $region25: #{na_transformer_layer_forward.5} parent=1 // pred_fallthru
      _
    // Predicated region
    $region26: #{na_transformer_layer_forward.5} parent=1 // pred_check
      _
    $region27: #{na_transformer_layer_forward.5} parent=1 // pred_check_branch
      %64 = sbr.rel (0) target = $region29
    $region28: #{na_transformer_layer_forward.5} parent=1 // pred_region
      %65 = dma.done [#allocation5], 16
    $region29: #{na_transformer_layer_forward.5} parent=1 // pred_fallthru
      _
    // Predicated region
    $region30: #{na_transformer_layer_forward.5} parent=1 // pred_check
      _
    $region31: #{na_transformer_layer_forward.5} parent=1 // pred_check_branch
      %67 = sbr.rel (0) target = $region33
    $region32: #{na_transformer_layer_forward.5} parent=1 // pred_region
      %68 = dma.done [#allocation5], 512
    $region33: #{na_transformer_layer_forward.5} parent=1 // pred_fallthru
      _
    // Predicated region
    $region34: #{na_transformer_layer_forward.5} parent=1 // pred_check
      _
    $region35: #{na_transformer_layer_forward.5} parent=1 // pred_check_branch
      %70 = sbr.rel (0) target = $region37
    $region36: #{na_transformer_layer_forward.5} parent=1 // pred_region
      %71 = dma.done [#allocation8], 16
    $region37: #{na_transformer_layer_forward.5} parent=1 // pred_fallthru
      _
    %v72 = vld [vmem:[%s0] sm:$0xff]
    %v73 = vld [vmem:[%s0 + $0x8] sm:$0xff]
    %v74 = vld [vmem:[%s0 + $0x10] sm:$0xff]
    %v75 = vld [vmem:[%s0 + $0x18] sm:$0xff]
    %v76 = vld [vmem:[%s0 + $0x20] sm:$0xff]
    %v77 = vld [vmem:[%s0 + $0x28] sm:$0xff]
    %v78 = vld [vmem:[%s0 + $0x30] sm:$0xff]
    %v79 = vld [vmem:[%s0 + $0x38] sm:$0xff]
    %v80 = vld [vmem:[%s0 + $0x40] sm:$0xff]
    %v81 = vld [vmem:[%s0 + $0x48] sm:$0xff]
    %v82 = vld [vmem:[%s0 + $0x50] sm:$0xff]
    %v83 = vld [vmem:[%s0 + $0x58] sm:$0xff]
    %v84 = vld [vmem:[%s0 + $0x60] sm:$0xff]
    %v85 = vld [vmem:[%s0 + $0x68] sm:$0xff]
    %v86 = vld [vmem:[%s0 + $0x70] sm:$0xff]
    %v87 = vld [vmem:[%s0 + $0x78] sm:$0xff]
    %vm88 = vcmask 261120
    %v89 = vsel %vm88, %v72, 0.0
    %90 = vadd.xlane.f32.xlu0 %v89
    %v91 = vpop.xlane.xlu0 %90
    %v92 = vsel %vm88, %v73, 0.0
    %93 = vadd.xlane.f32.xlu0 %v92
    %v94 = vpop.xlane.xlu0 %93
    %v95 = vsel %vm88, %v74, 0.0
    %96 = vadd.xlane.f32.xlu0 %v95
    %v97 = vpop.xlane.xlu0 %96
    %v98 = vsel %vm88, %v75, 0.0
    %99 = vadd.xlane.f32.xlu0 %v98
    %v100 = vpop.xlane.xlu0 %99
    %v101 = vsel %vm88, %v76, 0.0
    %102 = vadd.xlane.f32.xlu0 %v101
    %v103 = vpop.xlane.xlu0 %102
    %v104 = vsel %vm88, %v77, 0.0
    %105 = vadd.xlane.f32.xlu0 %v104
    %v106 = vpop.xlane.xlu0 %105
    %v107 = vsel %vm88, %v78, 0.0
    %108 = vadd.xlane.f32.xlu0 %v107
    %v109 = vpop.xlane.xlu0 %108
    %v110 = vsel %vm88, %v79, 0.0
    %111 = vadd.xlane.f32.xlu0 %v110
    %v112 = vpop.xlane.xlu0 %111
    %v113 = vsel %vm88, %v80, 0.0
    %114 = vadd.xlane.f32.xlu0 %v113
    %v115 = vpop.xlane.xlu0 %114
    %v116 = vsel %vm88, %v81, 0.0
    %117 = vadd.xlane.f32.xlu0 %v116
    %v118 = vpop.xlane.xlu0 %117
    %v119 = vsel %vm88, %v82, 0.0
    %120 = vadd.xlane.f32.xlu0 %v119
    %v121 = vpop.xlane.xlu0 %120
    %v122 = vsel %vm88, %v83, 0.0
    %123 = vadd.xlane.f32.xlu0 %v122
    %v124 = vpop.xlane.xlu0 %123
    %v125 = vsel %vm88, %v84, 0.0
    %126 = vadd.xlane.f32.xlu0 %v125
    %v127 = vpop.xlane.xlu0 %126
    %v128 = vsel %vm88, %v85, 0.0
    %129 = vadd.xlane.f32.xlu0 %v128
    %v130 = vpop.xlane.xlu0 %129
    %v131 = vsel %vm88, %v86, 0.0
    %132 = vadd.xlane.f32.xlu0 %v131
    %v133 = vpop.xlane.xlu0 %132
    %v134 = vsel %vm88, %v87, 0.0
    %135 = vadd.xlane.f32.xlu0 %v134
    %v136 = vpop.xlane.xlu0 %135
    %v137 = vrcp.pop 32.0
    %v138 = vmul.f32 %v91, %v137
    %v139 = vmul.f32 %v94, %v137
    %v140 = vmul.f32 %v97, %v137
    %v141 = vmul.f32 %v100, %v137
    %v142 = vmul.f32 %v103, %v137
    %v143 = vmul.f32 %v106, %v137
    %v144 = vmul.f32 %v109, %v137
    %v145 = vmul.f32 %v112, %v137
    %v146 = vmul.f32 %v115, %v137
    %v147 = vmul.f32 %v118, %v137
    %v148 = vmul.f32 %v121, %v137
    %v149 = vmul.f32 %v124, %v137
    %v150 = vmul.f32 %v127, %v137
    %v151 = vmul.f32 %v130, %v137
    %v152 = vmul.f32 %v133, %v137
    %v153 = vmul.f32 %v136, %v137
    %v154 = vsub.f32 %v72, %v138
    %v155 = vsub.f32 %v73, %v139
    %v156 = vsub.f32 %v74, %v140
    %v157 = vsub.f32 %v75, %v141
    %v158 = vsub.f32 %v76, %v142
    %v159 = vsub.f32 %v77, %v143
    %v160 = vsub.f32 %v78, %v144
    %v161 = vsub.f32 %v79, %v145
    %v162 = vsub.f32 %v80, %v146
    %v163 = vsub.f32 %v81, %v147
    %v164 = vsub.f32 %v82, %v148
    %v165 = vsub.f32 %v83, %v149
    %v166 = vsub.f32 %v84, %v150
    %v167 = vsub.f32 %v85, %v151
    %v168 = vsub.f32 %v86, %v152
    %v169 = vsub.f32 %v87, %v153
    %v170 = vmul.f32 %v154, %v154
    %v171 = vmul.f32 %v155, %v155
    %v172 = vmul.f32 %v156, %v156
    %v173 = vmul.f32 %v157, %v157
    %v174 = vmul.f32 %v158, %v158
    %v175 = vmul.f32 %v159, %v159
    %v176 = vmul.f32 %v160, %v160
    %v177 = vmul.f32 %v161, %v161
    %v178 = vmul.f32 %v162, %v162
    %v179 = vmul.f32 %v163, %v163
    %v180 = vmul.f32 %v164, %v164
    %v181 = vmul.f32 %v165, %v165
    %v182 = vmul.f32 %v166, %v166
    %v183 = vmul.f32 %v167, %v167
    %v184 = vmul.f32 %v168, %v168
    %v185 = vmul.f32 %v169, %v169
    %v186 = vsel %vm88, %v170, 0.0
    %187 = vadd.xlane.f32.xlu0 %v186
    %v188 = vpop.xlane.xlu0 %187
    %v189 = vsel %vm88, %v171, 0.0
    %190 = vadd.xlane.f32.xlu0 %v189
    %v191 = vpop.xlane.xlu0 %190
    %v192 = vsel %vm88, %v172, 0.0
    %193 = vadd.xlane.f32.xlu0 %v192
    %v194 = vpop.xlane.xlu0 %193
    %v195 = vsel %vm88, %v173, 0.0
    %196 = vadd.xlane.f32.xlu0 %v195
    %v197 = vpop.xlane.xlu0 %196
    %v198 = vsel %vm88, %v174, 0.0
    %199 = vadd.xlane.f32.xlu0 %v198
    %v200 = vpop.xlane.xlu0 %199
    %v201 = vsel %vm88, %v175, 0.0
    %202 = vadd.xlane.f32.xlu0 %v201
    %v203 = vpop.xlane.xlu0 %202
    %v204 = vsel %vm88, %v176, 0.0
    %205 = vadd.xlane.f32.xlu0 %v204
    %v206 = vpop.xlane.xlu0 %205
    %v207 = vsel %vm88, %v177, 0.0
    %208 = vadd.xlane.f32.xlu0 %v207
    %v209 = vpop.xlane.xlu0 %208
    %v210 = vsel %vm88, %v178, 0.0
    %211 = vadd.xlane.f32.xlu0 %v210
    %v212 = vpop.xlane.xlu0 %211
    %v213 = vsel %vm88, %v179, 0.0
    %214 = vadd.xlane.f32.xlu0 %v213
    %v215 = vpop.xlane.xlu0 %214
    %v216 = vsel %vm88, %v180, 0.0
    %217 = vadd.xlane.f32.xlu0 %v216
    %v218 = vpop.xlane.xlu0 %217
    %v219 = vsel %vm88, %v181, 0.0
    %220 = vadd.xlane.f32.xlu0 %v219
    %v221 = vpop.xlane.xlu0 %220
    %v222 = vsel %vm88, %v182, 0.0
    %223 = vadd.xlane.f32.xlu0 %v222
    %v224 = vpop.xlane.xlu0 %223
    %v225 = vsel %vm88, %v183, 0.0
    %226 = vadd.xlane.f32.xlu0 %v225
    %v227 = vpop.xlane.xlu0 %226
    %v228 = vsel %vm88, %v184, 0.0
    %229 = vadd.xlane.f32.xlu0 %v228
    %v230 = vpop.xlane.xlu0 %229
    %v231 = vsel %vm88, %v185, 0.0
    %232 = vadd.xlane.f32.xlu0 %v231
    %v233 = vpop.xlane.xlu0 %232
    %v234 = vmul.f32 %v188, %v137
    %v235 = vmul.f32 %v191, %v137
    %v236 = vmul.f32 %v194, %v137
    %v237 = vmul.f32 %v197, %v137
    %v238 = vmul.f32 %v200, %v137
    %v239 = vmul.f32 %v203, %v137
    %v240 = vmul.f32 %v206, %v137
    %v241 = vmul.f32 %v209, %v137
    %v242 = vmul.f32 %v212, %v137
    %v243 = vmul.f32 %v215, %v137
    %v244 = vmul.f32 %v218, %v137
    %v245 = vmul.f32 %v221, %v137
    %v246 = vmul.f32 %v224, %v137
    %v247 = vmul.f32 %v227, %v137
    %v248 = vmul.f32 %v230, %v137
    %v249 = vmul.f32 %v233, %v137
    %v250 = vadd.f32 %v234, 1e-05
    %v251 = vadd.f32 %v235, 1e-05
    %v252 = vadd.f32 %v236, 1e-05
    %v253 = vadd.f32 %v237, 1e-05
    %v254 = vadd.f32 %v238, 1e-05
    %v255 = vadd.f32 %v239, 1e-05
    %v256 = vadd.f32 %v240, 1e-05
    %v257 = vadd.f32 %v241, 1e-05
    %v258 = vadd.f32 %v242, 1e-05
    %v259 = vadd.f32 %v243, 1e-05
    %v260 = vadd.f32 %v244, 1e-05
    %v261 = vadd.f32 %v245, 1e-05
    %v262 = vadd.f32 %v246, 1e-05
    %v263 = vadd.f32 %v247, 1e-05
    %v264 = vadd.f32 %v248, 1e-05
    %v265 = vadd.f32 %v249, 1e-05
    %v266 = vrsqrt.pop %v250
    %v267 = vrsqrt.pop %v251
    %v268 = vrsqrt.pop %v252
    %v269 = vrsqrt.pop %v253
    %v270 = vrsqrt.pop %v254
    %v271 = vrsqrt.pop %v255
    %v272 = vrsqrt.pop %v256
    %v273 = vrsqrt.pop %v257
    %v274 = vrsqrt.pop %v258
    %v275 = vrsqrt.pop %v259
    %v276 = vrsqrt.pop %v260
    %v277 = vrsqrt.pop %v261
    %v278 = vrsqrt.pop %v262
    %v279 = vrsqrt.pop %v263
    %v280 = vrsqrt.pop %v264
    %v281 = vrsqrt.pop %v265
    %v282 = vmul.f32 %v154, %v266
    %v283 = vmul.f32 %v155, %v267
    %v284 = vmul.f32 %v156, %v268
    %v285 = vmul.f32 %v157, %v269
    %v286 = vmul.f32 %v158, %v270
    %v287 = vmul.f32 %v159, %v271
    %v288 = vmul.f32 %v160, %v272
    %v289 = vmul.f32 %v161, %v273
    %v290 = vmul.f32 %v162, %v274
    %v291 = vmul.f32 %v163, %v275
    %v292 = vmul.f32 %v164, %v276
    %v293 = vmul.f32 %v165, %v277
    %v294 = vmul.f32 %v166, %v278
    %v295 = vmul.f32 %v167, %v279
    %v296 = vmul.f32 %v168, %v280
    %v297 = vmul.f32 %v169, %v281
    %v298 = vld [vmem:[#allocation2] sm:$0x1]
    %v300 = vlaneseq
    %v301 = vshrl.u32 %v300, 7
    %v302 = vsub.s32 0, %v301
    %v303 = vrot.slane %v298, %v302
    %v305 = vmul.f32 %v282, %v303
    %v306 = vmul.f32 %v283, %v303
    %v307 = vmul.f32 %v284, %v303
    %v308 = vmul.f32 %v285, %v303
    %v309 = vmul.f32 %v286, %v303
    %v310 = vmul.f32 %v287, %v303
    %v311 = vmul.f32 %v288, %v303
    %v312 = vmul.f32 %v289, %v303
    %v313 = vmul.f32 %v290, %v303
    %v314 = vmul.f32 %v291, %v303
    %v315 = vmul.f32 %v292, %v303
    %v316 = vmul.f32 %v293, %v303
    %v317 = vmul.f32 %v294, %v303
    %v318 = vmul.f32 %v295, %v303
    %v319 = vmul.f32 %v296, %v303
    %v320 = vmul.f32 %v297, %v303
    %v321 = vld [vmem:[#allocation4] sm:$0x1]
    %v323 = vlaneseq
    %v324 = vshrl.u32 %v323, 7
    %v325 = vsub.s32 0, %v324
    %v326 = vrot.slane %v321, %v325
    %v328 = vadd.f32 %v305, %v326
    %v329 = vadd.f32 %v306, %v326
    %v330 = vadd.f32 %v307, %v326
    %v331 = vadd.f32 %v308, %v326
    %v332 = vadd.f32 %v309, %v326
    %v333 = vadd.f32 %v310, %v326
    %v334 = vadd.f32 %v311, %v326
    %v335 = vadd.f32 %v312, %v326
    %v336 = vadd.f32 %v313, %v326
    %v337 = vadd.f32 %v314, %v326
    %v338 = vadd.f32 %v315, %v326
    %v339 = vadd.f32 %v316, %v326
    %v340 = vadd.f32 %v317, %v326
    %v341 = vadd.f32 %v318, %v326
    %v342 = vadd.f32 %v319, %v326
    %v343 = vadd.f32 %v320, %v326
    %v344 = vld [vmem:[#allocation6] sm:$0xff]
    %v345 = vld [vmem:[#allocation6 + $0x8] sm:$0xff]
    %v346 = vld [vmem:[#allocation6 + $0x10] sm:$0xff]
    %v347 = vld [vmem:[#allocation6 + $0x18] sm:$0xff]
    %v348 = vld [vmem:[#allocation7] sm:$0x1]
    %v350 = vlaneseq
    %v351 = vshrl.u32 %v350, 7
    %v352 = vsub.s32 0, %v351
    %v353 = vrot.slane %v348, %v352
    %v356 = vsel %vm88, %v328, 0
    %v359 = vsel %vm88, %v329, 0
    %v362 = vsel %vm88, %v330, 0
    %v365 = vsel %vm88, %v331, 0
    %v368 = vsel %vm88, %v332, 0
    %v371 = vsel %vm88, %v333, 0
    %v374 = vsel %vm88, %v334, 0
    %v377 = vsel %vm88, %v335, 0
    %v380 = vsel %vm88, %v336, 0
    %v383 = vsel %vm88, %v337, 0
    %v386 = vsel %vm88, %v338, 0
    %v389 = vsel %vm88, %v339, 0
    %v392 = vsel %vm88, %v340, 0
    %v395 = vsel %vm88, %v341, 0
    %v398 = vsel %vm88, %v342, 0
    %v401 = vsel %vm88, %v343, 0
    %403 = vmatprep.subr.mxu0 0.0
    %404 = vmatpush1.msra.mxu0 0.0
    %405 = vmatprep.subr.mxu0 0.0
    %406 = vmatpush1.msra.mxu0 0.0
    %407 = vmatprep.subr.mxu0 0.0
    %408 = vmatpush1.msra.mxu0 0.0
    %409 = vmatprep.subr.mxu0 0.0
    %410 = vmatpush1.msra.mxu0 0.0
    %411 = vmatprep.subr.mxu0 0.0
    %412 = vmatpush1.msra.mxu0 0.0
    %413 = vmatprep.subr.mxu0 0.0
    %414 = vmatpush1.msra.mxu0 0.0
    %415 = vmatprep.subr.mxu0 0.0
    %416 = vmatpush1.msra.mxu0 0.0
    %417 = vmatprep.subr.mxu0 0.0
    %418 = vmatpush1.msra.mxu0 0.0
    %419 = vmatprep.subr.mxu0 0.0
    %420 = vmatpush1.msra.mxu0 0.0
    %421 = vmatprep.subr.mxu0 0.0
    %422 = vmatpush1.msra.mxu0 0.0
    %423 = vmatprep.subr.mxu0 0.0
    %424 = vmatpush1.msra.mxu0 0.0
    %425 = vmatprep.subr.mxu0 0.0
    %426 = vmatpush1.msra.mxu0 0.0
    %427 = vmatprep.subr.mxu0 0.0
    %428 = vmatpush1.msra.mxu0 %v347
    %429 = vmatprep.subr.mxu0 0.0
    %430 = vmatpush1.msra.mxu0 %v346
    %431 = vmatprep.subr.mxu0 0.0
    %432 = vmatpush1.msra.mxu0 %v345
    %433 = vmatprep.subr.mxu0 0.0
    %434 = vmatpush1.msra.mxu0 %v344
    %435 = vmatprep.subr.mxu0 0.0
    %436 = vmatpush2.msra.mxu0 0.0
    %437 = vmatprep.subr.mxu0 0.0
    %438 = vmatpush2.msra.mxu0 0.0
    %439 = vmatprep.subr.mxu0 0.0
    %440 = vmatpush2.msra.mxu0 0.0
    %441 = vmatprep.subr.mxu0 0.0
    %442 = vmatpush2.msra.mxu0 0.0
    %443 = vmatprep.subr.mxu0 0.0
    %444 = vmatpush2.msra.mxu0 0.0
    %445 = vmatprep.subr.mxu0 0.0
    %446 = vmatpush2.msra.mxu0 0.0
    %447 = vmatprep.subr.mxu0 0.0
    %448 = vmatpush2.msra.mxu0 0.0
    %449 = vmatprep.subr.mxu0 0.0
    %450 = vmatpush2.msra.mxu0 0.0
    %451 = vmatprep.subr.mxu0 0.0
    %452 = vmatpush2.msra.mxu0 0.0
    %453 = vmatprep.subr.mxu0 0.0
    %454 = vmatpush2.msra.mxu0 0.0
    %455 = vmatprep.subr.mxu0 0.0
    %456 = vmatpush2.msra.mxu0 0.0
    %457 = vmatprep.subr.mxu0 0.0
    %458 = vmatpush2.msra.mxu0 0.0
    %459 = vmatprep.subr.mxu0 0.0
    %460 = vmatpush2.msra.mxu0 0.0
    %461 = vmatprep.subr.mxu0 0.0
    %462 = vmatpush2.msra.mxu0 0.0
    %463 = vmatprep.subr.mxu0 0.0
    %464 = vmatpush2.msra.mxu0 0.0
    %465 = vmatprep.subr.mxu0 0.0
    %466 = vmatpush2.msra.mxu0 0.0
    %467 = vmatprep.mubr.f32.mxu0 0.0
    %468 = vmatmul.mubr.f32.gmra.mxu0 %v356
    %v469 = vpop.f32.mrf.mxu0
    %v470 = vadd.f32 %v353, %v469
    %v471 = vpop.f32.mrf.mxu0
    %472 = vmatprep.mubr.f32.mxu0 0.0
    %473 = vmatmul.mubr.f32.gmra.mxu0 %v359
    %v474 = vpop.f32.mrf.mxu0
    %v475 = vadd.f32 %v353, %v474
    %v476 = vpop.f32.mrf.mxu0
    %477 = vmatprep.mubr.f32.mxu0 0.0
    %478 = vmatmul.mubr.f32.gmra.mxu0 %v362
    %v479 = vpop.f32.mrf.mxu0
    %v480 = vadd.f32 %v353, %v479
    %v481 = vpop.f32.mrf.mxu0
    %482 = vmatprep.mubr.f32.mxu0 0.0
    %483 = vmatmul.mubr.f32.gmra.mxu0 %v365
    %v484 = vpop.f32.mrf.mxu0
    %v485 = vadd.f32 %v353, %v484
    %v486 = vpop.f32.mrf.mxu0
    %487 = vmatprep.mubr.f32.mxu0 0.0
    %488 = vmatmul.mubr.f32.gmra.mxu0 %v368
    %v489 = vpop.f32.mrf.mxu0
    %v490 = vadd.f32 %v353, %v489
    %v491 = vpop.f32.mrf.mxu0
    %492 = vmatprep.mubr.f32.mxu0 0.0
    %493 = vmatmul.mubr.f32.gmra.mxu0 %v371
    %v494 = vpop.f32.mrf.mxu0
    %v495 = vadd.f32 %v353, %v494
    %v496 = vpop.f32.mrf.mxu0
    %497 = vmatprep.mubr.f32.mxu0 0.0
    %498 = vmatmul.mubr.f32.gmra.mxu0 %v374
    %v499 = vpop.f32.mrf.mxu0
    %v500 = vadd.f32 %v353, %v499
    %v501 = vpop.f32.mrf.mxu0
    %502 = vmatprep.mubr.f32.mxu0 0.0
    %503 = vmatmul.mubr.f32.gmra.mxu0 %v377
    %v504 = vpop.f32.mrf.mxu0
    %v505 = vadd.f32 %v353, %v504
    %v506 = vpop.f32.mrf.mxu0
    %507 = vmatprep.mubr.f32.mxu0 0.0
    %508 = vmatmul.mubr.f32.gmra.mxu0 %v380
    %v509 = vpop.f32.mrf.mxu0
    %v510 = vadd.f32 %v353, %v509
    %v511 = vpop.f32.mrf.mxu0
    %512 = vmatprep.mubr.f32.mxu0 0.0
    %513 = vmatmul.mubr.f32.gmra.mxu0 %v383
    %v514 = vpop.f32.mrf.mxu0
    %v515 = vadd.f32 %v353, %v514
    %v516 = vpop.f32.mrf.mxu0
    %517 = vmatprep.mubr.f32.mxu0 0.0
    %518 = vmatmul.mubr.f32.gmra.mxu0 %v386
    %v519 = vpop.f32.mrf.mxu0
    %v520 = vadd.f32 %v353, %v519
    %v521 = vpop.f32.mrf.mxu0
    %522 = vmatprep.mubr.f32.mxu0 0.0
    %523 = vmatmul.mubr.f32.gmra.mxu0 %v389
    %v524 = vpop.f32.mrf.mxu0
    %v525 = vadd.f32 %v353, %v524
    %v526 = vpop.f32.mrf.mxu0
    %527 = vmatprep.mubr.f32.mxu0 0.0
    %528 = vmatmul.mubr.f32.gmra.mxu0 %v392
    %v529 = vpop.f32.mrf.mxu0
    %v530 = vadd.f32 %v353, %v529
    %v531 = vpop.f32.mrf.mxu0
    %532 = vmatprep.mubr.f32.mxu0 0.0
    %533 = vmatmul.mubr.f32.gmra.mxu0 %v395
    %v534 = vpop.f32.mrf.mxu0
    %v535 = vadd.f32 %v353, %v534
    %v536 = vpop.f32.mrf.mxu0
    %537 = vmatprep.mubr.f32.mxu0 0.0
    %538 = vmatmul.mubr.f32.gmra.mxu0 %v398
    %v539 = vpop.f32.mrf.mxu0
    %v540 = vadd.f32 %v353, %v539
    %v541 = vpop.f32.mrf.mxu0
    %542 = vmatprep.mubr.f32.mxu0 0.0
    %543 = vmatmul.mubr.f32.gmra.mxu0 %v401
    %v544 = vpop.f32.mrf.mxu0
    %v545 = vadd.f32 %v353, %v544
    %v546 = vpop.f32.mrf.mxu0
    %547 = vdwg.mxu0
    %548 = vst.msk [vmem:[%s5] sm:$0xff] %vm88, %v470
    %549 = vst.msk [vmem:[%s5 + $0x8] sm:$0xff] %vm88, %v475
    %550 = vst.msk [vmem:[%s5 + $0x10] sm:$0xff] %vm88, %v480
    %551 = vst.msk [vmem:[%s5 + $0x18] sm:$0xff] %vm88, %v485
    %552 = vst.msk [vmem:[%s5 + $0x20] sm:$0xff] %vm88, %v490
    %553 = vst.msk [vmem:[%s5 + $0x28] sm:$0xff] %vm88, %v495
    %554 = vst.msk [vmem:[%s5 + $0x30] sm:$0xff] %vm88, %v500
    %555 = vst.msk [vmem:[%s5 + $0x38] sm:$0xff] %vm88, %v505
    %556 = vst.msk [vmem:[%s5 + $0x40] sm:$0xff] %vm88, %v510
    %557 = vst.msk [vmem:[%s5 + $0x48] sm:$0xff] %vm88, %v515
    %558 = vst.msk [vmem:[%s5 + $0x50] sm:$0xff] %vm88, %v520
    %559 = vst.msk [vmem:[%s5 + $0x58] sm:$0xff] %vm88, %v525
    %560 = vst.msk [vmem:[%s5 + $0x60] sm:$0xff] %vm88, %v530
    %561 = vst.msk [vmem:[%s5 + $0x68] sm:$0xff] %vm88, %v535
    %562 = vst.msk [vmem:[%s5 + $0x70] sm:$0xff] %vm88, %v540
    %563 = vst.msk [vmem:[%s5 + $0x78] sm:$0xff] %vm88, %v545
    %580 = vrot.lane.b32.xlu0 %v470, 96
    %v581 = vpop.permute.xlu0 %580
    %582 = vrot.lane.b32.xlu0 %v475, 96
    %v583 = vpop.permute.xlu0 %582
    %584 = vrot.lane.b32.xlu0 %v480, 96
    %v585 = vpop.permute.xlu0 %584
    %586 = vrot.lane.b32.xlu0 %v485, 96
    %v587 = vpop.permute.xlu0 %586
    %588 = vrot.lane.b32.xlu0 %v490, 96
    %v589 = vpop.permute.xlu0 %588
    %590 = vrot.lane.b32.xlu0 %v495, 96
    %v591 = vpop.permute.xlu0 %590
    %592 = vrot.lane.b32.xlu0 %v500, 96
    %v593 = vpop.permute.xlu0 %592
    %594 = vrot.lane.b32.xlu0 %v505, 96
    %v595 = vpop.permute.xlu0 %594
    %596 = vrot.lane.b32.xlu0 %v510, 96
    %v597 = vpop.permute.xlu0 %596
    %598 = vrot.lane.b32.xlu0 %v515, 96
    %v599 = vpop.permute.xlu0 %598
    %600 = vrot.lane.b32.xlu0 %v520, 96
    %v601 = vpop.permute.xlu0 %600
    %602 = vrot.lane.b32.xlu0 %v525, 96
    %v603 = vpop.permute.xlu0 %602
    %604 = vrot.lane.b32.xlu0 %v530, 96
    %v605 = vpop.permute.xlu0 %604
    %606 = vrot.lane.b32.xlu0 %v535, 96
    %v607 = vpop.permute.xlu0 %606
    %608 = vrot.lane.b32.xlu0 %v540, 96
    %v609 = vpop.permute.xlu0 %608
    %610 = vrot.lane.b32.xlu0 %v545, 96
    %v611 = vpop.permute.xlu0 %610
    %628 = vst.msk [vmem:[%s6] sm:$0xff] %vm88, %v581
    %629 = vst.msk [vmem:[%s6 + $0x8] sm:$0xff] %vm88, %v583
    %630 = vst.msk [vmem:[%s6 + $0x10] sm:$0xff] %vm88, %v585
    %631 = vst.msk [vmem:[%s6 + $0x18] sm:$0xff] %vm88, %v587
    %632 = vst.msk [vmem:[%s6 + $0x20] sm:$0xff] %vm88, %v589
    %633 = vst.msk [vmem:[%s6 + $0x28] sm:$0xff] %vm88, %v591
    %634 = vst.msk [vmem:[%s6 + $0x30] sm:$0xff] %vm88, %v593
    %635 = vst.msk [vmem:[%s6 + $0x38] sm:$0xff] %vm88, %v595
    %636 = vst.msk [vmem:[%s6 + $0x40] sm:$0xff] %vm88, %v597
    %637 = vst.msk [vmem:[%s6 + $0x48] sm:$0xff] %vm88, %v599
    %638 = vst.msk [vmem:[%s6 + $0x50] sm:$0xff] %vm88, %v601
    %639 = vst.msk [vmem:[%s6 + $0x58] sm:$0xff] %vm88, %v603
    %640 = vst.msk [vmem:[%s6 + $0x60] sm:$0xff] %vm88, %v605
    %641 = vst.msk [vmem:[%s6 + $0x68] sm:$0xff] %vm88, %v607
    %642 = vst.msk [vmem:[%s6 + $0x70] sm:$0xff] %vm88, %v609
    %643 = vst.msk [vmem:[%s6 + $0x78] sm:$0xff] %vm88, %v611
    %644 = vrot.lane.b32.xlu0 %v470, 64
    %v645 = vpop.permute.xlu0 %644
    %646 = vrot.lane.b32.xlu0 %v475, 64
    %v647 = vpop.permute.xlu0 %646
    %648 = vrot.lane.b32.xlu0 %v480, 64
    %v649 = vpop.permute.xlu0 %648
    %650 = vrot.lane.b32.xlu0 %v485, 64
    %v651 = vpop.permute.xlu0 %650
    %652 = vrot.lane.b32.xlu0 %v490, 64
    %v653 = vpop.permute.xlu0 %652
    %654 = vrot.lane.b32.xlu0 %v495, 64
    %v655 = vpop.permute.xlu0 %654
    %656 = vrot.lane.b32.xlu0 %v500, 64
    %v657 = vpop.permute.xlu0 %656
    %658 = vrot.lane.b32.xlu0 %v505, 64
    %v659 = vpop.permute.xlu0 %658
    %660 = vrot.lane.b32.xlu0 %v510, 64
    %v661 = vpop.permute.xlu0 %660
    %662 = vrot.lane.b32.xlu0 %v515, 64
    %v663 = vpop.permute.xlu0 %662
    %664 = vrot.lane.b32.xlu0 %v520, 64
    %v665 = vpop.permute.xlu0 %664
    %666 = vrot.lane.b32.xlu0 %v525, 64
    %v667 = vpop.permute.xlu0 %666
    %668 = vrot.lane.b32.xlu0 %v530, 64
    %v669 = vpop.permute.xlu0 %668
    %670 = vrot.lane.b32.xlu0 %v535, 64
    %v671 = vpop.permute.xlu0 %670
    %672 = vrot.lane.b32.xlu0 %v540, 64
    %v673 = vpop.permute.xlu0 %672
    %674 = vrot.lane.b32.xlu0 %v545, 64
    %v675 = vpop.permute.xlu0 %674
    %692 = vst.msk [vmem:[%s7] sm:$0xff] %vm88, %v645
    %693 = vst.msk [vmem:[%s7 + $0x8] sm:$0xff] %vm88, %v647
    %694 = vst.msk [vmem:[%s7 + $0x10] sm:$0xff] %vm88, %v649
    %695 = vst.msk [vmem:[%s7 + $0x18] sm:$0xff] %vm88, %v651
    %696 = vst.msk [vmem:[%s7 + $0x20] sm:$0xff] %vm88, %v653
    %697 = vst.msk [vmem:[%s7 + $0x28] sm:$0xff] %vm88, %v655
    %698 = vst.msk [vmem:[%s7 + $0x30] sm:$0xff] %vm88, %v657
    %699 = vst.msk [vmem:[%s7 + $0x38] sm:$0xff] %vm88, %v659
    %700 = vst.msk [vmem:[%s7 + $0x40] sm:$0xff] %vm88, %v661
    %701 = vst.msk [vmem:[%s7 + $0x48] sm:$0xff] %vm88, %v663
    %702 = vst.msk [vmem:[%s7 + $0x50] sm:$0xff] %vm88, %v665
    %703 = vst.msk [vmem:[%s7 + $0x58] sm:$0xff] %vm88, %v667
    %704 = vst.msk [vmem:[%s7 + $0x60] sm:$0xff] %vm88, %v669
    %705 = vst.msk [vmem:[%s7 + $0x68] sm:$0xff] %vm88, %v671
    %706 = vst.msk [vmem:[%s7 + $0x70] sm:$0xff] %vm88, %v673
    %707 = vst.msk [vmem:[%s7 + $0x78] sm:$0xff] %vm88, %v675
    // Predicated region
    $region38: #{na_transformer_layer_forward.5} parent=1 // pred_check
      _
    $region39: #{na_transformer_layer_forward.5} parent=1 // pred_check_branch
      %709 = sbr.rel (0) target = $region41
    $region40: #{na_transformer_layer_forward.5} parent=1 // pred_region
      _
    $region41: #{na_transformer_layer_forward.5} parent=1 // pred_fallthru
      _
    // Predicated region
    $region42: #{na_transformer_layer_forward.5} parent=1 // pred_check
      _
    $region43: #{na_transformer_layer_forward.5} parent=1 // pred_check_branch
      %711 = sbr.rel (0) target = $region45
    $region44: #{na_transformer_layer_forward.5} parent=1 // pred_region
      _
    $region45: #{na_transformer_layer_forward.5} parent=1 // pred_fallthru
      _
    // Predicated region
    $region46: #{na_transformer_layer_forward.5} parent=1 // pred_check
      _
    $region47: #{na_transformer_layer_forward.5} parent=1 // pred_check_branch
      %713 = sbr.rel (0) target = $region49
    $region48: #{na_transformer_layer_forward.5} parent=1 // pred_region
      _
    $region49: #{na_transformer_layer_forward.5} parent=1 // pred_fallthru
      _
    // Predicated region
    $region50: #{na_transformer_layer_forward.5} parent=1 // pred_check
      _
    $region51: #{na_transformer_layer_forward.5} parent=1 // pred_check_branch
      %715 = sbr.rel (0) target = $region53
    $region52: #{na_transformer_layer_forward.5} parent=1 // pred_region
      _
    $region53: #{na_transformer_layer_forward.5} parent=1 // pred_fallthru
      _
    // Predicated region
    $region54: #{na_transformer_layer_forward.5} parent=1 // pred_check
      _
    $region55: #{na_transformer_layer_forward.5} parent=1 // pred_check_branch
      %717 = sbr.rel (0) target = $region57
    $region56: #{na_transformer_layer_forward.5} parent=1 // pred_region
      _
    $region57: #{na_transformer_layer_forward.5} parent=1 // pred_fallthru
      _
    // Predicated region
    $region58: #{na_transformer_layer_forward.5} parent=1 // pred_check
      _
    $region59: #{na_transformer_layer_forward.5} parent=1 // pred_check_branch
      %719 = sbr.rel (0) target = $region61
    $region60: #{na_transformer_layer_forward.5} parent=1 // pred_region
      _
    $region61: #{na_transformer_layer_forward.5} parent=1 // pred_fallthru
      _
    %720 = vsyncpa [#allocation3], 1
    %721 = vsyncpa [#allocation5], 1
    %722 = vsyncpa [#allocation8], 1

// kernel: na_transformer_layer_forward.7
$region0: #{na_transformer_layer_forward.7}
  #allocation0 [shape = 'u32[]', space=smem, size = 0x4, offset = 0x4, fixed_abs, tag = 'smem constant byte address 0x4 - core index']
  #allocation1 [shape = 'u32[144,128]{1,0:T(1,128)}', space=vmem, size = 0x12000, scoped, tag = 'internal scratch']
  %s0 = inlined_call_operand.vmem [shape: f32[128,32], index: 0, kind: input, shape index: {}]
  %s1 = inlined_call_operand.vmem [shape: f32[32,32], index: 1, kind: input, shape index: {}]
  %s2 = inlined_call_operand.vmem [shape: f32[1,32], index: 2, kind: input, shape index: {}]
  %s3 = inlined_call_operand.vmem [shape: f32[128,32], index: 3, kind: input, shape index: {}]
  %s4 = inlined_call_operand.vmem [shape: f32[128,32], index: 4, kind: output, shape index: {}]
  %s5 = sld [smem:[#allocation0]]
  $region26: #{na_transformer_layer_forward.7} parent=0
    _
  %s7 = ssub.s32 1, %s5
  %s8 = scalar_select 0, %s7, %s5
  // Predicated region
  $region2: #{na_transformer_layer_forward.7} parent=0 // pred_check
    _
  $region3: #{na_transformer_layer_forward.7} parent=0 // pred_check_branch
    %10 = sbr.rel (0) target = $region5
  $region4: #{na_transformer_layer_forward.7} parent=0 // pred_region
    _
  $region5: #{na_transformer_layer_forward.7} parent=0 // pred_fallthru
    _
  // Predicated region
  $region6: #{na_transformer_layer_forward.7} parent=0 // pred_check
    _
  $region7: #{na_transformer_layer_forward.7} parent=0 // pred_check_branch
    %12 = sbr.rel (0) target = $region9
  $region8: #{na_transformer_layer_forward.7} parent=0 // pred_region
    _
  $region9: #{na_transformer_layer_forward.7} parent=0 // pred_fallthru
    _
  // Predicated region
  $region10: #{na_transformer_layer_forward.7} parent=0 // pred_check
    _
  $region11: #{na_transformer_layer_forward.7} parent=0 // pred_check_branch
    %14 = sbr.rel (0) target = $region13
  $region12: #{na_transformer_layer_forward.7} parent=0 // pred_region
    _
  $region13: #{na_transformer_layer_forward.7} parent=0 // pred_fallthru
    _
  // Predicated region
  $region14: #{na_transformer_layer_forward.7} parent=0 // pred_check
    _
  $region15: #{na_transformer_layer_forward.7} parent=0 // pred_check_branch
    %16 = sbr.rel (0) target = $region17
  $region16: #{na_transformer_layer_forward.7} parent=0 // pred_region
    _
  $region17: #{na_transformer_layer_forward.7} parent=0 // pred_fallthru
    _
  %v17 = vld [vmem:[%s0] sm:$0xff]
  %v18 = vld [vmem:[%s0 + $0x8] sm:$0xff]
  %v19 = vld [vmem:[%s0 + $0x10] sm:$0xff]
  %v20 = vld [vmem:[%s0 + $0x18] sm:$0xff]
  %v21 = vld [vmem:[%s0 + $0x20] sm:$0xff]
  %v22 = vld [vmem:[%s0 + $0x28] sm:$0xff]
  %v23 = vld [vmem:[%s0 + $0x30] sm:$0xff]
  %v24 = vld [vmem:[%s0 + $0x38] sm:$0xff]
  %v25 = vld [vmem:[%s0 + $0x40] sm:$0xff]
  %v26 = vld [vmem:[%s0 + $0x48] sm:$0xff]
  %v27 = vld [vmem:[%s0 + $0x50] sm:$0xff]
  %v28 = vld [vmem:[%s0 + $0x58] sm:$0xff]
  %v29 = vld [vmem:[%s0 + $0x60] sm:$0xff]
  %v30 = vld [vmem:[%s0 + $0x68] sm:$0xff]
  %v31 = vld [vmem:[%s0 + $0x70] sm:$0xff]
  %v32 = vld [vmem:[%s0 + $0x78] sm:$0xff]
  %v33 = vld [vmem:[%s1] sm:$0xff]
  %v34 = vld [vmem:[%s1 + $0x8] sm:$0xff]
  %v35 = vld [vmem:[%s1 + $0x10] sm:$0xff]
  %v36 = vld [vmem:[%s1 + $0x18] sm:$0xff]
  %v37 = vld [vmem:[%s2] sm:$0x1]
  %v39 = vlaneseq
  %v40 = vshrl.u32 %v39, 7
  %v41 = vsub.s32 0, %v40
  %v42 = vrot.slane %v37, %v41
  %vm44 = vcmask 261120
  %v46 = vsel %vm44, %v17, 0
  %v49 = vsel %vm44, %v18, 0
  %v52 = vsel %vm44, %v19, 0
  %v55 = vsel %vm44, %v20, 0
  %v58 = vsel %vm44, %v21, 0
  %v61 = vsel %vm44, %v22, 0
  %v64 = vsel %vm44, %v23, 0
  %v67 = vsel %vm44, %v24, 0
  %v70 = vsel %vm44, %v25, 0
  %v73 = vsel %vm44, %v26, 0
  %v76 = vsel %vm44, %v27, 0
  %v79 = vsel %vm44, %v28, 0
  %v82 = vsel %vm44, %v29, 0
  %v85 = vsel %vm44, %v30, 0
  %v88 = vsel %vm44, %v31, 0
  %v91 = vsel %vm44, %v32, 0
  %93 = vmatprep.subr.mxu0 0.0
  %94 = vmatpush1.msra.mxu0 0.0
  %95 = vmatprep.subr.mxu0 0.0
  %96 = vmatpush1.msra.mxu0 0.0
  %97 = vmatprep.subr.mxu0 0.0
  %98 = vmatpush1.msra.mxu0 0.0
  %99 = vmatprep.subr.mxu0 0.0
  %100 = vmatpush1.msra.mxu0 0.0
  %101 = vmatprep.subr.mxu0 0.0
  %102 = vmatpush1.msra.mxu0 0.0
  %103 = vmatprep.subr.mxu0 0.0
  %104 = vmatpush1.msra.mxu0 0.0
  %105 = vmatprep.subr.mxu0 0.0
  %106 = vmatpush1.msra.mxu0 0.0
  %107 = vmatprep.subr.mxu0 0.0
  %108 = vmatpush1.msra.mxu0 0.0
  %109 = vmatprep.subr.mxu0 0.0
  %110 = vmatpush1.msra.mxu0 0.0
  %111 = vmatprep.subr.mxu0 0.0
  %112 = vmatpush1.msra.mxu0 0.0
  %113 = vmatprep.subr.mxu0 0.0
  %114 = vmatpush1.msra.mxu0 0.0
  %115 = vmatprep.subr.mxu0 0.0
  %116 = vmatpush1.msra.mxu0 0.0
  %117 = vmatprep.subr.mxu0 0.0
  %118 = vmatpush1.msra.mxu0 %v36
  %119 = vmatprep.subr.mxu0 0.0
  %120 = vmatpush1.msra.mxu0 %v35
  %121 = vmatprep.subr.mxu0 0.0
  %122 = vmatpush1.msra.mxu0 %v34
  %123 = vmatprep.subr.mxu0 0.0
  %124 = vmatpush1.msra.mxu0 %v33
  %125 = vmatprep.subr.mxu0 0.0
  %126 = vmatpush2.msra.mxu0 0.0
  %127 = vmatprep.subr.mxu0 0.0
  %128 = vmatpush2.msra.mxu0 0.0
  %129 = vmatprep.subr.mxu0 0.0
  %130 = vmatpush2.msra.mxu0 0.0
  %131 = vmatprep.subr.mxu0 0.0
  %132 = vmatpush2.msra.mxu0 0.0
  %133 = vmatprep.subr.mxu0 0.0
  %134 = vmatpush2.msra.mxu0 0.0
  %135 = vmatprep.subr.mxu0 0.0
  %136 = vmatpush2.msra.mxu0 0.0
  %137 = vmatprep.subr.mxu0 0.0
  %138 = vmatpush2.msra.mxu0 0.0
  %139 = vmatprep.subr.mxu0 0.0
  %140 = vmatpush2.msra.mxu0 0.0
  %141 = vmatprep.subr.mxu0 0.0
  %142 = vmatpush2.msra.mxu0 0.0
  %143 = vmatprep.subr.mxu0 0.0
  %144 = vmatpush2.msra.mxu0 0.0
  %145 = vmatprep.subr.mxu0 0.0
  %146 = vmatpush2.msra.mxu0 0.0
  %147 = vmatprep.subr.mxu0 0.0
  %148 = vmatpush2.msra.mxu0 0.0
  %149 = vmatprep.subr.mxu0 0.0
  %150 = vmatpush2.msra.mxu0 0.0
  %151 = vmatprep.subr.mxu0 0.0
  %152 = vmatpush2.msra.mxu0 0.0
  %153 = vmatprep.subr.mxu0 0.0
  %154 = vmatpush2.msra.mxu0 0.0
  %155 = vmatprep.subr.mxu0 0.0
  %156 = vmatpush2.msra.mxu0 0.0
  %157 = vmatprep.mubr.f32.mxu0 0.0
  %158 = vmatmul.mubr.f32.gmra.mxu0 %v46
  %v159 = vpop.f32.mrf.mxu0
  %v160 = vadd.f32 %v42, %v159
  %v161 = vpop.f32.mrf.mxu0
  %162 = vmatprep.mubr.f32.mxu0 0.0
  %163 = vmatmul.mubr.f32.gmra.mxu0 %v49
  %v164 = vpop.f32.mrf.mxu0
  %v165 = vadd.f32 %v42, %v164
  %v166 = vpop.f32.mrf.mxu0
  %167 = vmatprep.mubr.f32.mxu0 0.0
  %168 = vmatmul.mubr.f32.gmra.mxu0 %v52
  %v169 = vpop.f32.mrf.mxu0
  %v170 = vadd.f32 %v42, %v169
  %v171 = vpop.f32.mrf.mxu0
  %172 = vmatprep.mubr.f32.mxu0 0.0
  %173 = vmatmul.mubr.f32.gmra.mxu0 %v55
  %v174 = vpop.f32.mrf.mxu0
  %v175 = vadd.f32 %v42, %v174
  %v176 = vpop.f32.mrf.mxu0
  %177 = vmatprep.mubr.f32.mxu0 0.0
  %178 = vmatmul.mubr.f32.gmra.mxu0 %v58
  %v179 = vpop.f32.mrf.mxu0
  %v180 = vadd.f32 %v42, %v179
  %v181 = vpop.f32.mrf.mxu0
  %182 = vmatprep.mubr.f32.mxu0 0.0
  %183 = vmatmul.mubr.f32.gmra.mxu0 %v61
  %v184 = vpop.f32.mrf.mxu0
  %v185 = vadd.f32 %v42, %v184
  %v186 = vpop.f32.mrf.mxu0
  %187 = vmatprep.mubr.f32.mxu0 0.0
  %188 = vmatmul.mubr.f32.gmra.mxu0 %v64
  %v189 = vpop.f32.mrf.mxu0
  %v190 = vadd.f32 %v42, %v189
  %v191 = vpop.f32.mrf.mxu0
  %192 = vmatprep.mubr.f32.mxu0 0.0
  %193 = vmatmul.mubr.f32.gmra.mxu0 %v67
  %v194 = vpop.f32.mrf.mxu0
  %v195 = vadd.f32 %v42, %v194
  %v196 = vpop.f32.mrf.mxu0
  %197 = vmatprep.mubr.f32.mxu0 0.0
  %198 = vmatmul.mubr.f32.gmra.mxu0 %v70
  %v199 = vpop.f32.mrf.mxu0
  %v200 = vadd.f32 %v42, %v199
  %v201 = vpop.f32.mrf.mxu0
  %202 = vmatprep.mubr.f32.mxu0 0.0
  %203 = vmatmul.mubr.f32.gmra.mxu0 %v73
  %v204 = vpop.f32.mrf.mxu0
  %v205 = vadd.f32 %v42, %v204
  %v206 = vpop.f32.mrf.mxu0
  %207 = vmatprep.mubr.f32.mxu0 0.0
  %208 = vmatmul.mubr.f32.gmra.mxu0 %v76
  %v209 = vpop.f32.mrf.mxu0
  %v210 = vadd.f32 %v42, %v209
  %v211 = vpop.f32.mrf.mxu0
  %212 = vmatprep.mubr.f32.mxu0 0.0
  %213 = vmatmul.mubr.f32.gmra.mxu0 %v79
  %v214 = vpop.f32.mrf.mxu0
  %v215 = vadd.f32 %v42, %v214
  %v216 = vpop.f32.mrf.mxu0
  %217 = vmatprep.mubr.f32.mxu0 0.0
  %218 = vmatmul.mubr.f32.gmra.mxu0 %v82
  %v219 = vpop.f32.mrf.mxu0
  %v220 = vadd.f32 %v42, %v219
  %v221 = vpop.f32.mrf.mxu0
  %222 = vmatprep.mubr.f32.mxu0 0.0
  %223 = vmatmul.mubr.f32.gmra.mxu0 %v85
  %v224 = vpop.f32.mrf.mxu0
  %v225 = vadd.f32 %v42, %v224
  %v226 = vpop.f32.mrf.mxu0
  %227 = vmatprep.mubr.f32.mxu0 0.0
  %228 = vmatmul.mubr.f32.gmra.mxu0 %v88
  %v229 = vpop.f32.mrf.mxu0
  %v230 = vadd.f32 %v42, %v229
  %v231 = vpop.f32.mrf.mxu0
  %232 = vmatprep.mubr.f32.mxu0 0.0
  %233 = vmatmul.mubr.f32.gmra.mxu0 %v91
  %v234 = vpop.f32.mrf.mxu0
  %v235 = vadd.f32 %v42, %v234
  %v236 = vpop.f32.mrf.mxu0
  %237 = vdwg.mxu0
  %v238 = vld [vmem:[%s3] sm:$0xff]
  %v239 = vld [vmem:[%s3 + $0x8] sm:$0xff]
  %v240 = vld [vmem:[%s3 + $0x10] sm:$0xff]
  %v241 = vld [vmem:[%s3 + $0x18] sm:$0xff]
  %v242 = vld [vmem:[%s3 + $0x20] sm:$0xff]
  %v243 = vld [vmem:[%s3 + $0x28] sm:$0xff]
  %v244 = vld [vmem:[%s3 + $0x30] sm:$0xff]
  %v245 = vld [vmem:[%s3 + $0x38] sm:$0xff]
  %v246 = vld [vmem:[%s3 + $0x40] sm:$0xff]
  %v247 = vld [vmem:[%s3 + $0x48] sm:$0xff]
  %v248 = vld [vmem:[%s3 + $0x50] sm:$0xff]
  %v249 = vld [vmem:[%s3 + $0x58] sm:$0xff]
  %v250 = vld [vmem:[%s3 + $0x60] sm:$0xff]
  %v251 = vld [vmem:[%s3 + $0x68] sm:$0xff]
  %v252 = vld [vmem:[%s3 + $0x70] sm:$0xff]
  %v253 = vld [vmem:[%s3 + $0x78] sm:$0xff]
  %v254 = vadd.f32 %v160, %v238
  %v255 = vadd.f32 %v165, %v239
  %v256 = vadd.f32 %v170, %v240
  %v257 = vadd.f32 %v175, %v241
  %v258 = vadd.f32 %v180, %v242
  %v259 = vadd.f32 %v185, %v243
  %v260 = vadd.f32 %v190, %v244
  %v261 = vadd.f32 %v195, %v245
  %v262 = vadd.f32 %v200, %v246
  %v263 = vadd.f32 %v205, %v247
  %v264 = vadd.f32 %v210, %v248
  %v265 = vadd.f32 %v215, %v249
  %v266 = vadd.f32 %v220, %v250
  %v267 = vadd.f32 %v225, %v251
  %v268 = vadd.f32 %v230, %v252
  %v269 = vadd.f32 %v235, %v253
  %270 = vst.msk [vmem:[%s4] sm:$0xff] %vm44, %v254
  %271 = vst.msk [vmem:[%s4 + $0x8] sm:$0xff] %vm44, %v255
  %272 = vst.msk [vmem:[%s4 + $0x10] sm:$0xff] %vm44, %v256
  %273 = vst.msk [vmem:[%s4 + $0x18] sm:$0xff] %vm44, %v257
  %274 = vst.msk [vmem:[%s4 + $0x20] sm:$0xff] %vm44, %v258
  %275 = vst.msk [vmem:[%s4 + $0x28] sm:$0xff] %vm44, %v259
  %276 = vst.msk [vmem:[%s4 + $0x30] sm:$0xff] %vm44, %v260
  %277 = vst.msk [vmem:[%s4 + $0x38] sm:$0xff] %vm44, %v261
  %278 = vst.msk [vmem:[%s4 + $0x40] sm:$0xff] %vm44, %v262
  %279 = vst.msk [vmem:[%s4 + $0x48] sm:$0xff] %vm44, %v263
  %280 = vst.msk [vmem:[%s4 + $0x50] sm:$0xff] %vm44, %v264
  %281 = vst.msk [vmem:[%s4 + $0x58] sm:$0xff] %vm44, %v265
  %282 = vst.msk [vmem:[%s4 + $0x60] sm:$0xff] %vm44, %v266
  %283 = vst.msk [vmem:[%s4 + $0x68] sm:$0xff] %vm44, %v267
  %284 = vst.msk [vmem:[%s4 + $0x70] sm:$0xff] %vm44, %v268
  %285 = vst.msk [vmem:[%s4 + $0x78] sm:$0xff] %vm44, %v269
  // Predicated region
  $region18: #{na_transformer_layer_forward.7} parent=0 // pred_check
    _
  $region19: #{na_transformer_layer_forward.7} parent=0 // pred_check_branch
    %287 = sbr.rel (0) target = $region21
  $region20: #{na_transformer_layer_forward.7} parent=0 // pred_region
    _
  $region21: #{na_transformer_layer_forward.7} parent=0 // pred_fallthru
    _
  // Predicated region
  $region22: #{na_transformer_layer_forward.7} parent=0 // pred_check
    _
  $region23: #{na_transformer_layer_forward.7} parent=0 // pred_check_branch
    %289 = sbr.rel (0) target = $region25
  $region24: #{na_transformer_layer_forward.7} parent=0 // pred_region
    _
  $region25: #{na_transformer_layer_forward.7} parent=0 // pred_fallthru
    _

// kernel: na_transformer_layer_forward.6
$region0: #{na_transformer_layer_forward.6}
  #allocation0 [shape = 'u32[]', space=smem, size = 0x4, offset = 0x4, fixed_abs, tag = 'smem constant byte address 0x4 - core index']
  #allocation1 [shape = 'u32[144,128]{1,0:T(1,128)}', space=vmem, size = 0x12000, scoped, tag = 'internal scratch']
  #allocation2 [shape = 's32[1]{0}', space=sflag, size = 0x4, scoped, tag = 'scoped memory for na_transformer_layer_forward.6']
  #allocation3 [shape = 's32[1]{0:T(128)S(6)}', space=smem, size = 0x200, scoped, tag = 'prefetched SMEM operand 0']
  %s0 = inlined_call_operand.<no memory space> [shape: s32[1], index: 0, kind: input, shape index: {}]
  %s1 = inlined_call_operand.vmem [shape: f32[2,64,32], index: 1, kind: input, shape index: {}]
  %s2 = inlined_call_operand.vmem [shape: f32[2,64,32], index: 2, kind: input, shape index: {}]
  %s3 = inlined_call_operand.vmem [shape: f32[2,64,32], index: 3, kind: input, shape index: {}]
  %s4 = inlined_call_operand.vmem [shape: f32[2,64,64], index: 4, kind: input, shape index: {}]
  %s5 = inlined_call_operand.vmem [shape: f32[2,64,32], index: 5, kind: output, shape index: {}]
  %s6 = sld [smem:[#allocation0]]
  $region49: #{na_transformer_layer_forward.6} parent=0
    _
  %s8 = ssub.s32 1, %s6
  %s9 = scalar_select 0, %s8, %s6
  %10 = sst [smem:[#allocation3]] %s0
  loop: start=0, step=1, limit=4
  $region2: #{na_transformer_layer_forward.6} parent=0 // loop_pre_header
    _
  $region3: #{na_transformer_layer_forward.6} parent=0 // loop_header
    %s12 = sphi 0, %s16
    %p13 = scmp.ge.s32.totalorder %s12, 4
    %s19 = sphi 0, %s31
    %s20 = sphi 0, %s27
    %s21 = sphi 0, %s19
    %s22 = sphi 0, %s20
    %s23 = sphi 0, %s21
    %s24 = sphi 0, %s22
    %s36 = sphi 0, %s38
    %s39 = sphi 0, %s36
    %s40 = sphi 0, %s39
    %s56 = sphi 0, %s40
    %s62 = sphi 0, %s64
    %s65 = sphi 0, %s62
    %s66 = sphi 0, %s65
    %s82 = sphi 0, %s66
    %s88 = sphi 0, %s90
    %s91 = sphi 0, %s88
    %s92 = sphi 0, %s91
    %s108 = sphi 0, %s92
    %s114 = sphi 0, %s116
    %s117 = sphi 0, %s114
    %s118 = sphi 0, %s117
    %s134 = sphi 0, %s118
    %s142 = sphi 0, %s144
    %s145 = sphi 0, %s142
    %s146 = sphi 0, %s145
    %s162 = sphi 0, %s146
  $region4: #{na_transformer_layer_forward.6} parent=0 // loop_header_branch
    %15 = sbr.rel (%p13) target = $region8
  $region5: #{na_transformer_layer_forward.6} parent=0 // loop_body
    %s17 = ssub.s32 %s12, 1
    %s18 = ssub.s32 %s12, 2
    %s25 = sadd.s32 1, %s20
    %p26 = scmp.ge.s32.totalorder %s25, 1
    %s27 = scalar_select %p26, 0, %s25
    %s28 = sadd.s32 1, %s19
    %s29 = scalar_select %p26, %s28, %s19
    %p30 = scmp.ge.s32.totalorder %s29, 2
    %s31 = scalar_select %p30, 0, %s29
    %s32 = ssub.s32 %s19, %s31
    %s33 = ssub.s32 %s20, %s27
    %s34 = sor.u32 %s32, %s33
    %p35 = scmp.eq.s32.totalorder %s34, 0
    %s37 = sadd.s32 %s36, 1
    %s38 = scalar_select %p35, %s36, %s37
    %p41 = pneg %p35
    %p42 = scmp.eq.s32.totalorder %s12, 1
    %p43 = por %p41, %p42
    %p44 = scmp.ne.s32.totalorder %s36, %s39
    %p45 = scmp.eq.s32.totalorder %s12, 0
    %p46 = por %p44, %p45
    %p47 = scmp.ne.s32.totalorder %s36, %s39
    %p48 = scmp.eq.s32.totalorder %s17, 1
    %p49 = por %p47, %p48
    %p50 = scmp.ne.s32.totalorder %s39, %s40
    %p51 = scmp.eq.s32.totalorder %s17, 0
    %p52 = por %p50, %p51
    %p53 = scmp.ne.s32.totalorder %s39, %s40
    %p54 = scmp.eq.s32.totalorder %s18, 1
    %p55 = por %p53, %p54
    %p57 = scmp.ne.s32.totalorder %s40, %s56
    %p58 = scmp.eq.s32.totalorder %s18, 0
    %p59 = por %p57, %p58
    %s60 = ssub.s32 %s19, %s31
    %p61 = scmp.eq.s32.totalorder %s60, 0
    %s63 = sadd.s32 %s62, 1
    %s64 = scalar_select %p61, %s62, %s63
    %p67 = pneg %p61
    %p68 = scmp.eq.s32.totalorder %s12, 1
    %p69 = por %p67, %p68
    %p70 = scmp.ne.s32.totalorder %s62, %s65
    %p71 = scmp.eq.s32.totalorder %s12, 0
    %p72 = por %p70, %p71
    %p73 = scmp.ne.s32.totalorder %s62, %s65
    %p74 = scmp.eq.s32.totalorder %s17, 1
    %p75 = por %p73, %p74
    %p76 = scmp.ne.s32.totalorder %s65, %s66
    %p77 = scmp.eq.s32.totalorder %s17, 0
    %p78 = por %p76, %p77
    %p79 = scmp.ne.s32.totalorder %s65, %s66
    %p80 = scmp.eq.s32.totalorder %s18, 1
    %p81 = por %p79, %p80
    %p83 = scmp.ne.s32.totalorder %s66, %s82
    %p84 = scmp.eq.s32.totalorder %s18, 0
    %p85 = por %p83, %p84
    %s86 = ssub.s32 %s19, %s31
    %p87 = scmp.eq.s32.totalorder %s86, 0
    %s89 = sadd.s32 %s88, 1
    %s90 = scalar_select %p87, %s88, %s89
    %p93 = pneg %p87
    %p94 = scmp.eq.s32.totalorder %s12, 1
    %p95 = por %p93, %p94
    %p96 = scmp.ne.s32.totalorder %s88, %s91
    %p97 = scmp.eq.s32.totalorder %s12, 0
    %p98 = por %p96, %p97
    %p99 = scmp.ne.s32.totalorder %s88, %s91
    %p100 = scmp.eq.s32.totalorder %s17, 1
    %p101 = por %p99, %p100
    %p102 = scmp.ne.s32.totalorder %s91, %s92
    %p103 = scmp.eq.s32.totalorder %s17, 0
    %p104 = por %p102, %p103
    %p105 = scmp.ne.s32.totalorder %s91, %s92
    %p106 = scmp.eq.s32.totalorder %s18, 1
    %p107 = por %p105, %p106
    %p109 = scmp.ne.s32.totalorder %s92, %s108
    %p110 = scmp.eq.s32.totalorder %s18, 0
    %p111 = por %p109, %p110
    %s112 = ssub.s32 %s20, %s27
    %p113 = scmp.eq.s32.totalorder %s112, 0
    %s115 = sadd.s32 %s114, 1
    %s116 = scalar_select %p113, %s114, %s115
    %p119 = pneg %p113
    %p120 = scmp.eq.s32.totalorder %s12, 1
    %p121 = por %p119, %p120
    %p122 = scmp.ne.s32.totalorder %s114, %s117
    %p123 = scmp.eq.s32.totalorder %s12, 0
    %p124 = por %p122, %p123
    %p125 = scmp.ne.s32.totalorder %s114, %s117
    %p126 = scmp.eq.s32.totalorder %s17, 1
    %p127 = por %p125, %p126
    %p128 = scmp.ne.s32.totalorder %s117, %s118
    %p129 = scmp.eq.s32.totalorder %s17, 0
    %p130 = por %p128, %p129
    %p131 = scmp.ne.s32.totalorder %s117, %s118
    %p132 = scmp.eq.s32.totalorder %s18, 1
    %p133 = por %p131, %p132
    %p135 = scmp.ne.s32.totalorder %s118, %s134
    %p136 = scmp.eq.s32.totalorder %s18, 0
    %p137 = por %p135, %p136
    %s138 = ssub.s32 %s19, %s31
    %s139 = ssub.s32 %s20, %s27
    %s140 = sor.u32 %s138, %s139
    %p141 = scmp.eq.s32.totalorder %s140, 0
    %s143 = sadd.s32 %s142, 1
    %s144 = scalar_select %p141, %s142, %s143
    %p147 = pneg %p141
    %p148 = scmp.eq.s32.totalorder %s12, 1
    %p149 = por %p147, %p148
    %p150 = scmp.ne.s32.totalorder %s142, %s145
    %p151 = scmp.eq.s32.totalorder %s12, 0
    %p152 = por %p150, %p151
    %p153 = scmp.ne.s32.totalorder %s142, %s145
    %p154 = scmp.eq.s32.totalorder %s17, 1
    %p155 = por %p153, %p154
    %p156 = scmp.ne.s32.totalorder %s145, %s146
    %p157 = scmp.eq.s32.totalorder %s17, 0
    %p158 = por %p156, %p157
    %p159 = scmp.ne.s32.totalorder %s145, %s146
    %p160 = scmp.eq.s32.totalorder %s18, 1
    %p161 = por %p159, %p160
    %p163 = scmp.ne.s32.totalorder %s146, %s162
    %p164 = scmp.eq.s32.totalorder %s18, 0
    %p165 = por %p163, %p164
    %p166 = scmp.le.s32.totalorder 1, %s12
    %p167 = scmp.lt.s32.totalorder %s12, 3
    %p168 = pnand %p166, %p167
    %p169 = pneg %p168
    // Predicated region
    $region9: #{na_transformer_layer_forward.6} parent=5 // pred_check
      _
    $region10: #{na_transformer_layer_forward.6} parent=5 // pred_check_branch
      %171 = sbr.rel (%p168) target = $region12
    $region11: #{na_transformer_layer_forward.6} parent=5 // pred_region
      %s172 = ssub.s32 %s12, 1
      // Predicated region
      $region13: #{na_transformer_layer_forward.6} parent=11 // pred_check
        %p173 = pneg %p130
      $region14: #{na_transformer_layer_forward.6} parent=11 // pred_check_branch
        %175 = sbr.rel (%p173) target = $region16
      $region15: #{na_transformer_layer_forward.6} parent=11 // pred_region
        %s176 = smul.u32 8, %s22
        %p177 = scmp.lt.s32.totalorder %s176, 7
        %s178 = scalar_select %p177, %s176, 7
        %s179 = smul.addr %s178, 8
        %s180 = scalar_lea.vmem %s4, %s179
        %s181 = smul.u32 8, %s22
      $region16: #{na_transformer_layer_forward.6} parent=11 // pred_fallthru
        _
    $region12: #{na_transformer_layer_forward.6} parent=5 // pred_fallthru
      _
    %p182 = scmp.lt.s32.totalorder %s12, 2
    // Predicated region
    $region17: #{na_transformer_layer_forward.6} parent=5 // pred_check
      %p183 = pneg %p182
    $region18: #{na_transformer_layer_forward.6} parent=5 // pred_check_branch
      %185 = sbr.rel (%p183) target = $region20
    $region19: #{na_transformer_layer_forward.6} parent=5 // pred_region
      // Predicated region
      $region21: #{na_transformer_layer_forward.6} parent=19 // pred_check
        %p186 = pneg %p46
      $region22: #{na_transformer_layer_forward.6} parent=19 // pred_check_branch
        %188 = sbr.rel (%p186) target = $region24
      $region23: #{na_transformer_layer_forward.6} parent=19 // pred_region
        %s189 = smul.u32 8, %s20
        %p190 = scmp.lt.s32.totalorder %s19, 1
        %s191 = scalar_select %p190, %s19, 1
        %p192 = scmp.lt.s32.totalorder %s189, 7
        %s193 = scalar_select %p192, %s189, 7
        %s194 = smul.addr %s191, 8
        %s195 = sadd.s32 %s193, %s194
        %s196 = smul.addr %s195, 8
        %s197 = scalar_lea.vmem %s1, %s196
        %s198 = smul.u32 8, %s20
      $region24: #{na_transformer_layer_forward.6} parent=19 // pred_fallthru
        _
      // Predicated region
      $region25: #{na_transformer_layer_forward.6} parent=19 // pred_check
        %p199 = pneg %p72
      $region26: #{na_transformer_layer_forward.6} parent=19 // pred_check_branch
        %201 = sbr.rel (%p199) target = $region28
      $region27: #{na_transformer_layer_forward.6} parent=19 // pred_region
        %p202 = scmp.lt.s32.totalorder %s19, 1
        %s203 = scalar_select %p202, %s19, 1
        %s204 = smul.addr %s203, 8
        %s205 = smul.addr %s204, 8
        %s206 = scalar_lea.vmem %s2, %s205
      $region28: #{na_transformer_layer_forward.6} parent=19 // pred_fallthru
        _
      // Predicated region
      $region29: #{na_transformer_layer_forward.6} parent=19 // pred_check
        %p207 = pneg %p98
      $region30: #{na_transformer_layer_forward.6} parent=19 // pred_check_branch
        %209 = sbr.rel (%p207) target = $region32
      $region31: #{na_transformer_layer_forward.6} parent=19 // pred_region
        %p210 = scmp.lt.s32.totalorder %s19, 1
        %s211 = scalar_select %p210, %s19, 1
        %s212 = smul.addr %s211, 8
        %s213 = smul.addr %s212, 8
        %s214 = scalar_lea.vmem %s3, %s213
      $region32: #{na_transformer_layer_forward.6} parent=19 // pred_fallthru
        _
    $region20: #{na_transformer_layer_forward.6} parent=5 // pred_fallthru
      _
    %p215 = scmp.le.s32.totalorder 1, %s12
    %p216 = scmp.lt.s32.totalorder %s12, 3
    %p217 = pnand %p215, %p216
    %p218 = pneg %p217
    // Predicated region
    $region33: #{na_transformer_layer_forward.6} parent=5 // pred_check
      _
    $region34: #{na_transformer_layer_forward.6} parent=5 // pred_check_branch
      %220 = sbr.rel (%p217) target = $region36
    $region35: #{na_transformer_layer_forward.6} parent=5 // pred_region
      %s221 = ssub.s32 %s12, 1
      %s222 = smul.u32 8, %s22
      %p223 = scmp.lt.s32.totalorder %s21, 1
      %s224 = scalar_select %p223, %s21, 1
      %p225 = scmp.lt.s32.totalorder %s222, 7
      %s226 = scalar_select %p225, %s222, 7
      %s227 = smul.addr %s224, 8
      %s228 = sadd.s32 %s226, %s227
      %s229 = smul.addr %s228, 8
      %s230 = scalar_lea.vmem %s1, %s229
      %p231 = pneg %p52
      %p232 = pneg %p49
      %p233 = scmp.lt.s32.totalorder %s21, 1
      %s234 = scalar_select %p233, %s21, 1
      %s235 = smul.addr %s234, 8
      %s236 = smul.addr %s235, 8
      %s237 = scalar_lea.vmem %s2, %s236
      %p238 = pneg %p78
      %p239 = pneg %p75
      %p240 = scmp.lt.s32.totalorder %s21, 1
      %s241 = scalar_select %p240, %s21, 1
      %s242 = smul.addr %s241, 8
      %s243 = smul.addr %s242, 8
      %s244 = scalar_lea.vmem %s3, %s243
      %p245 = pneg %p104
      %p246 = pneg %p101
      %s247 = smul.u32 8, %s22
      %p248 = scmp.lt.s32.totalorder %s247, 7
      %s249 = scalar_select %p248, %s247, 7
      %s250 = smul.addr %s249, 8
      %s251 = scalar_lea.vmem %s4, %s250
      %p252 = pneg %p130
      %p253 = pneg %p127
      %p254 = pneg %p158
      %p255 = pneg %p155
      %s256 = smul.u32 8, %s22
      %p257 = scmp.lt.s32.totalorder %s21, 1
      %s258 = scalar_select %p257, %s21, 1
      %p259 = scmp.lt.s32.totalorder %s256, 7
      %s260 = scalar_select %p259, %s256, 7
      %s261 = smul.addr %s258, 8
      %s262 = sadd.s32 %s260, %s261
      %s263 = smul.addr %s262, 8
      %s264 = scalar_lea.vmem %s5, %s263
      %s265 = smul.u32 8, %s22
      %p266 = scmp.lt.s32.totalorder %s21, 1
      %s267 = scalar_select %p266, %s21, 1
      %p268 = scmp.lt.s32.totalorder %s265, 7
      %s269 = scalar_select %p268, %s265, 7
      %s270 = smul.addr %s267, 8
      %s271 = sadd.s32 %s269, %s270
      %s272 = smul.addr %s271, 8
      %s273 = scalar_lea.vmem %s1, %s272
      %s274 = smul.u32 8, %s22
      %p275 = scmp.lt.s32.totalorder %s21, 1
      %s276 = scalar_select %p275, %s21, 1
      %s277 = smul.addr %s276, 8
      %s278 = smul.addr %s277, 8
      %s279 = scalar_lea.vmem %s2, %s278
      %p280 = scmp.lt.s32.totalorder %s21, 1
      %s281 = scalar_select %p280, %s21, 1
      %s282 = smul.addr %s281, 8
      %s283 = smul.addr %s282, 8
      %s284 = scalar_lea.vmem %s3, %s283
      %s285 = smul.u32 8, %s22
      %p286 = scmp.lt.s32.totalorder %s285, 7
      %s287 = scalar_select %p286, %s285, 7
      %s288 = smul.addr %s287, 8
      %s289 = scalar_lea.vmem %s4, %s288
      %s290 = smul.u32 8, %s22
      %s291 = smul.u32 8, %s22
      %p292 = scmp.lt.s32.totalorder %s21, 1
      %s293 = scalar_select %p292, %s21, 1
      %p294 = scmp.lt.s32.totalorder %s291, 7
      %s295 = scalar_select %p294, %s291, 7
      %s296 = smul.addr %s293, 8
      %s297 = sadd.s32 %s295, %s296
      %s298 = smul.addr %s297, 8
      %s299 = scalar_lea.vmem %s5, %s298
      %s300 = smul.u32 8, %s22
      %s301 = sld [smem:[#allocation3 + %s22]]
      %s302 = scalar_lea.vmem %s279, %s301
      %v303 = vld [vmem:[%s302] sm:$0xff]
      %v304 = vld [vmem:[%s302 + $0x8] sm:$0xff]
      %v305 = vld [vmem:[%s302 + $0x10] sm:$0xff]
      %v306 = vld [vmem:[%s302 + $0x18] sm:$0xff]
      %v307 = vld [vmem:[%s302 + $0x20] sm:$0xff]
      %v308 = vld [vmem:[%s302 + $0x28] sm:$0xff]
      %v309 = vld [vmem:[%s302 + $0x30] sm:$0xff]
      %v310 = vld [vmem:[%s302 + $0x38] sm:$0xff]
      %s311 = scalar_lea.vmem %s284, %s301
      %v312 = vld [vmem:[%s311] sm:$0xff]
      %v313 = vld [vmem:[%s311 + $0x8] sm:$0xff]
      %v314 = vld [vmem:[%s311 + $0x10] sm:$0xff]
      %v315 = vld [vmem:[%s311 + $0x18] sm:$0xff]
      %v316 = vld [vmem:[%s311 + $0x20] sm:$0xff]
      %v317 = vld [vmem:[%s311 + $0x28] sm:$0xff]
      %v318 = vld [vmem:[%s311 + $0x30] sm:$0xff]
      %v319 = vld [vmem:[%s311 + $0x38] sm:$0xff]
      %v320 = vld [vmem:[%s273] sm:$0xff]
      %v321 = vld [vmem:[%s273 + $0x8] sm:$0xff]
      %v322 = vld [vmem:[%s273 + $0x10] sm:$0xff]
      %v323 = vld [vmem:[%s273 + $0x18] sm:$0xff]
      %v324 = vld [vmem:[%s273 + $0x20] sm:$0xff]
      %v325 = vld [vmem:[%s273 + $0x28] sm:$0xff]
      %v326 = vld [vmem:[%s273 + $0x30] sm:$0xff]
      %v327 = vld [vmem:[%s273 + $0x38] sm:$0xff]
      %vm328 = vcmask 130048
      %v330 = vsel %vm328, %v320, 0
      %v333 = vsel %vm328, %v321, 0
      %v336 = vsel %vm328, %v322, 0
      %v339 = vsel %vm328, %v323, 0
      %v342 = vsel %vm328, %v324, 0
      %v345 = vsel %vm328, %v325, 0
      %v348 = vsel %vm328, %v326, 0
      %v351 = vsel %vm328, %v327, 0
      %v354 = vsel %vm328, %v303, 0
      %v357 = vsel %vm328, %v304, 0
      %v360 = vsel %vm328, %v305, 0
      %v363 = vsel %vm328, %v306, 0
      %v366 = vsel %vm328, %v307, 0
      %v369 = vsel %vm328, %v308, 0
      %v372 = vsel %vm328, %v309, 0
      %v375 = vsel %vm328, %v310, 0
      %377 = vmatprep.subr.mxu0 0.0
      %378 = vmatpush1.xpose.msra.mxu0 0.0
      %379 = vmatprep.subr.mxu0 0.0
      %380 = vmatpush1.xpose.msra.mxu0 0.0
      %381 = vmatprep.subr.mxu0 0.0
      %382 = vmatpush1.xpose.msra.mxu0 0.0
      %383 = vmatprep.subr.mxu0 0.0
      %384 = vmatpush1.xpose.msra.mxu0 0.0
      %385 = vmatprep.subr.mxu0 0.0
      %386 = vmatpush1.xpose.msra.mxu0 0.0
      %387 = vmatprep.subr.mxu0 0.0
      %388 = vmatpush1.xpose.msra.mxu0 0.0
      %389 = vmatprep.subr.mxu0 0.0
      %390 = vmatpush1.xpose.msra.mxu0 0.0
      %391 = vmatprep.subr.mxu0 0.0
      %392 = vmatpush1.xpose.msra.mxu0 0.0
      %393 = vmatprep.subr.mxu0 0.0
      %394 = vmatpush1.xpose.msra.mxu0 %v375
      %395 = vmatprep.subr.mxu0 0.0
      %396 = vmatpush1.xpose.msra.mxu0 %v372
      %397 = vmatprep.subr.mxu0 0.0
      %398 = vmatpush1.xpose.msra.mxu0 %v369
      %399 = vmatprep.subr.mxu0 0.0
      %400 = vmatpush1.xpose.msra.mxu0 %v366
      %401 = vmatprep.subr.mxu0 0.0
      %402 = vmatpush1.xpose.msra.mxu0 %v363
      %403 = vmatprep.subr.mxu0 0.0
      %404 = vmatpush1.xpose.msra.mxu0 %v360
      %405 = vmatprep.subr.mxu0 0.0
      %406 = vmatpush1.xpose.msra.mxu0 %v357
      %407 = vmatprep.subr.mxu0 0.0
      %408 = vmatpush1.xpose.msra.mxu0 %v354
      %409 = vmatprep.subr.mxu0 0.0
      %410 = vmatpush2.xpose.msra.mxu0 0.0
      %411 = vmatprep.subr.mxu0 0.0
      %412 = vmatpush2.xpose.msra.mxu0 0.0
      %413 = vmatprep.subr.mxu0 0.0
      %414 = vmatpush2.xpose.msra.mxu0 0.0
      %415 = vmatprep.subr.mxu0 0.0
      %416 = vmatpush2.xpose.msra.mxu0 0.0
      %417 = vmatprep.subr.mxu0 0.0
      %418 = vmatpush2.xpose.msra.mxu0 0.0
      %419 = vmatprep.subr.mxu0 0.0
      %420 = vmatpush2.xpose.msra.mxu0 0.0
      %421 = vmatprep.subr.mxu0 0.0
      %422 = vmatpush2.xpose.msra.mxu0 0.0
      %423 = vmatprep.subr.mxu0 0.0
      %424 = vmatpush2.xpose.msra.mxu0 0.0
      %425 = vmatprep.subr.mxu0 0.0
      %426 = vmatpush2.xpose.msra.mxu0 0.0
      %427 = vmatprep.subr.mxu0 0.0
      %428 = vmatpush2.xpose.msra.mxu0 0.0
      %429 = vmatprep.subr.mxu0 0.0
      %430 = vmatpush2.xpose.msra.mxu0 0.0
      %431 = vmatprep.subr.mxu0 0.0
      %432 = vmatpush2.xpose.msra.mxu0 0.0
      %433 = vmatprep.subr.mxu0 0.0
      %434 = vmatpush2.xpose.msra.mxu0 0.0
      %435 = vmatprep.subr.mxu0 0.0
      %436 = vmatpush2.xpose.msra.mxu0 0.0
      %437 = vmatprep.subr.mxu0 0.0
      %438 = vmatpush2.xpose.msra.mxu0 0.0
      %439 = vmatprep.subr.mxu0 0.0
      %440 = vmatpush2.xpose.msra.mxu0 0.0
      %441 = vmatprep.mubr.f32.mxu0 0.0
      %442 = vmatmul.mubr.f32.gmra.mxu0 %v330
      %v443 = vpop.f32.mrf.mxu0
      %v444 = vadd.f32 0.0, %v443
      %v445 = vpop.f32.mrf.mxu0
      %446 = vmatprep.mubr.f32.mxu0 0.0
      %447 = vmatmul.mubr.f32.gmra.mxu0 %v333
      %v448 = vpop.f32.mrf.mxu0
      %v449 = vadd.f32 0.0, %v448
      %v450 = vpop.f32.mrf.mxu0
      %451 = vmatprep.mubr.f32.mxu0 0.0
      %452 = vmatmul.mubr.f32.gmra.mxu0 %v336
      %v453 = vpop.f32.mrf.mxu0
      %v454 = vadd.f32 0.0, %v453
      %v455 = vpop.f32.mrf.mxu0
      %456 = vmatprep.mubr.f32.mxu0 0.0
      %457 = vmatmul.mubr.f32.gmra.mxu0 %v339
      %v458 = vpop.f32.mrf.mxu0
      %v459 = vadd.f32 0.0, %v458
      %v460 = vpop.f32.mrf.mxu0
      %461 = vmatprep.mubr.f32.mxu0 0.0
      %462 = vmatmul.mubr.f32.gmra.mxu0 %v342
      %v463 = vpop.f32.mrf.mxu0
      %v464 = vadd.f32 0.0, %v463
      %v465 = vpop.f32.mrf.mxu0
      %466 = vmatprep.mubr.f32.mxu0 0.0
      %467 = vmatmul.mubr.f32.gmra.mxu0 %v345
      %v468 = vpop.f32.mrf.mxu0
      %v469 = vadd.f32 0.0, %v468
      %v470 = vpop.f32.mrf.mxu0
      %471 = vmatprep.mubr.f32.mxu0 0.0
      %472 = vmatmul.mubr.f32.gmra.mxu0 %v348
      %v473 = vpop.f32.mrf.mxu0
      %v474 = vadd.f32 0.0, %v473
      %v475 = vpop.f32.mrf.mxu0
      %476 = vmatprep.mubr.f32.mxu0 0.0
      %477 = vmatmul.mubr.f32.gmra.mxu0 %v351
      %v478 = vpop.f32.mrf.mxu0
      %v479 = vadd.f32 0.0, %v478
      %v480 = vpop.f32.mrf.mxu0
      %481 = vdwg.mxu0
      %v482 = vmul.f32 %v444, 0.25
      %v483 = vmul.f32 %v449, 0.25
      %v484 = vmul.f32 %v454, 0.25
      %v485 = vmul.f32 %v459, 0.25
      %v486 = vmul.f32 %v464, 0.25
      %v487 = vmul.f32 %v469, 0.25
      %v488 = vmul.f32 %v474, 0.25
      %v489 = vmul.f32 %v479, 0.25
      %v490 = vld [vmem:[%s289] sm:$0xff]
      %v491 = vld [vmem:[%s289 + $0x8] sm:$0xff]
      %v492 = vld [vmem:[%s289 + $0x10] sm:$0xff]
      %v493 = vld [vmem:[%s289 + $0x18] sm:$0xff]
      %v494 = vld [vmem:[%s289 + $0x20] sm:$0xff]
      %v495 = vld [vmem:[%s289 + $0x28] sm:$0xff]
      %v496 = vld [vmem:[%s289 + $0x30] sm:$0xff]
      %v497 = vld [vmem:[%s289 + $0x38] sm:$0xff]
      %v498 = vadd.f32 %v482, %v490
      %v499 = vadd.f32 %v483, %v491
      %v500 = vadd.f32 %v484, %v492
      %v501 = vadd.f32 %v485, %v493
      %v502 = vadd.f32 %v486, %v494
      %v503 = vadd.f32 %v487, %v495
      %v504 = vadd.f32 %v488, %v496
      %v505 = vadd.f32 %v489, %v497
      %vm506 = vcmask 523264
      %v507 = vsel %vm506, %v498, -inf
      %508 = vmax.xlane.f32.xlu0 %v507
      %v509 = vpop.xlane.xlu0 %508
      %v510 = vsel %vm506, %v499, -inf
      %511 = vmax.xlane.f32.xlu0 %v510
      %v512 = vpop.xlane.xlu0 %511
      %v513 = vsel %vm506, %v500, -inf
      %514 = vmax.xlane.f32.xlu0 %v513
      %v515 = vpop.xlane.xlu0 %514
      %v516 = vsel %vm506, %v501, -inf
      %517 = vmax.xlane.f32.xlu0 %v516
      %v518 = vpop.xlane.xlu0 %517
      %v519 = vsel %vm506, %v502, -inf
      %520 = vmax.xlane.f32.xlu0 %v519
      %v521 = vpop.xlane.xlu0 %520
      %v522 = vsel %vm506, %v503, -inf
      %523 = vmax.xlane.f32.xlu0 %v522
      %v524 = vpop.xlane.xlu0 %523
      %v525 = vsel %vm506, %v504, -inf
      %526 = vmax.xlane.f32.xlu0 %v525
      %v527 = vpop.xlane.xlu0 %526
      %v528 = vsel %vm506, %v505, -inf
      %529 = vmax.xlane.f32.xlu0 %v528
      %v530 = vpop.xlane.xlu0 %529
      %v531 = vsub.f32 %v498, %v509
      %v532 = vsub.f32 %v499, %v512
      %v533 = vsub.f32 %v500, %v515
      %v534 = vsub.f32 %v501, %v518
      %v535 = vsub.f32 %v502, %v521
      %v536 = vsub.f32 %v503, %v524
      %v537 = vsub.f32 %v504, %v527
      %v538 = vsub.f32 %v505, %v530
      %v539 = vmul.f32 %v531, 1.442695
      %v540 = vpow.pop %v539
      %v541 = vmul.f32 %v532, 1.442695
      %v542 = vpow.pop %v541
      %v543 = vmul.f32 %v533, 1.442695
      %v544 = vpow.pop %v543
      %v545 = vmul.f32 %v534, 1.442695
      %v546 = vpow.pop %v545
      %v547 = vmul.f32 %v535, 1.442695
      %v548 = vpow.pop %v547
      %v549 = vmul.f32 %v536, 1.442695
      %v550 = vpow.pop %v549
      %v551 = vmul.f32 %v537, 1.442695
      %v552 = vpow.pop %v551
      %v553 = vmul.f32 %v538, 1.442695
      %v554 = vpow.pop %v553
      %v555 = vsel %vm506, %v540, 0.0
      %556 = vadd.xlane.f32.xlu0 %v555
      %v557 = vpop.xlane.xlu0 %556
      %v558 = vsel %vm506, %v542, 0.0
      %559 = vadd.xlane.f32.xlu0 %v558
      %v560 = vpop.xlane.xlu0 %559
      %v561 = vsel %vm506, %v544, 0.0
      %562 = vadd.xlane.f32.xlu0 %v561
      %v563 = vpop.xlane.xlu0 %562
      %v564 = vsel %vm506, %v546, 0.0
      %565 = vadd.xlane.f32.xlu0 %v564
      %v566 = vpop.xlane.xlu0 %565
      %v567 = vsel %vm506, %v548, 0.0
      %568 = vadd.xlane.f32.xlu0 %v567
      %v569 = vpop.xlane.xlu0 %568
      %v570 = vsel %vm506, %v550, 0.0
      %571 = vadd.xlane.f32.xlu0 %v570
      %v572 = vpop.xlane.xlu0 %571
      %v573 = vsel %vm506, %v552, 0.0
      %574 = vadd.xlane.f32.xlu0 %v573
      %v575 = vpop.xlane.xlu0 %574
      %v576 = vsel %vm506, %v554, 0.0
      %577 = vadd.xlane.f32.xlu0 %v576
      %v578 = vpop.xlane.xlu0 %577
      %v579 = vrcp.pop %v557
      %v580 = vrcp.pop %v560
      %v581 = vrcp.pop %v563
      %v582 = vrcp.pop %v566
      %v583 = vrcp.pop %v569
      %v584 = vrcp.pop %v572
      %v585 = vrcp.pop %v575
      %v586 = vrcp.pop %v578
      %v588 = vsel %vm506, %v540, 0
      %v591 = vsel %vm506, %v542, 0
      %v594 = vsel %vm506, %v544, 0
      %v597 = vsel %vm506, %v546, 0
      %v600 = vsel %vm506, %v548, 0
      %v603 = vsel %vm506, %v550, 0
      %v606 = vsel %vm506, %v552, 0
      %v609 = vsel %vm506, %v554, 0
      %611 = vmatprep.subr.mxu0 0.0
      %612 = vmatpush1.msra.mxu0 0.0
      %613 = vmatprep.subr.mxu0 0.0
      %614 = vmatpush1.msra.mxu0 0.0
      %615 = vmatprep.subr.mxu0 0.0
      %616 = vmatpush1.msra.mxu0 0.0
      %617 = vmatprep.subr.mxu0 0.0
      %618 = vmatpush1.msra.mxu0 0.0
      %619 = vmatprep.subr.mxu0 0.0
      %620 = vmatpush1.msra.mxu0 0.0
      %621 = vmatprep.subr.mxu0 0.0
      %622 = vmatpush1.msra.mxu0 0.0
      %623 = vmatprep.subr.mxu0 0.0
      %624 = vmatpush1.msra.mxu0 0.0
      %625 = vmatprep.subr.mxu0 0.0
      %626 = vmatpush1.msra.mxu0 0.0
      %627 = vmatprep.subr.mxu0 0.0
      %628 = vmatpush1.msra.mxu0 %v319
      %629 = vmatprep.subr.mxu0 0.0
      %630 = vmatpush1.msra.mxu0 %v318
      %631 = vmatprep.subr.mxu0 0.0
      %632 = vmatpush1.msra.mxu0 %v317
      %633 = vmatprep.subr.mxu0 0.0
      %634 = vmatpush1.msra.mxu0 %v316
      %635 = vmatprep.subr.mxu0 0.0
      %636 = vmatpush1.msra.mxu0 %v315
      %637 = vmatprep.subr.mxu0 0.0
      %638 = vmatpush1.msra.mxu0 %v314
      %639 = vmatprep.subr.mxu0 0.0
      %640 = vmatpush1.msra.mxu0 %v313
      %641 = vmatprep.subr.mxu0 0.0
      %642 = vmatpush1.msra.mxu0 %v312
      %643 = vmatprep.subr.mxu0 0.0
      %644 = vmatpush2.msra.mxu0 0.0
      %645 = vmatprep.subr.mxu0 0.0
      %646 = vmatpush2.msra.mxu0 0.0
      %647 = vmatprep.subr.mxu0 0.0
      %648 = vmatpush2.msra.mxu0 0.0
      %649 = vmatprep.subr.mxu0 0.0
      %650 = vmatpush2.msra.mxu0 0.0
      %651 = vmatprep.subr.mxu0 0.0
      %652 = vmatpush2.msra.mxu0 0.0
      %653 = vmatprep.subr.mxu0 0.0
      %654 = vmatpush2.msra.mxu0 0.0
      %655 = vmatprep.subr.mxu0 0.0
      %656 = vmatpush2.msra.mxu0 0.0
      %657 = vmatprep.subr.mxu0 0.0
      %658 = vmatpush2.msra.mxu0 0.0
      %659 = vmatprep.subr.mxu0 0.0
      %660 = vmatpush2.msra.mxu0 0.0
      %661 = vmatprep.subr.mxu0 0.0
      %662 = vmatpush2.msra.mxu0 0.0
      %663 = vmatprep.subr.mxu0 0.0
      %664 = vmatpush2.msra.mxu0 0.0
      %665 = vmatprep.subr.mxu0 0.0
      %666 = vmatpush2.msra.mxu0 0.0
      %667 = vmatprep.subr.mxu0 0.0
      %668 = vmatpush2.msra.mxu0 0.0
      %669 = vmatprep.subr.mxu0 0.0
      %670 = vmatpush2.msra.mxu0 0.0
      %671 = vmatprep.subr.mxu0 0.0
      %672 = vmatpush2.msra.mxu0 0.0
      %673 = vmatprep.subr.mxu0 0.0
      %674 = vmatpush2.msra.mxu0 0.0
      %675 = vmatprep.mubr.f32.mxu0 0.0
      %676 = vmatmul.mubr.f32.gmra.mxu0 %v588
      %v677 = vpop.f32.mrf.mxu0
      %v678 = vadd.f32 0.0, %v677
      %v679 = vpop.f32.mrf.mxu0
      %680 = vmatprep.mubr.f32.mxu0 0.0
      %681 = vmatmul.mubr.f32.gmra.mxu0 %v591
      %v682 = vpop.f32.mrf.mxu0
      %v683 = vadd.f32 0.0, %v682
      %v684 = vpop.f32.mrf.mxu0
      %685 = vmatprep.mubr.f32.mxu0 0.0
      %686 = vmatmul.mubr.f32.gmra.mxu0 %v594
      %v687 = vpop.f32.mrf.mxu0
      %v688 = vadd.f32 0.0, %v687
      %v689 = vpop.f32.mrf.mxu0
      %690 = vmatprep.mubr.f32.mxu0 0.0
      %691 = vmatmul.mubr.f32.gmra.mxu0 %v597
      %v692 = vpop.f32.mrf.mxu0
      %v693 = vadd.f32 0.0, %v692
      %v694 = vpop.f32.mrf.mxu0
      %695 = vmatprep.mubr.f32.mxu0 0.0
      %696 = vmatmul.mubr.f32.gmra.mxu0 %v600
      %v697 = vpop.f32.mrf.mxu0
      %v698 = vadd.f32 0.0, %v697
      %v699 = vpop.f32.mrf.mxu0
      %700 = vmatprep.mubr.f32.mxu0 0.0
      %701 = vmatmul.mubr.f32.gmra.mxu0 %v603
      %v702 = vpop.f32.mrf.mxu0
      %v703 = vadd.f32 0.0, %v702
      %v704 = vpop.f32.mrf.mxu0
      %705 = vmatprep.mubr.f32.mxu0 0.0
      %706 = vmatmul.mubr.f32.gmra.mxu0 %v606
      %v707 = vpop.f32.mrf.mxu0
      %v708 = vadd.f32 0.0, %v707
      %v709 = vpop.f32.mrf.mxu0
      %710 = vmatprep.mubr.f32.mxu0 0.0
      %711 = vmatmul.mubr.f32.gmra.mxu0 %v609
      %v712 = vpop.f32.mrf.mxu0
      %v713 = vadd.f32 0.0, %v712
      %v714 = vpop.f32.mrf.mxu0
      %715 = vdwg.mxu0
      %v716 = vmul.f32 %v678, %v579
      %v717 = vmul.f32 %v683, %v580
      %v718 = vmul.f32 %v688, %v581
      %v719 = vmul.f32 %v693, %v582
      %v720 = vmul.f32 %v698, %v583
      %v721 = vmul.f32 %v703, %v584
      %v722 = vmul.f32 %v708, %v585
      %v723 = vmul.f32 %v713, %v586
      %724 = vrot.lane.b32.xlu0 %v320, 112
      %v725 = vpop.permute.xlu0 %724
      %726 = vrot.lane.b32.xlu0 %v321, 112
      %v727 = vpop.permute.xlu0 %726
      %728 = vrot.lane.b32.xlu0 %v322, 112
      %v729 = vpop.permute.xlu0 %728
      %730 = vrot.lane.b32.xlu0 %v323, 112
      %v731 = vpop.permute.xlu0 %730
      %732 = vrot.lane.b32.xlu0 %v324, 112
      %v733 = vpop.permute.xlu0 %732
      %734 = vrot.lane.b32.xlu0 %v325, 112
      %v735 = vpop.permute.xlu0 %734
      %736 = vrot.lane.b32.xlu0 %v326, 112
      %v737 = vpop.permute.xlu0 %736
      %738 = vrot.lane.b32.xlu0 %v327, 112
      %v739 = vpop.permute.xlu0 %738
      %740 = vrot.lane.b32.xlu0 %v303, 112
      %v741 = vpop.permute.xlu0 %740
      %742 = vrot.lane.b32.xlu0 %v304, 112
      %v743 = vpop.permute.xlu0 %742
      %744 = vrot.lane.b32.xlu0 %v305, 112
      %v745 = vpop.permute.xlu0 %744
      %746 = vrot.lane.b32.xlu0 %v306, 112
      %v747 = vpop.permute.xlu0 %746
      %748 = vrot.lane.b32.xlu0 %v307, 112
      %v749 = vpop.permute.xlu0 %748
      %750 = vrot.lane.b32.xlu0 %v308, 112
      %v751 = vpop.permute.xlu0 %750
      %752 = vrot.lane.b32.xlu0 %v309, 112
      %v753 = vpop.permute.xlu0 %752
      %754 = vrot.lane.b32.xlu0 %v310, 112
      %v755 = vpop.permute.xlu0 %754
      %v756 = vsel %vm328, %v725, 0
      %v758 = vsel %vm328, %v727, 0
      %v760 = vsel %vm328, %v729, 0
      %v762 = vsel %vm328, %v731, 0
      %v764 = vsel %vm328, %v733, 0
      %v766 = vsel %vm328, %v735, 0
      %v768 = vsel %vm328, %v737, 0
      %v770 = vsel %vm328, %v739, 0
      %v772 = vsel %vm328, %v741, 0
      %v774 = vsel %vm328, %v743, 0
      %v776 = vsel %vm328, %v745, 0
      %v778 = vsel %vm328, %v747, 0
      %v780 = vsel %vm328, %v749, 0
      %v782 = vsel %vm328, %v751, 0
      %v784 = vsel %vm328, %v753, 0
      %v786 = vsel %vm328, %v755, 0
      %788 = vmatprep.subr.mxu0 0.0
      %789 = vmatpush1.xpose.msra.mxu0 0.0
      %790 = vmatprep.subr.mxu0 0.0
      %791 = vmatpush1.xpose.msra.mxu0 0.0
      %792 = vmatprep.subr.mxu0 0.0
      %793 = vmatpush1.xpose.msra.mxu0 0.0
      %794 = vmatprep.subr.mxu0 0.0
      %795 = vmatpush1.xpose.msra.mxu0 0.0
      %796 = vmatprep.subr.mxu0 0.0
      %797 = vmatpush1.xpose.msra.mxu0 0.0
      %798 = vmatprep.subr.mxu0 0.0
      %799 = vmatpush1.xpose.msra.mxu0 0.0
      %800 = vmatprep.subr.mxu0 0.0
      %801 = vmatpush1.xpose.msra.mxu0 0.0
      %802 = vmatprep.subr.mxu0 0.0
      %803 = vmatpush1.xpose.msra.mxu0 0.0
      %804 = vmatprep.subr.mxu0 0.0
      %805 = vmatpush1.xpose.msra.mxu0 %v786
      %806 = vmatprep.subr.mxu0 0.0
      %807 = vmatpush1.xpose.msra.mxu0 %v784
      %808 = vmatprep.subr.mxu0 0.0
      %809 = vmatpush1.xpose.msra.mxu0 %v782
      %810 = vmatprep.subr.mxu0 0.0
      %811 = vmatpush1.xpose.msra.mxu0 %v780
      %812 = vmatprep.subr.mxu0 0.0
      %813 = vmatpush1.xpose.msra.mxu0 %v778
      %814 = vmatprep.subr.mxu0 0.0
      %815 = vmatpush1.xpose.msra.mxu0 %v776
      %816 = vmatprep.subr.mxu0 0.0
      %817 = vmatpush1.xpose.msra.mxu0 %v774
      %818 = vmatprep.subr.mxu0 0.0
      %819 = vmatpush1.xpose.msra.mxu0 %v772
      %820 = vmatprep.subr.mxu0 0.0
      %821 = vmatpush2.xpose.msra.mxu0 0.0
      %822 = vmatprep.subr.mxu0 0.0
      %823 = vmatpush2.xpose.msra.mxu0 0.0
      %824 = vmatprep.subr.mxu0 0.0
      %825 = vmatpush2.xpose.msra.mxu0 0.0
      %826 = vmatprep.subr.mxu0 0.0
      %827 = vmatpush2.xpose.msra.mxu0 0.0
      %828 = vmatprep.subr.mxu0 0.0
      %829 = vmatpush2.xpose.msra.mxu0 0.0
      %830 = vmatprep.subr.mxu0 0.0
      %831 = vmatpush2.xpose.msra.mxu0 0.0
      %832 = vmatprep.subr.mxu0 0.0
      %833 = vmatpush2.xpose.msra.mxu0 0.0
      %834 = vmatprep.subr.mxu0 0.0
      %835 = vmatpush2.xpose.msra.mxu0 0.0
      %836 = vmatprep.subr.mxu0 0.0
      %837 = vmatpush2.xpose.msra.mxu0 0.0
      %838 = vmatprep.subr.mxu0 0.0
      %839 = vmatpush2.xpose.msra.mxu0 0.0
      %840 = vmatprep.subr.mxu0 0.0
      %841 = vmatpush2.xpose.msra.mxu0 0.0
      %842 = vmatprep.subr.mxu0 0.0
      %843 = vmatpush2.xpose.msra.mxu0 0.0
      %844 = vmatprep.subr.mxu0 0.0
      %845 = vmatpush2.xpose.msra.mxu0 0.0
      %846 = vmatprep.subr.mxu0 0.0
      %847 = vmatpush2.xpose.msra.mxu0 0.0
      %848 = vmatprep.subr.mxu0 0.0
      %849 = vmatpush2.xpose.msra.mxu0 0.0
      %850 = vmatprep.subr.mxu0 0.0
      %851 = vmatpush2.xpose.msra.mxu0 0.0
      %852 = vmatprep.mubr.f32.mxu0 0.0
      %853 = vmatmul.mubr.f32.gmra.mxu0 %v756
      %v854 = vpop.f32.mrf.mxu0
      %v855 = vadd.f32 0.0, %v854
      %v856 = vpop.f32.mrf.mxu0
      %857 = vmatprep.mubr.f32.mxu0 0.0
      %858 = vmatmul.mubr.f32.gmra.mxu0 %v758
      %v859 = vpop.f32.mrf.mxu0
      %v860 = vadd.f32 0.0, %v859
      %v861 = vpop.f32.mrf.mxu0
      %862 = vmatprep.mubr.f32.mxu0 0.0
      %863 = vmatmul.mubr.f32.gmra.mxu0 %v760
      %v864 = vpop.f32.mrf.mxu0
      %v865 = vadd.f32 0.0, %v864
      %v866 = vpop.f32.mrf.mxu0
      %867 = vmatprep.mubr.f32.mxu0 0.0
      %868 = vmatmul.mubr.f32.gmra.mxu0 %v762
      %v869 = vpop.f32.mrf.mxu0
      %v870 = vadd.f32 0.0, %v869
      %v871 = vpop.f32.mrf.mxu0
      %872 = vmatprep.mubr.f32.mxu0 0.0
      %873 = vmatmul.mubr.f32.gmra.mxu0 %v764
      %v874 = vpop.f32.mrf.mxu0
      %v875 = vadd.f32 0.0, %v874
      %v876 = vpop.f32.mrf.mxu0
      %877 = vmatprep.mubr.f32.mxu0 0.0
      %878 = vmatmul.mubr.f32.gmra.mxu0 %v766
      %v879 = vpop.f32.mrf.mxu0
      %v880 = vadd.f32 0.0, %v879
      %v881 = vpop.f32.mrf.mxu0
      %882 = vmatprep.mubr.f32.mxu0 0.0
      %883 = vmatmul.mubr.f32.gmra.mxu0 %v768
      %v884 = vpop.f32.mrf.mxu0
      %v885 = vadd.f32 0.0, %v884
      %v886 = vpop.f32.mrf.mxu0
      %887 = vmatprep.mubr.f32.mxu0 0.0
      %888 = vmatmul.mubr.f32.gmra.mxu0 %v770
      %v889 = vpop.f32.mrf.mxu0
      %v890 = vadd.f32 0.0, %v889
      %v891 = vpop.f32.mrf.mxu0
      %892 = vdwg.mxu0
      %v893 = vmul.f32 %v855, 0.25
      %v894 = vmul.f32 %v860, 0.25
      %v895 = vmul.f32 %v865, 0.25
      %v896 = vmul.f32 %v870, 0.25
      %v897 = vmul.f32 %v875, 0.25
      %v898 = vmul.f32 %v880, 0.25
      %v899 = vmul.f32 %v885, 0.25
      %v900 = vmul.f32 %v890, 0.25
      %s901 = scalar_lea.vmem %s289, 64
      %v902 = vld [vmem:[%s901] sm:$0xff]
      %v903 = vld [vmem:[%s901 + $0x8] sm:$0xff]
      %v904 = vld [vmem:[%s901 + $0x10] sm:$0xff]
      %v905 = vld [vmem:[%s901 + $0x18] sm:$0xff]
      %v906 = vld [vmem:[%s901 + $0x20] sm:$0xff]
      %v907 = vld [vmem:[%s901 + $0x28] sm:$0xff]
      %v908 = vld [vmem:[%s901 + $0x30] sm:$0xff]
      %v909 = vld [vmem:[%s901 + $0x38] sm:$0xff]
      %v910 = vadd.f32 %v893, %v902
      %v911 = vadd.f32 %v894, %v903
      %v912 = vadd.f32 %v895, %v904
      %v913 = vadd.f32 %v896, %v905
      %v914 = vadd.f32 %v897, %v906
      %v915 = vadd.f32 %v898, %v907
      %v916 = vadd.f32 %v899, %v908
      %v917 = vadd.f32 %v900, %v909
      %v918 = vsel %vm506, %v910, -inf
      %919 = vmax.xlane.f32.xlu0 %v918
      %v920 = vpop.xlane.xlu0 %919
      %v921 = vsel %vm506, %v911, -inf
      %922 = vmax.xlane.f32.xlu0 %v921
      %v923 = vpop.xlane.xlu0 %922
      %v924 = vsel %vm506, %v912, -inf
      %925 = vmax.xlane.f32.xlu0 %v924
      %v926 = vpop.xlane.xlu0 %925
      %v927 = vsel %vm506, %v913, -inf
      %928 = vmax.xlane.f32.xlu0 %v927
      %v929 = vpop.xlane.xlu0 %928
      %v930 = vsel %vm506, %v914, -inf
      %931 = vmax.xlane.f32.xlu0 %v930
      %v932 = vpop.xlane.xlu0 %931
      %v933 = vsel %vm506, %v915, -inf
      %934 = vmax.xlane.f32.xlu0 %v933
      %v935 = vpop.xlane.xlu0 %934
      %v936 = vsel %vm506, %v916, -inf
      %937 = vmax.xlane.f32.xlu0 %v936
      %v938 = vpop.xlane.xlu0 %937
      %v939 = vsel %vm506, %v917, -inf
      %940 = vmax.xlane.f32.xlu0 %v939
      %v941 = vpop.xlane.xlu0 %940
      %v942 = vsub.f32 %v910, %v920
      %v943 = vsub.f32 %v911, %v923
      %v944 = vsub.f32 %v912, %v926
      %v945 = vsub.f32 %v913, %v929
      %v946 = vsub.f32 %v914, %v932
      %v947 = vsub.f32 %v915, %v935
      %v948 = vsub.f32 %v916, %v938
      %v949 = vsub.f32 %v917, %v941
      %v950 = vmul.f32 %v942, 1.442695
      %v951 = vpow.pop %v950
      %v952 = vmul.f32 %v943, 1.442695
      %v953 = vpow.pop %v952
      %v954 = vmul.f32 %v944, 1.442695
      %v955 = vpow.pop %v954
      %v956 = vmul.f32 %v945, 1.442695
      %v957 = vpow.pop %v956
      %v958 = vmul.f32 %v946, 1.442695
      %v959 = vpow.pop %v958
      %v960 = vmul.f32 %v947, 1.442695
      %v961 = vpow.pop %v960
      %v962 = vmul.f32 %v948, 1.442695
      %v963 = vpow.pop %v962
      %v964 = vmul.f32 %v949, 1.442695
      %v965 = vpow.pop %v964
      %v966 = vsel %vm506, %v951, 0.0
      %967 = vadd.xlane.f32.xlu0 %v966
      %v968 = vpop.xlane.xlu0 %967
      %v969 = vsel %vm506, %v953, 0.0
      %970 = vadd.xlane.f32.xlu0 %v969
      %v971 = vpop.xlane.xlu0 %970
      %v972 = vsel %vm506, %v955, 0.0
      %973 = vadd.xlane.f32.xlu0 %v972
      %v974 = vpop.xlane.xlu0 %973
      %v975 = vsel %vm506, %v957, 0.0
      %976 = vadd.xlane.f32.xlu0 %v975
      %v977 = vpop.xlane.xlu0 %976
      %v978 = vsel %vm506, %v959, 0.0
      %979 = vadd.xlane.f32.xlu0 %v978
      %v980 = vpop.xlane.xlu0 %979
      %v981 = vsel %vm506, %v961, 0.0
      %982 = vadd.xlane.f32.xlu0 %v981
      %v983 = vpop.xlane.xlu0 %982
      %v984 = vsel %vm506, %v963, 0.0
      %985 = vadd.xlane.f32.xlu0 %v984
      %v986 = vpop.xlane.xlu0 %985
      %v987 = vsel %vm506, %v965, 0.0
      %988 = vadd.xlane.f32.xlu0 %v987
      %v989 = vpop.xlane.xlu0 %988
      %v990 = vrcp.pop %v968
      %v991 = vrcp.pop %v971
      %v992 = vrcp.pop %v974
      %v993 = vrcp.pop %v977
      %v994 = vrcp.pop %v980
      %v995 = vrcp.pop %v983
      %v996 = vrcp.pop %v986
      %v997 = vrcp.pop %v989
      %1006 = vrot.lane.b32.xlu0 %v312, 112
      %v1007 = vpop.permute.xlu0 %1006
      %1008 = vrot.lane.b32.xlu0 %v313, 112
      %v1009 = vpop.permute.xlu0 %1008
      %1010 = vrot.lane.b32.xlu0 %v314, 112
      %v1011 = vpop.permute.xlu0 %1010
      %1012 = vrot.lane.b32.xlu0 %v315, 112
      %v1013 = vpop.permute.xlu0 %1012
      %1014 = vrot.lane.b32.xlu0 %v316, 112
      %v1015 = vpop.permute.xlu0 %1014
      %1016 = vrot.lane.b32.xlu0 %v317, 112
      %v1017 = vpop.permute.xlu0 %1016
      %1018 = vrot.lane.b32.xlu0 %v318, 112
      %v1019 = vpop.permute.xlu0 %1018
      %1020 = vrot.lane.b32.xlu0 %v319, 112
      %v1021 = vpop.permute.xlu0 %1020
      %v1031 = vsel %vm506, %v951, 0
      %v1034 = vsel %vm506, %v953, 0
      %v1037 = vsel %vm506, %v955, 0
      %v1040 = vsel %vm506, %v957, 0
      %v1043 = vsel %vm506, %v959, 0
      %v1046 = vsel %vm506, %v961, 0
      %v1049 = vsel %vm506, %v963, 0
      %v1052 = vsel %vm506, %v965, 0
      %1054 = vmatprep.subr.mxu0 0.0
      %1055 = vmatpush1.msra.mxu0 0.0
      %1056 = vmatprep.subr.mxu0 0.0
      %1057 = vmatpush1.msra.mxu0 0.0
      %1058 = vmatprep.subr.mxu0 0.0
      %1059 = vmatpush1.msra.mxu0 0.0
      %1060 = vmatprep.subr.mxu0 0.0
      %1061 = vmatpush1.msra.mxu0 0.0
      %1062 = vmatprep.subr.mxu0 0.0
      %1063 = vmatpush1.msra.mxu0 0.0
      %1064 = vmatprep.subr.mxu0 0.0
      %1065 = vmatpush1.msra.mxu0 0.0
      %1066 = vmatprep.subr.mxu0 0.0
      %1067 = vmatpush1.msra.mxu0 0.0
      %1068 = vmatprep.subr.mxu0 0.0
      %1069 = vmatpush1.msra.mxu0 0.0
      %1070 = vmatprep.subr.mxu0 0.0
      %1071 = vmatpush1.msra.mxu0 %v1021
      %1072 = vmatprep.subr.mxu0 0.0
      %1073 = vmatpush1.msra.mxu0 %v1019
      %1074 = vmatprep.subr.mxu0 0.0
      %1075 = vmatpush1.msra.mxu0 %v1017
      %1076 = vmatprep.subr.mxu0 0.0
      %1077 = vmatpush1.msra.mxu0 %v1015
      %1078 = vmatprep.subr.mxu0 0.0
      %1079 = vmatpush1.msra.mxu0 %v1013
      %1080 = vmatprep.subr.mxu0 0.0
      %1081 = vmatpush1.msra.mxu0 %v1011
      %1082 = vmatprep.subr.mxu0 0.0
      %1083 = vmatpush1.msra.mxu0 %v1009
      %1084 = vmatprep.subr.mxu0 0.0
      %1085 = vmatpush1.msra.mxu0 %v1007
      %1086 = vmatprep.subr.mxu0 0.0
      %1087 = vmatpush2.msra.mxu0 0.0
      %1088 = vmatprep.subr.mxu0 0.0
      %1089 = vmatpush2.msra.mxu0 0.0
      %1090 = vmatprep.subr.mxu0 0.0
      %1091 = vmatpush2.msra.mxu0 0.0
      %1092 = vmatprep.subr.mxu0 0.0
      %1093 = vmatpush2.msra.mxu0 0.0
      %1094 = vmatprep.subr.mxu0 0.0
      %1095 = vmatpush2.msra.mxu0 0.0
      %1096 = vmatprep.subr.mxu0 0.0
      %1097 = vmatpush2.msra.mxu0 0.0
      %1098 = vmatprep.subr.mxu0 0.0
      %1099 = vmatpush2.msra.mxu0 0.0
      %1100 = vmatprep.subr.mxu0 0.0
      %1101 = vmatpush2.msra.mxu0 0.0
      %1102 = vmatprep.subr.mxu0 0.0
      %1103 = vmatpush2.msra.mxu0 0.0
      %1104 = vmatprep.subr.mxu0 0.0
      %1105 = vmatpush2.msra.mxu0 0.0
      %1106 = vmatprep.subr.mxu0 0.0
      %1107 = vmatpush2.msra.mxu0 0.0
      %1108 = vmatprep.subr.mxu0 0.0
      %1109 = vmatpush2.msra.mxu0 0.0
      %1110 = vmatprep.subr.mxu0 0.0
      %1111 = vmatpush2.msra.mxu0 0.0
      %1112 = vmatprep.subr.mxu0 0.0
      %1113 = vmatpush2.msra.mxu0 0.0
      %1114 = vmatprep.subr.mxu0 0.0
      %1115 = vmatpush2.msra.mxu0 0.0
      %1116 = vmatprep.subr.mxu0 0.0
      %1117 = vmatpush2.msra.mxu0 0.0
      %1118 = vmatprep.mubr.f32.mxu0 0.0
      %1119 = vmatmul.mubr.f32.gmra.mxu0 %v1031
      %v1120 = vpop.f32.mrf.mxu0
      %v1121 = vadd.f32 0.0, %v1120
      %v1122 = vpop.f32.mrf.mxu0
      %1123 = vmatprep.mubr.f32.mxu0 0.0
      %1124 = vmatmul.mubr.f32.gmra.mxu0 %v1034
      %v1125 = vpop.f32.mrf.mxu0
      %v1126 = vadd.f32 0.0, %v1125
      %v1127 = vpop.f32.mrf.mxu0
      %1128 = vmatprep.mubr.f32.mxu0 0.0
      %1129 = vmatmul.mubr.f32.gmra.mxu0 %v1037
      %v1130 = vpop.f32.mrf.mxu0
      %v1131 = vadd.f32 0.0, %v1130
      %v1132 = vpop.f32.mrf.mxu0
      %1133 = vmatprep.mubr.f32.mxu0 0.0
      %1134 = vmatmul.mubr.f32.gmra.mxu0 %v1040
      %v1135 = vpop.f32.mrf.mxu0
      %v1136 = vadd.f32 0.0, %v1135
      %v1137 = vpop.f32.mrf.mxu0
      %1138 = vmatprep.mubr.f32.mxu0 0.0
      %1139 = vmatmul.mubr.f32.gmra.mxu0 %v1043
      %v1140 = vpop.f32.mrf.mxu0
      %v1141 = vadd.f32 0.0, %v1140
      %v1142 = vpop.f32.mrf.mxu0
      %1143 = vmatprep.mubr.f32.mxu0 0.0
      %1144 = vmatmul.mubr.f32.gmra.mxu0 %v1046
      %v1145 = vpop.f32.mrf.mxu0
      %v1146 = vadd.f32 0.0, %v1145
      %v1147 = vpop.f32.mrf.mxu0
      %1148 = vmatprep.mubr.f32.mxu0 0.0
      %1149 = vmatmul.mubr.f32.gmra.mxu0 %v1049
      %v1150 = vpop.f32.mrf.mxu0
      %v1151 = vadd.f32 0.0, %v1150
      %v1152 = vpop.f32.mrf.mxu0
      %1153 = vmatprep.mubr.f32.mxu0 0.0
      %1154 = vmatmul.mubr.f32.gmra.mxu0 %v1052
      %v1155 = vpop.f32.mrf.mxu0
      %v1156 = vadd.f32 0.0, %v1155
      %v1157 = vpop.f32.mrf.mxu0
      %1158 = vdwg.mxu0
      %v1159 = vmul.f32 %v1121, %v990
      %v1160 = vmul.f32 %v1126, %v991
      %v1161 = vmul.f32 %v1131, %v992
      %v1162 = vmul.f32 %v1136, %v993
      %v1163 = vmul.f32 %v1141, %v994
      %v1164 = vmul.f32 %v1146, %v995
      %v1165 = vmul.f32 %v1151, %v996
      %v1166 = vmul.f32 %v1156, %v997
      %1175 = vrot.lane.b32.xlu0 %v1159, 16
      %v1176 = vpop.permute.xlu0 %1175
      %1177 = vrot.lane.b32.xlu0 %v1160, 16
      %v1178 = vpop.permute.xlu0 %1177
      %1179 = vrot.lane.b32.xlu0 %v1161, 16
      %v1180 = vpop.permute.xlu0 %1179
      %1181 = vrot.lane.b32.xlu0 %v1162, 16
      %v1182 = vpop.permute.xlu0 %1181
      %1183 = vrot.lane.b32.xlu0 %v1163, 16
      %v1184 = vpop.permute.xlu0 %1183
      %1185 = vrot.lane.b32.xlu0 %v1164, 16
      %v1186 = vpop.permute.xlu0 %1185
      %1187 = vrot.lane.b32.xlu0 %v1165, 16
      %v1188 = vpop.permute.xlu0 %1187
      %1189 = vrot.lane.b32.xlu0 %v1166, 16
      %v1190 = vpop.permute.xlu0 %1189
      %v1199 = vsel %vm328, %v716, %v1176
      %v1200 = vsel %vm328, %v717, %v1178
      %v1201 = vsel %vm328, %v718, %v1180
      %v1202 = vsel %vm328, %v719, %v1182
      %v1203 = vsel %vm328, %v720, %v1184
      %v1204 = vsel %vm328, %v721, %v1186
      %v1205 = vsel %vm328, %v722, %v1188
      %v1206 = vsel %vm328, %v723, %v1190
      %vm1207 = vcmask 261120
      %1208 = vst.msk [vmem:[%s299] sm:$0xff] %vm1207, %v1199
      %1209 = vst.msk [vmem:[%s299 + $0x8] sm:$0xff] %vm1207, %v1200
      %1210 = vst.msk [vmem:[%s299 + $0x10] sm:$0xff] %vm1207, %v1201
      %1211 = vst.msk [vmem:[%s299 + $0x18] sm:$0xff] %vm1207, %v1202
      %1212 = vst.msk [vmem:[%s299 + $0x20] sm:$0xff] %vm1207, %v1203
      %1213 = vst.msk [vmem:[%s299 + $0x28] sm:$0xff] %vm1207, %v1204
      %1214 = vst.msk [vmem:[%s299 + $0x30] sm:$0xff] %vm1207, %v1205
      %1215 = vst.msk [vmem:[%s299 + $0x38] sm:$0xff] %vm1207, %v1206
      %s1216 = smul.u32 8, %s22
      %p1217 = scmp.lt.s32.totalorder %s21, 1
      %s1218 = scalar_select %p1217, %s21, 1
      %p1219 = scmp.lt.s32.totalorder %s1216, 7
      %s1220 = scalar_select %p1219, %s1216, 7
      %s1221 = smul.addr %s1218, 8
      %s1222 = sadd.s32 %s1220, %s1221
      %s1223 = smul.addr %s1222, 8
      %s1224 = scalar_lea.vmem %s5, %s1223
      // Predicated region
      $region37: #{na_transformer_layer_forward.6} parent=35 // pred_check
        %p1225 = pneg %p155
      $region38: #{na_transformer_layer_forward.6} parent=35 // pred_check_branch
        %1227 = sbr.rel (%p1225) target = $region40
      $region39: #{na_transformer_layer_forward.6} parent=35 // pred_region
        %s1228 = smul.u32 8, %s22
      $region40: #{na_transformer_layer_forward.6} parent=35 // pred_fallthru
        _
    $region36: #{na_transformer_layer_forward.6} parent=5 // pred_fallthru
      _
    %p1229 = scmp.le.s32.totalorder 2, %s12
    // Predicated region
    $region41: #{na_transformer_layer_forward.6} parent=5 // pred_check
      %p1230 = pneg %p1229
    $region42: #{na_transformer_layer_forward.6} parent=5 // pred_check_branch
      %1232 = sbr.rel (%p1230) target = $region44
    $region43: #{na_transformer_layer_forward.6} parent=5 // pred_region
      %s1233 = ssub.s32 %s12, 2
      // Predicated region
      $region45: #{na_transformer_layer_forward.6} parent=43 // pred_check
        %p1234 = pneg %p161
      $region46: #{na_transformer_layer_forward.6} parent=43 // pred_check_branch
        %1236 = sbr.rel (%p1234) target = $region48
      $region47: #{na_transformer_layer_forward.6} parent=43 // pred_region
        %s1237 = smul.u32 8, %s24
        %p1238 = scmp.lt.s32.totalorder %s23, 1
        %s1239 = scalar_select %p1238, %s23, 1
        %p1240 = scmp.lt.s32.totalorder %s1237, 7
        %s1241 = scalar_select %p1240, %s1237, 7
        %s1242 = smul.addr %s1239, 8
        %s1243 = sadd.s32 %s1241, %s1242
        %s1244 = smul.addr %s1243, 8
        %s1245 = scalar_lea.vmem %s5, %s1244
      $region48: #{na_transformer_layer_forward.6} parent=43 // pred_fallthru
        _
    $region44: #{na_transformer_layer_forward.6} parent=5 // pred_fallthru
      _
  $region6: #{na_transformer_layer_forward.6} parent=0 // loop_footer
    %s16 = sadd.s32 1, %s12
  $region7: #{na_transformer_layer_forward.6} parent=0 // loop_footer_branch
    %11 = sbr.rel target = $region3
  $region8: #{na_transformer_layer_forward.6} parent=0 // loop_exit
    _

// kernel: na_transformer_layer_forward.8
$region0: #{na_transformer_layer_forward.8}
  #allocation0 [shape = 'u32[]', space=smem, size = 0x4, offset = 0x4, fixed_abs, tag = 'smem constant byte address 0x4 - core index']
  #allocation1 [shape = 'u32[144,128]{1,0:T(1,128)}', space=vmem, size = 0x12000, scoped, tag = 'internal scratch']
  #allocation2 [shape = 'f32[1,1]{1,0:T(1,128)S(1)}', space=vmem, size = 0x200, scoped, tag = 'scoped memory for na_transformer_layer_forward.8']
  #allocation3 [shape = 'f32[1,1]{1,0:T(1,128)S(1)}', space=vmem, size = 0x200, scoped, tag = 'scoped memory for na_transformer_layer_forward.8']
  %s0 = inlined_call_operand.vmem [shape: f32[128,32], index: 0, kind: input, shape index: {}]
  %s1 = inlined_call_operand.vmem [shape: f32[1,32], index: 1, kind: input, shape index: {}]
  %s2 = inlined_call_operand.vmem [shape: f32[1,32], index: 2, kind: input, shape index: {}]
  %s3 = inlined_call_operand.vmem [shape: f32[32,128], index: 3, kind: input, shape index: {}]
  %s4 = inlined_call_operand.vmem [shape: f32[1,128], index: 4, kind: input, shape index: {}]
  %s5 = inlined_call_operand.<no memory space> [shape: f32[1,1], index: 5, kind: input, shape index: {}]
  %s6 = inlined_call_operand.<no memory space> [shape: f32[1,1], index: 6, kind: input, shape index: {}]
  %s7 = inlined_call_operand.vmem [shape: f32[128,128], index: 7, kind: output, shape index: {}]
  %s8 = sld [smem:[#allocation0]]
  $region38: #{na_transformer_layer_forward.8} parent=0
    _
  %s10 = ssub.s32 1, %s8
  %s11 = scalar_select 0, %s10, %s8
  %v12 = vstv %s5
  %13 = vst [vmem:[#allocation2] sm:$0x1] %v12
  %v14 = vstv %s6
  %15 = vst [vmem:[#allocation3] sm:$0x1] %v14
  // Predicated region
  $region2: #{na_transformer_layer_forward.8} parent=0 // pred_check
    _
  $region3: #{na_transformer_layer_forward.8} parent=0 // pred_check_branch
    %17 = sbr.rel (0) target = $region5
  $region4: #{na_transformer_layer_forward.8} parent=0 // pred_region
    _
  $region5: #{na_transformer_layer_forward.8} parent=0 // pred_fallthru
    _
  // Predicated region
  $region6: #{na_transformer_layer_forward.8} parent=0 // pred_check
    _
  $region7: #{na_transformer_layer_forward.8} parent=0 // pred_check_branch
    %19 = sbr.rel (0) target = $region9
  $region8: #{na_transformer_layer_forward.8} parent=0 // pred_region
    _
  $region9: #{na_transformer_layer_forward.8} parent=0 // pred_fallthru
    _
  // Predicated region
  $region10: #{na_transformer_layer_forward.8} parent=0 // pred_check
    _
  $region11: #{na_transformer_layer_forward.8} parent=0 // pred_check_branch
    %21 = sbr.rel (0) target = $region13
  $region12: #{na_transformer_layer_forward.8} parent=0 // pred_region
    _
  $region13: #{na_transformer_layer_forward.8} parent=0 // pred_fallthru
    _
  // Predicated region
  $region14: #{na_transformer_layer_forward.8} parent=0 // pred_check
    _
  $region15: #{na_transformer_layer_forward.8} parent=0 // pred_check_branch
    %23 = sbr.rel (0) target = $region17
  $region16: #{na_transformer_layer_forward.8} parent=0 // pred_region
    _
  $region17: #{na_transformer_layer_forward.8} parent=0 // pred_fallthru
    _
  // Predicated region
  $region18: #{na_transformer_layer_forward.8} parent=0 // pred_check
    _
  $region19: #{na_transformer_layer_forward.8} parent=0 // pred_check_branch
    %25 = sbr.rel (0) target = $region21
  $region20: #{na_transformer_layer_forward.8} parent=0 // pred_region
    _
  $region21: #{na_transformer_layer_forward.8} parent=0 // pred_fallthru
    _
  // Predicated region
  $region22: #{na_transformer_layer_forward.8} parent=0 // pred_check
    _
  $region23: #{na_transformer_layer_forward.8} parent=0 // pred_check_branch
    %27 = sbr.rel (0) target = $region25
  $region24: #{na_transformer_layer_forward.8} parent=0 // pred_region
    _
  $region25: #{na_transformer_layer_forward.8} parent=0 // pred_fallthru
    _
  // Predicated region
  $region26: #{na_transformer_layer_forward.8} parent=0 // pred_check
    _
  $region27: #{na_transformer_layer_forward.8} parent=0 // pred_check_branch
    %29 = sbr.rel (0) target = $region29
  $region28: #{na_transformer_layer_forward.8} parent=0 // pred_region
    _
  $region29: #{na_transformer_layer_forward.8} parent=0 // pred_fallthru
    _
  %v30 = vld [vmem:[%s0] sm:$0xff]
  %v31 = vld [vmem:[%s0 + $0x8] sm:$0xff]
  %v32 = vld [vmem:[%s0 + $0x10] sm:$0xff]
  %v33 = vld [vmem:[%s0 + $0x18] sm:$0xff]
  %v34 = vld [vmem:[%s0 + $0x20] sm:$0xff]
  %v35 = vld [vmem:[%s0 + $0x28] sm:$0xff]
  %v36 = vld [vmem:[%s0 + $0x30] sm:$0xff]
  %v37 = vld [vmem:[%s0 + $0x38] sm:$0xff]
  %v38 = vld [vmem:[%s0 + $0x40] sm:$0xff]
  %v39 = vld [vmem:[%s0 + $0x48] sm:$0xff]
  %v40 = vld [vmem:[%s0 + $0x50] sm:$0xff]
  %v41 = vld [vmem:[%s0 + $0x58] sm:$0xff]
  %v42 = vld [vmem:[%s0 + $0x60] sm:$0xff]
  %v43 = vld [vmem:[%s0 + $0x68] sm:$0xff]
  %v44 = vld [vmem:[%s0 + $0x70] sm:$0xff]
  %v45 = vld [vmem:[%s0 + $0x78] sm:$0xff]
  %vm46 = vcmask 261120
  %v47 = vsel %vm46, %v30, 0.0
  %48 = vadd.xlane.f32.xlu0 %v47
  %v49 = vpop.xlane.xlu0 %48
  %v50 = vsel %vm46, %v31, 0.0
  %51 = vadd.xlane.f32.xlu0 %v50
  %v52 = vpop.xlane.xlu0 %51
  %v53 = vsel %vm46, %v32, 0.0
  %54 = vadd.xlane.f32.xlu0 %v53
  %v55 = vpop.xlane.xlu0 %54
  %v56 = vsel %vm46, %v33, 0.0
  %57 = vadd.xlane.f32.xlu0 %v56
  %v58 = vpop.xlane.xlu0 %57
  %v59 = vsel %vm46, %v34, 0.0
  %60 = vadd.xlane.f32.xlu0 %v59
  %v61 = vpop.xlane.xlu0 %60
  %v62 = vsel %vm46, %v35, 0.0
  %63 = vadd.xlane.f32.xlu0 %v62
  %v64 = vpop.xlane.xlu0 %63
  %v65 = vsel %vm46, %v36, 0.0
  %66 = vadd.xlane.f32.xlu0 %v65
  %v67 = vpop.xlane.xlu0 %66
  %v68 = vsel %vm46, %v37, 0.0
  %69 = vadd.xlane.f32.xlu0 %v68
  %v70 = vpop.xlane.xlu0 %69
  %v71 = vsel %vm46, %v38, 0.0
  %72 = vadd.xlane.f32.xlu0 %v71
  %v73 = vpop.xlane.xlu0 %72
  %v74 = vsel %vm46, %v39, 0.0
  %75 = vadd.xlane.f32.xlu0 %v74
  %v76 = vpop.xlane.xlu0 %75
  %v77 = vsel %vm46, %v40, 0.0
  %78 = vadd.xlane.f32.xlu0 %v77
  %v79 = vpop.xlane.xlu0 %78
  %v80 = vsel %vm46, %v41, 0.0
  %81 = vadd.xlane.f32.xlu0 %v80
  %v82 = vpop.xlane.xlu0 %81
  %v83 = vsel %vm46, %v42, 0.0
  %84 = vadd.xlane.f32.xlu0 %v83
  %v85 = vpop.xlane.xlu0 %84
  %v86 = vsel %vm46, %v43, 0.0
  %87 = vadd.xlane.f32.xlu0 %v86
  %v88 = vpop.xlane.xlu0 %87
  %v89 = vsel %vm46, %v44, 0.0
  %90 = vadd.xlane.f32.xlu0 %v89
  %v91 = vpop.xlane.xlu0 %90
  %v92 = vsel %vm46, %v45, 0.0
  %93 = vadd.xlane.f32.xlu0 %v92
  %v94 = vpop.xlane.xlu0 %93
  %v95 = vrcp.pop 32.0
  %v96 = vmul.f32 %v49, %v95
  %v97 = vmul.f32 %v52, %v95
  %v98 = vmul.f32 %v55, %v95
  %v99 = vmul.f32 %v58, %v95
  %v100 = vmul.f32 %v61, %v95
  %v101 = vmul.f32 %v64, %v95
  %v102 = vmul.f32 %v67, %v95
  %v103 = vmul.f32 %v70, %v95
  %v104 = vmul.f32 %v73, %v95
  %v105 = vmul.f32 %v76, %v95
  %v106 = vmul.f32 %v79, %v95
  %v107 = vmul.f32 %v82, %v95
  %v108 = vmul.f32 %v85, %v95
  %v109 = vmul.f32 %v88, %v95
  %v110 = vmul.f32 %v91, %v95
  %v111 = vmul.f32 %v94, %v95
  %v112 = vsub.f32 %v30, %v96
  %v113 = vsub.f32 %v31, %v97
  %v114 = vsub.f32 %v32, %v98
  %v115 = vsub.f32 %v33, %v99
  %v116 = vsub.f32 %v34, %v100
  %v117 = vsub.f32 %v35, %v101
  %v118 = vsub.f32 %v36, %v102
  %v119 = vsub.f32 %v37, %v103
  %v120 = vsub.f32 %v38, %v104
  %v121 = vsub.f32 %v39, %v105
  %v122 = vsub.f32 %v40, %v106
  %v123 = vsub.f32 %v41, %v107
  %v124 = vsub.f32 %v42, %v108
  %v125 = vsub.f32 %v43, %v109
  %v126 = vsub.f32 %v44, %v110
  %v127 = vsub.f32 %v45, %v111
  %v128 = vmul.f32 %v112, %v112
  %v129 = vmul.f32 %v113, %v113
  %v130 = vmul.f32 %v114, %v114
  %v131 = vmul.f32 %v115, %v115
  %v132 = vmul.f32 %v116, %v116
  %v133 = vmul.f32 %v117, %v117
  %v134 = vmul.f32 %v118, %v118
  %v135 = vmul.f32 %v119, %v119
  %v136 = vmul.f32 %v120, %v120
  %v137 = vmul.f32 %v121, %v121
  %v138 = vmul.f32 %v122, %v122
  %v139 = vmul.f32 %v123, %v123
  %v140 = vmul.f32 %v124, %v124
  %v141 = vmul.f32 %v125, %v125
  %v142 = vmul.f32 %v126, %v126
  %v143 = vmul.f32 %v127, %v127
  %v144 = vsel %vm46, %v128, 0.0
  %145 = vadd.xlane.f32.xlu0 %v144
  %v146 = vpop.xlane.xlu0 %145
  %v147 = vsel %vm46, %v129, 0.0
  %148 = vadd.xlane.f32.xlu0 %v147
  %v149 = vpop.xlane.xlu0 %148
  %v150 = vsel %vm46, %v130, 0.0
  %151 = vadd.xlane.f32.xlu0 %v150
  %v152 = vpop.xlane.xlu0 %151
  %v153 = vsel %vm46, %v131, 0.0
  %154 = vadd.xlane.f32.xlu0 %v153
  %v155 = vpop.xlane.xlu0 %154
  %v156 = vsel %vm46, %v132, 0.0
  %157 = vadd.xlane.f32.xlu0 %v156
  %v158 = vpop.xlane.xlu0 %157
  %v159 = vsel %vm46, %v133, 0.0
  %160 = vadd.xlane.f32.xlu0 %v159
  %v161 = vpop.xlane.xlu0 %160
  %v162 = vsel %vm46, %v134, 0.0
  %163 = vadd.xlane.f32.xlu0 %v162
  %v164 = vpop.xlane.xlu0 %163
  %v165 = vsel %vm46, %v135, 0.0
  %166 = vadd.xlane.f32.xlu0 %v165
  %v167 = vpop.xlane.xlu0 %166
  %v168 = vsel %vm46, %v136, 0.0
  %169 = vadd.xlane.f32.xlu0 %v168
  %v170 = vpop.xlane.xlu0 %169
  %v171 = vsel %vm46, %v137, 0.0
  %172 = vadd.xlane.f32.xlu0 %v171
  %v173 = vpop.xlane.xlu0 %172
  %v174 = vsel %vm46, %v138, 0.0
  %175 = vadd.xlane.f32.xlu0 %v174
  %v176 = vpop.xlane.xlu0 %175
  %v177 = vsel %vm46, %v139, 0.0
  %178 = vadd.xlane.f32.xlu0 %v177
  %v179 = vpop.xlane.xlu0 %178
  %v180 = vsel %vm46, %v140, 0.0
  %181 = vadd.xlane.f32.xlu0 %v180
  %v182 = vpop.xlane.xlu0 %181
  %v183 = vsel %vm46, %v141, 0.0
  %184 = vadd.xlane.f32.xlu0 %v183
  %v185 = vpop.xlane.xlu0 %184
  %v186 = vsel %vm46, %v142, 0.0
  %187 = vadd.xlane.f32.xlu0 %v186
  %v188 = vpop.xlane.xlu0 %187
  %v189 = vsel %vm46, %v143, 0.0
  %190 = vadd.xlane.f32.xlu0 %v189
  %v191 = vpop.xlane.xlu0 %190
  %v192 = vmul.f32 %v146, %v95
  %v193 = vmul.f32 %v149, %v95
  %v194 = vmul.f32 %v152, %v95
  %v195 = vmul.f32 %v155, %v95
  %v196 = vmul.f32 %v158, %v95
  %v197 = vmul.f32 %v161, %v95
  %v198 = vmul.f32 %v164, %v95
  %v199 = vmul.f32 %v167, %v95
  %v200 = vmul.f32 %v170, %v95
  %v201 = vmul.f32 %v173, %v95
  %v202 = vmul.f32 %v176, %v95
  %v203 = vmul.f32 %v179, %v95
  %v204 = vmul.f32 %v182, %v95
  %v205 = vmul.f32 %v185, %v95
  %v206 = vmul.f32 %v188, %v95
  %v207 = vmul.f32 %v191, %v95
  %v208 = vadd.f32 %v192, 1e-05
  %v209 = vadd.f32 %v193, 1e-05
  %v210 = vadd.f32 %v194, 1e-05
  %v211 = vadd.f32 %v195, 1e-05
  %v212 = vadd.f32 %v196, 1e-05
  %v213 = vadd.f32 %v197, 1e-05
  %v214 = vadd.f32 %v198, 1e-05
  %v215 = vadd.f32 %v199, 1e-05
  %v216 = vadd.f32 %v200, 1e-05
  %v217 = vadd.f32 %v201, 1e-05
  %v218 = vadd.f32 %v202, 1e-05
  %v219 = vadd.f32 %v203, 1e-05
  %v220 = vadd.f32 %v204, 1e-05
  %v221 = vadd.f32 %v205, 1e-05
  %v222 = vadd.f32 %v206, 1e-05
  %v223 = vadd.f32 %v207, 1e-05
  %v224 = vrsqrt.pop %v208
  %v225 = vrsqrt.pop %v209
  %v226 = vrsqrt.pop %v210
  %v227 = vrsqrt.pop %v211
  %v228 = vrsqrt.pop %v212
  %v229 = vrsqrt.pop %v213
  %v230 = vrsqrt.pop %v214
  %v231 = vrsqrt.pop %v215
  %v232 = vrsqrt.pop %v216
  %v233 = vrsqrt.pop %v217
  %v234 = vrsqrt.pop %v218
  %v235 = vrsqrt.pop %v219
  %v236 = vrsqrt.pop %v220
  %v237 = vrsqrt.pop %v221
  %v238 = vrsqrt.pop %v222
  %v239 = vrsqrt.pop %v223
  %v240 = vmul.f32 %v112, %v224
  %v241 = vmul.f32 %v113, %v225
  %v242 = vmul.f32 %v114, %v226
  %v243 = vmul.f32 %v115, %v227
  %v244 = vmul.f32 %v116, %v228
  %v245 = vmul.f32 %v117, %v229
  %v246 = vmul.f32 %v118, %v230
  %v247 = vmul.f32 %v119, %v231
  %v248 = vmul.f32 %v120, %v232
  %v249 = vmul.f32 %v121, %v233
  %v250 = vmul.f32 %v122, %v234
  %v251 = vmul.f32 %v123, %v235
  %v252 = vmul.f32 %v124, %v236
  %v253 = vmul.f32 %v125, %v237
  %v254 = vmul.f32 %v126, %v238
  %v255 = vmul.f32 %v127, %v239
  %v256 = vld [vmem:[%s1] sm:$0x1]
  %v258 = vlaneseq
  %v259 = vshrl.u32 %v258, 7
  %v260 = vsub.s32 0, %v259
  %v261 = vrot.slane %v256, %v260
  %v263 = vmul.f32 %v240, %v261
  %v264 = vmul.f32 %v241, %v261
  %v265 = vmul.f32 %v242, %v261
  %v266 = vmul.f32 %v243, %v261
  %v267 = vmul.f32 %v244, %v261
  %v268 = vmul.f32 %v245, %v261
  %v269 = vmul.f32 %v246, %v261
  %v270 = vmul.f32 %v247, %v261
  %v271 = vmul.f32 %v248, %v261
  %v272 = vmul.f32 %v249, %v261
  %v273 = vmul.f32 %v250, %v261
  %v274 = vmul.f32 %v251, %v261
  %v275 = vmul.f32 %v252, %v261
  %v276 = vmul.f32 %v253, %v261
  %v277 = vmul.f32 %v254, %v261
  %v278 = vmul.f32 %v255, %v261
  %v279 = vld [vmem:[%s2] sm:$0x1]
  %v281 = vlaneseq
  %v282 = vshrl.u32 %v281, 7
  %v283 = vsub.s32 0, %v282
  %v284 = vrot.slane %v279, %v283
  %v286 = vadd.f32 %v263, %v284
  %v287 = vadd.f32 %v264, %v284
  %v288 = vadd.f32 %v265, %v284
  %v289 = vadd.f32 %v266, %v284
  %v290 = vadd.f32 %v267, %v284
  %v291 = vadd.f32 %v268, %v284
  %v292 = vadd.f32 %v269, %v284
  %v293 = vadd.f32 %v270, %v284
  %v294 = vadd.f32 %v271, %v284
  %v295 = vadd.f32 %v272, %v284
  %v296 = vadd.f32 %v273, %v284
  %v297 = vadd.f32 %v274, %v284
  %v298 = vadd.f32 %v275, %v284
  %v299 = vadd.f32 %v276, %v284
  %v300 = vadd.f32 %v277, %v284
  %v301 = vadd.f32 %v278, %v284
  %v302 = vld [vmem:[%s3] sm:$0xff]
  %v303 = vld [vmem:[%s3 + $0x8] sm:$0xff]
  %v304 = vld [vmem:[%s3 + $0x10] sm:$0xff]
  %v305 = vld [vmem:[%s3 + $0x18] sm:$0xff]
  %v306 = vld [vmem:[%s4] sm:$0x1]
  %v308 = vlaneseq
  %v309 = vshrl.u32 %v308, 7
  %v310 = vsub.s32 0, %v309
  %v311 = vrot.slane %v306, %v310
  %v314 = vsel %vm46, %v286, 0
  %v317 = vsel %vm46, %v287, 0
  %v320 = vsel %vm46, %v288, 0
  %v323 = vsel %vm46, %v289, 0
  %v326 = vsel %vm46, %v290, 0
  %v329 = vsel %vm46, %v291, 0
  %v332 = vsel %vm46, %v292, 0
  %v335 = vsel %vm46, %v293, 0
  %v338 = vsel %vm46, %v294, 0
  %v341 = vsel %vm46, %v295, 0
  %v344 = vsel %vm46, %v296, 0
  %v347 = vsel %vm46, %v297, 0
  %v350 = vsel %vm46, %v298, 0
  %v353 = vsel %vm46, %v299, 0
  %v356 = vsel %vm46, %v300, 0
  %v359 = vsel %vm46, %v301, 0
  %361 = vmatprep.subr.mxu0 0.0
  %362 = vmatpush1.msra.mxu0 0.0
  %363 = vmatprep.subr.mxu0 0.0
  %364 = vmatpush1.msra.mxu0 0.0
  %365 = vmatprep.subr.mxu0 0.0
  %366 = vmatpush1.msra.mxu0 0.0
  %367 = vmatprep.subr.mxu0 0.0
  %368 = vmatpush1.msra.mxu0 0.0
  %369 = vmatprep.subr.mxu0 0.0
  %370 = vmatpush1.msra.mxu0 0.0
  %371 = vmatprep.subr.mxu0 0.0
  %372 = vmatpush1.msra.mxu0 0.0
  %373 = vmatprep.subr.mxu0 0.0
  %374 = vmatpush1.msra.mxu0 0.0
  %375 = vmatprep.subr.mxu0 0.0
  %376 = vmatpush1.msra.mxu0 0.0
  %377 = vmatprep.subr.mxu0 0.0
  %378 = vmatpush1.msra.mxu0 0.0
  %379 = vmatprep.subr.mxu0 0.0
  %380 = vmatpush1.msra.mxu0 0.0
  %381 = vmatprep.subr.mxu0 0.0
  %382 = vmatpush1.msra.mxu0 0.0
  %383 = vmatprep.subr.mxu0 0.0
  %384 = vmatpush1.msra.mxu0 0.0
  %385 = vmatprep.subr.mxu0 0.0
  %386 = vmatpush1.msra.mxu0 %v305
  %387 = vmatprep.subr.mxu0 0.0
  %388 = vmatpush1.msra.mxu0 %v304
  %389 = vmatprep.subr.mxu0 0.0
  %390 = vmatpush1.msra.mxu0 %v303
  %391 = vmatprep.subr.mxu0 0.0
  %392 = vmatpush1.msra.mxu0 %v302
  %393 = vmatprep.subr.mxu0 0.0
  %394 = vmatpush2.msra.mxu0 0.0
  %395 = vmatprep.subr.mxu0 0.0
  %396 = vmatpush2.msra.mxu0 0.0
  %397 = vmatprep.subr.mxu0 0.0
  %398 = vmatpush2.msra.mxu0 0.0
  %399 = vmatprep.subr.mxu0 0.0
  %400 = vmatpush2.msra.mxu0 0.0
  %401 = vmatprep.subr.mxu0 0.0
  %402 = vmatpush2.msra.mxu0 0.0
  %403 = vmatprep.subr.mxu0 0.0
  %404 = vmatpush2.msra.mxu0 0.0
  %405 = vmatprep.subr.mxu0 0.0
  %406 = vmatpush2.msra.mxu0 0.0
  %407 = vmatprep.subr.mxu0 0.0
  %408 = vmatpush2.msra.mxu0 0.0
  %409 = vmatprep.subr.mxu0 0.0
  %410 = vmatpush2.msra.mxu0 0.0
  %411 = vmatprep.subr.mxu0 0.0
  %412 = vmatpush2.msra.mxu0 0.0
  %413 = vmatprep.subr.mxu0 0.0
  %414 = vmatpush2.msra.mxu0 0.0
  %415 = vmatprep.subr.mxu0 0.0
  %416 = vmatpush2.msra.mxu0 0.0
  %417 = vmatprep.subr.mxu0 0.0
  %418 = vmatpush2.msra.mxu0 0.0
  %419 = vmatprep.subr.mxu0 0.0
  %420 = vmatpush2.msra.mxu0 0.0
  %421 = vmatprep.subr.mxu0 0.0
  %422 = vmatpush2.msra.mxu0 0.0
  %423 = vmatprep.subr.mxu0 0.0
  %424 = vmatpush2.msra.mxu0 0.0
  %425 = vmatprep.mubr.f32.mxu0 0.0
  %426 = vmatmul.mubr.f32.gmra.mxu0 %v314
  %v427 = vpop.f32.mrf.mxu0
  %v428 = vadd.f32 %v311, %v427
  %v429 = vpop.f32.mrf.mxu0
  %430 = vmatprep.mubr.f32.mxu0 0.0
  %431 = vmatmul.mubr.f32.gmra.mxu0 %v317
  %v432 = vpop.f32.mrf.mxu0
  %v433 = vadd.f32 %v311, %v432
  %v434 = vpop.f32.mrf.mxu0
  %435 = vmatprep.mubr.f32.mxu0 0.0
  %436 = vmatmul.mubr.f32.gmra.mxu0 %v320
  %v437 = vpop.f32.mrf.mxu0
  %v438 = vadd.f32 %v311, %v437
  %v439 = vpop.f32.mrf.mxu0
  %440 = vmatprep.mubr.f32.mxu0 0.0
  %441 = vmatmul.mubr.f32.gmra.mxu0 %v323
  %v442 = vpop.f32.mrf.mxu0
  %v443 = vadd.f32 %v311, %v442
  %v444 = vpop.f32.mrf.mxu0
  %445 = vmatprep.mubr.f32.mxu0 0.0
  %446 = vmatmul.mubr.f32.gmra.mxu0 %v326
  %v447 = vpop.f32.mrf.mxu0
  %v448 = vadd.f32 %v311, %v447
  %v449 = vpop.f32.mrf.mxu0
  %450 = vmatprep.mubr.f32.mxu0 0.0
  %451 = vmatmul.mubr.f32.gmra.mxu0 %v329
  %v452 = vpop.f32.mrf.mxu0
  %v453 = vadd.f32 %v311, %v452
  %v454 = vpop.f32.mrf.mxu0
  %455 = vmatprep.mubr.f32.mxu0 0.0
  %456 = vmatmul.mubr.f32.gmra.mxu0 %v332
  %v457 = vpop.f32.mrf.mxu0
  %v458 = vadd.f32 %v311, %v457
  %v459 = vpop.f32.mrf.mxu0
  %460 = vmatprep.mubr.f32.mxu0 0.0
  %461 = vmatmul.mubr.f32.gmra.mxu0 %v335
  %v462 = vpop.f32.mrf.mxu0
  %v463 = vadd.f32 %v311, %v462
  %v464 = vpop.f32.mrf.mxu0
  %465 = vmatprep.mubr.f32.mxu0 0.0
  %466 = vmatmul.mubr.f32.gmra.mxu0 %v338
  %v467 = vpop.f32.mrf.mxu0
  %v468 = vadd.f32 %v311, %v467
  %v469 = vpop.f32.mrf.mxu0
  %470 = vmatprep.mubr.f32.mxu0 0.0
  %471 = vmatmul.mubr.f32.gmra.mxu0 %v341
  %v472 = vpop.f32.mrf.mxu0
  %v473 = vadd.f32 %v311, %v472
  %v474 = vpop.f32.mrf.mxu0
  %475 = vmatprep.mubr.f32.mxu0 0.0
  %476 = vmatmul.mubr.f32.gmra.mxu0 %v344
  %v477 = vpop.f32.mrf.mxu0
  %v478 = vadd.f32 %v311, %v477
  %v479 = vpop.f32.mrf.mxu0
  %480 = vmatprep.mubr.f32.mxu0 0.0
  %481 = vmatmul.mubr.f32.gmra.mxu0 %v347
  %v482 = vpop.f32.mrf.mxu0
  %v483 = vadd.f32 %v311, %v482
  %v484 = vpop.f32.mrf.mxu0
  %485 = vmatprep.mubr.f32.mxu0 0.0
  %486 = vmatmul.mubr.f32.gmra.mxu0 %v350
  %v487 = vpop.f32.mrf.mxu0
  %v488 = vadd.f32 %v311, %v487
  %v489 = vpop.f32.mrf.mxu0
  %490 = vmatprep.mubr.f32.mxu0 0.0
  %491 = vmatmul.mubr.f32.gmra.mxu0 %v353
  %v492 = vpop.f32.mrf.mxu0
  %v493 = vadd.f32 %v311, %v492
  %v494 = vpop.f32.mrf.mxu0
  %495 = vmatprep.mubr.f32.mxu0 0.0
  %496 = vmatmul.mubr.f32.gmra.mxu0 %v356
  %v497 = vpop.f32.mrf.mxu0
  %v498 = vadd.f32 %v311, %v497
  %v499 = vpop.f32.mrf.mxu0
  %500 = vmatprep.mubr.f32.mxu0 0.0
  %501 = vmatmul.mubr.f32.gmra.mxu0 %v359
  %v502 = vpop.f32.mrf.mxu0
  %v503 = vadd.f32 %v311, %v502
  %v504 = vpop.f32.mrf.mxu0
  %505 = vdwg.mxu0
  %v506 = vmax.f32 %v428, 0.0
  %v507 = vmax.f32 %v433, 0.0
  %v508 = vmax.f32 %v438, 0.0
  %v509 = vmax.f32 %v443, 0.0
  %v510 = vmax.f32 %v448, 0.0
  %v511 = vmax.f32 %v453, 0.0
  %v512 = vmax.f32 %v458, 0.0
  %v513 = vmax.f32 %v463, 0.0
  %v514 = vmax.f32 %v468, 0.0
  %v515 = vmax.f32 %v473, 0.0
  %v516 = vmax.f32 %v478, 0.0
  %v517 = vmax.f32 %v483, 0.0
  %v518 = vmax.f32 %v488, 0.0
  %v519 = vmax.f32 %v493, 0.0
  %v520 = vmax.f32 %v498, 0.0
  %v521 = vmax.f32 %v503, 0.0
  %v522 = vld [vmem:[#allocation2] sm:$0x1]
  %s523 = vtos %v522
  %v524 = vstv %s523
  %v525 = vmul.f32 %v524, %v506
  %v526 = vmul.f32 %v524, %v507
  %v527 = vmul.f32 %v524, %v508
  %v528 = vmul.f32 %v524, %v509
  %v529 = vmul.f32 %v524, %v510
  %v530 = vmul.f32 %v524, %v511
  %v531 = vmul.f32 %v524, %v512
  %v532 = vmul.f32 %v524, %v513
  %v533 = vmul.f32 %v524, %v514
  %v534 = vmul.f32 %v524, %v515
  %v535 = vmul.f32 %v524, %v516
  %v536 = vmul.f32 %v524, %v517
  %v537 = vmul.f32 %v524, %v518
  %v538 = vmul.f32 %v524, %v519
  %v539 = vmul.f32 %v524, %v520
  %v540 = vmul.f32 %v524, %v521
  %v541 = vmul.f32 %v525, %v506
  %v542 = vmul.f32 %v526, %v507
  %v543 = vmul.f32 %v527, %v508
  %v544 = vmul.f32 %v528, %v509
  %v545 = vmul.f32 %v529, %v510
  %v546 = vmul.f32 %v530, %v511
  %v547 = vmul.f32 %v531, %v512
  %v548 = vmul.f32 %v532, %v513
  %v549 = vmul.f32 %v533, %v514
  %v550 = vmul.f32 %v534, %v515
  %v551 = vmul.f32 %v535, %v516
  %v552 = vmul.f32 %v536, %v517
  %v553 = vmul.f32 %v537, %v518
  %v554 = vmul.f32 %v538, %v519
  %v555 = vmul.f32 %v539, %v520
  %v556 = vmul.f32 %v540, %v521
  %v557 = vld [vmem:[#allocation3] sm:$0x1]
  %s558 = vtos %v557
  %v559 = vstv %s558
  %v560 = vadd.f32 %v541, %v559
  %v561 = vadd.f32 %v542, %v559
  %v562 = vadd.f32 %v543, %v559
  %v563 = vadd.f32 %v544, %v559
  %v564 = vadd.f32 %v545, %v559
  %v565 = vadd.f32 %v546, %v559
  %v566 = vadd.f32 %v547, %v559
  %v567 = vadd.f32 %v548, %v559
  %v568 = vadd.f32 %v549, %v559
  %v569 = vadd.f32 %v550, %v559
  %v570 = vadd.f32 %v551, %v559
  %v571 = vadd.f32 %v552, %v559
  %v572 = vadd.f32 %v553, %v559
  %v573 = vadd.f32 %v554, %v559
  %v574 = vadd.f32 %v555, %v559
  %v575 = vadd.f32 %v556, %v559
  %576 = vst [vmem:[%s7] sm:$0xff] %v560
  %577 = vst [vmem:[%s7 + $0x8] sm:$0xff] %v561
  %578 = vst [vmem:[%s7 + $0x10] sm:$0xff] %v562
  %579 = vst [vmem:[%s7 + $0x18] sm:$0xff] %v563
  %580 = vst [vmem:[%s7 + $0x20] sm:$0xff] %v564
  %581 = vst [vmem:[%s7 + $0x28] sm:$0xff] %v565
  %582 = vst [vmem:[%s7 + $0x30] sm:$0xff] %v566
  %583 = vst [vmem:[%s7 + $0x38] sm:$0xff] %v567
  %584 = vst [vmem:[%s7 + $0x40] sm:$0xff] %v568
  %585 = vst [vmem:[%s7 + $0x48] sm:$0xff] %v569
  %586 = vst [vmem:[%s7 + $0x50] sm:$0xff] %v570
  %587 = vst [vmem:[%s7 + $0x58] sm:$0xff] %v571
  %588 = vst [vmem:[%s7 + $0x60] sm:$0xff] %v572
  %589 = vst [vmem:[%s7 + $0x68] sm:$0xff] %v573
  %590 = vst [vmem:[%s7 + $0x70] sm:$0xff] %v574
  %591 = vst [vmem:[%s7 + $0x78] sm:$0xff] %v575
  // Predicated region
  $region30: #{na_transformer_layer_forward.8} parent=0 // pred_check
    _
  $region31: #{na_transformer_layer_forward.8} parent=0 // pred_check_branch
    %593 = sbr.rel (0) target = $region33
  $region32: #{na_transformer_layer_forward.8} parent=0 // pred_region
    _
  $region33: #{na_transformer_layer_forward.8} parent=0 // pred_fallthru
    _
  // Predicated region
  $region34: #{na_transformer_layer_forward.8} parent=0 // pred_check
    _
  $region35: #{na_transformer_layer_forward.8} parent=0 // pred_check_branch
    %595 = sbr.rel (0) target = $region37
  $region36: #{na_transformer_layer_forward.8} parent=0 // pred_region
    _
  $region37: #{na_transformer_layer_forward.8} parent=0 // pred_fallthru
    _

// kernel: na_transformer_layer_forward.9
$region0: #{na_transformer_layer_forward.9}
  #allocation0 [shape = 'u32[]', space=smem, size = 0x4, offset = 0x4, fixed_abs, tag = 'smem constant byte address 0x4 - core index']
  #allocation1 [shape = 'u32[144,128]{1,0:T(1,128)}', space=vmem, size = 0x12000, scoped, tag = 'internal scratch']
  %s0 = inlined_call_operand.vmem [shape: f32[128,128], index: 0, kind: input, shape index: {}]
  %s1 = inlined_call_operand.vmem [shape: f32[128,32], index: 1, kind: input, shape index: {}]
  %s2 = inlined_call_operand.vmem [shape: f32[1,32], index: 2, kind: input, shape index: {}]
  %s3 = inlined_call_operand.vmem [shape: f32[128,32], index: 3, kind: input, shape index: {}]
  %s4 = inlined_call_operand.vmem [shape: f32[128,32], index: 4, kind: output, shape index: {}]
  %s5 = sld [smem:[#allocation0]]
  $region26: #{na_transformer_layer_forward.9} parent=0
    _
  %s7 = ssub.s32 1, %s5
  %s8 = scalar_select 0, %s7, %s5
  // Predicated region
  $region2: #{na_transformer_layer_forward.9} parent=0 // pred_check
    _
  $region3: #{na_transformer_layer_forward.9} parent=0 // pred_check_branch
    %10 = sbr.rel (0) target = $region5
  $region4: #{na_transformer_layer_forward.9} parent=0 // pred_region
    _
  $region5: #{na_transformer_layer_forward.9} parent=0 // pred_fallthru
    _
  // Predicated region
  $region6: #{na_transformer_layer_forward.9} parent=0 // pred_check
    _
  $region7: #{na_transformer_layer_forward.9} parent=0 // pred_check_branch
    %12 = sbr.rel (0) target = $region9
  $region8: #{na_transformer_layer_forward.9} parent=0 // pred_region
    _
  $region9: #{na_transformer_layer_forward.9} parent=0 // pred_fallthru
    _
  // Predicated region
  $region10: #{na_transformer_layer_forward.9} parent=0 // pred_check
    _
  $region11: #{na_transformer_layer_forward.9} parent=0 // pred_check_branch
    %14 = sbr.rel (0) target = $region13
  $region12: #{na_transformer_layer_forward.9} parent=0 // pred_region
    _
  $region13: #{na_transformer_layer_forward.9} parent=0 // pred_fallthru
    _
  // Predicated region
  $region14: #{na_transformer_layer_forward.9} parent=0 // pred_check
    _
  $region15: #{na_transformer_layer_forward.9} parent=0 // pred_check_branch
    %16 = sbr.rel (0) target = $region17
  $region16: #{na_transformer_layer_forward.9} parent=0 // pred_region
    _
  $region17: #{na_transformer_layer_forward.9} parent=0 // pred_fallthru
    _
  %v17 = vld [vmem:[%s0] sm:$0xff]
  %v18 = vld [vmem:[%s0 + $0x8] sm:$0xff]
  %v19 = vld [vmem:[%s0 + $0x10] sm:$0xff]
  %v20 = vld [vmem:[%s0 + $0x18] sm:$0xff]
  %v21 = vld [vmem:[%s0 + $0x20] sm:$0xff]
  %v22 = vld [vmem:[%s0 + $0x28] sm:$0xff]
  %v23 = vld [vmem:[%s0 + $0x30] sm:$0xff]
  %v24 = vld [vmem:[%s0 + $0x38] sm:$0xff]
  %v25 = vld [vmem:[%s0 + $0x40] sm:$0xff]
  %v26 = vld [vmem:[%s0 + $0x48] sm:$0xff]
  %v27 = vld [vmem:[%s0 + $0x50] sm:$0xff]
  %v28 = vld [vmem:[%s0 + $0x58] sm:$0xff]
  %v29 = vld [vmem:[%s0 + $0x60] sm:$0xff]
  %v30 = vld [vmem:[%s0 + $0x68] sm:$0xff]
  %v31 = vld [vmem:[%s0 + $0x70] sm:$0xff]
  %v32 = vld [vmem:[%s0 + $0x78] sm:$0xff]
  %v33 = vld [vmem:[%s1] sm:$0xff]
  %v34 = vld [vmem:[%s1 + $0x8] sm:$0xff]
  %v35 = vld [vmem:[%s1 + $0x10] sm:$0xff]
  %v36 = vld [vmem:[%s1 + $0x18] sm:$0xff]
  %v37 = vld [vmem:[%s1 + $0x20] sm:$0xff]
  %v38 = vld [vmem:[%s1 + $0x28] sm:$0xff]
  %v39 = vld [vmem:[%s1 + $0x30] sm:$0xff]
  %v40 = vld [vmem:[%s1 + $0x38] sm:$0xff]
  %v41 = vld [vmem:[%s1 + $0x40] sm:$0xff]
  %v42 = vld [vmem:[%s1 + $0x48] sm:$0xff]
  %v43 = vld [vmem:[%s1 + $0x50] sm:$0xff]
  %v44 = vld [vmem:[%s1 + $0x58] sm:$0xff]
  %v45 = vld [vmem:[%s1 + $0x60] sm:$0xff]
  %v46 = vld [vmem:[%s1 + $0x68] sm:$0xff]
  %v47 = vld [vmem:[%s1 + $0x70] sm:$0xff]
  %v48 = vld [vmem:[%s1 + $0x78] sm:$0xff]
  %v49 = vld [vmem:[%s2] sm:$0x1]
  %v51 = vlaneseq
  %v52 = vshrl.u32 %v51, 7
  %v53 = vsub.s32 0, %v52
  %v54 = vrot.slane %v49, %v53
  %56 = vmatprep.subr.mxu0 0.0
  %57 = vmatpush1.msra.mxu0 %v48
  %58 = vmatprep.subr.mxu0 0.0
  %59 = vmatpush1.msra.mxu0 %v47
  %60 = vmatprep.subr.mxu0 0.0
  %61 = vmatpush1.msra.mxu0 %v46
  %62 = vmatprep.subr.mxu0 0.0
  %63 = vmatpush1.msra.mxu0 %v45
  %64 = vmatprep.subr.mxu0 0.0
  %65 = vmatpush1.msra.mxu0 %v44
  %66 = vmatprep.subr.mxu0 0.0
  %67 = vmatpush1.msra.mxu0 %v43
  %68 = vmatprep.subr.mxu0 0.0
  %69 = vmatpush1.msra.mxu0 %v42
  %70 = vmatprep.subr.mxu0 0.0
  %71 = vmatpush1.msra.mxu0 %v41
  %72 = vmatprep.subr.mxu0 0.0
  %73 = vmatpush1.msra.mxu0 %v40
  %74 = vmatprep.subr.mxu0 0.0
  %75 = vmatpush1.msra.mxu0 %v39
  %76 = vmatprep.subr.mxu0 0.0
  %77 = vmatpush1.msra.mxu0 %v38
  %78 = vmatprep.subr.mxu0 0.0
  %79 = vmatpush1.msra.mxu0 %v37
  %80 = vmatprep.subr.mxu0 0.0
  %81 = vmatpush1.msra.mxu0 %v36
  %82 = vmatprep.subr.mxu0 0.0
  %83 = vmatpush1.msra.mxu0 %v35
  %84 = vmatprep.subr.mxu0 0.0
  %85 = vmatpush1.msra.mxu0 %v34
  %86 = vmatprep.subr.mxu0 0.0
  %87 = vmatpush1.msra.mxu0 %v33
  %88 = vmatprep.subr.mxu0 0.0
  %89 = vmatpush2.msra.mxu0 0.0
  %90 = vmatprep.subr.mxu0 0.0
  %91 = vmatpush2.msra.mxu0 0.0
  %92 = vmatprep.subr.mxu0 0.0
  %93 = vmatpush2.msra.mxu0 0.0
  %94 = vmatprep.subr.mxu0 0.0
  %95 = vmatpush2.msra.mxu0 0.0
  %96 = vmatprep.subr.mxu0 0.0
  %97 = vmatpush2.msra.mxu0 0.0
  %98 = vmatprep.subr.mxu0 0.0
  %99 = vmatpush2.msra.mxu0 0.0
  %100 = vmatprep.subr.mxu0 0.0
  %101 = vmatpush2.msra.mxu0 0.0
  %102 = vmatprep.subr.mxu0 0.0
  %103 = vmatpush2.msra.mxu0 0.0
  %104 = vmatprep.subr.mxu0 0.0
  %105 = vmatpush2.msra.mxu0 0.0
  %106 = vmatprep.subr.mxu0 0.0
  %107 = vmatpush2.msra.mxu0 0.0
  %108 = vmatprep.subr.mxu0 0.0
  %109 = vmatpush2.msra.mxu0 0.0
  %110 = vmatprep.subr.mxu0 0.0
  %111 = vmatpush2.msra.mxu0 0.0
  %112 = vmatprep.subr.mxu0 0.0
  %113 = vmatpush2.msra.mxu0 0.0
  %114 = vmatprep.subr.mxu0 0.0
  %115 = vmatpush2.msra.mxu0 0.0
  %116 = vmatprep.subr.mxu0 0.0
  %117 = vmatpush2.msra.mxu0 0.0
  %118 = vmatprep.subr.mxu0 0.0
  %119 = vmatpush2.msra.mxu0 0.0
  %120 = vmatprep.mubr.f32.mxu0 0.0
  %121 = vmatmul.mubr.f32.gmra.mxu0 %v17
  %v122 = vpop.f32.mrf.mxu0
  %v123 = vadd.f32 %v54, %v122
  %v124 = vpop.f32.mrf.mxu0
  %125 = vmatprep.mubr.f32.mxu0 0.0
  %126 = vmatmul.mubr.f32.gmra.mxu0 %v18
  %v127 = vpop.f32.mrf.mxu0
  %v128 = vadd.f32 %v54, %v127
  %v129 = vpop.f32.mrf.mxu0
  %130 = vmatprep.mubr.f32.mxu0 0.0
  %131 = vmatmul.mubr.f32.gmra.mxu0 %v19
  %v132 = vpop.f32.mrf.mxu0
  %v133 = vadd.f32 %v54, %v132
  %v134 = vpop.f32.mrf.mxu0
  %135 = vmatprep.mubr.f32.mxu0 0.0
  %136 = vmatmul.mubr.f32.gmra.mxu0 %v20
  %v137 = vpop.f32.mrf.mxu0
  %v138 = vadd.f32 %v54, %v137
  %v139 = vpop.f32.mrf.mxu0
  %140 = vmatprep.mubr.f32.mxu0 0.0
  %141 = vmatmul.mubr.f32.gmra.mxu0 %v21
  %v142 = vpop.f32.mrf.mxu0
  %v143 = vadd.f32 %v54, %v142
  %v144 = vpop.f32.mrf.mxu0
  %145 = vmatprep.mubr.f32.mxu0 0.0
  %146 = vmatmul.mubr.f32.gmra.mxu0 %v22
  %v147 = vpop.f32.mrf.mxu0
  %v148 = vadd.f32 %v54, %v147
  %v149 = vpop.f32.mrf.mxu0
  %150 = vmatprep.mubr.f32.mxu0 0.0
  %151 = vmatmul.mubr.f32.gmra.mxu0 %v23
  %v152 = vpop.f32.mrf.mxu0
  %v153 = vadd.f32 %v54, %v152
  %v154 = vpop.f32.mrf.mxu0
  %155 = vmatprep.mubr.f32.mxu0 0.0
  %156 = vmatmul.mubr.f32.gmra.mxu0 %v24
  %v157 = vpop.f32.mrf.mxu0
  %v158 = vadd.f32 %v54, %v157
  %v159 = vpop.f32.mrf.mxu0
  %160 = vmatprep.mubr.f32.mxu0 0.0
  %161 = vmatmul.mubr.f32.gmra.mxu0 %v25
  %v162 = vpop.f32.mrf.mxu0
  %v163 = vadd.f32 %v54, %v162
  %v164 = vpop.f32.mrf.mxu0
  %165 = vmatprep.mubr.f32.mxu0 0.0
  %166 = vmatmul.mubr.f32.gmra.mxu0 %v26
  %v167 = vpop.f32.mrf.mxu0
  %v168 = vadd.f32 %v54, %v167
  %v169 = vpop.f32.mrf.mxu0
  %170 = vmatprep.mubr.f32.mxu0 0.0
  %171 = vmatmul.mubr.f32.gmra.mxu0 %v27
  %v172 = vpop.f32.mrf.mxu0
  %v173 = vadd.f32 %v54, %v172
  %v174 = vpop.f32.mrf.mxu0
  %175 = vmatprep.mubr.f32.mxu0 0.0
  %176 = vmatmul.mubr.f32.gmra.mxu0 %v28
  %v177 = vpop.f32.mrf.mxu0
  %v178 = vadd.f32 %v54, %v177
  %v179 = vpop.f32.mrf.mxu0
  %180 = vmatprep.mubr.f32.mxu0 0.0
  %181 = vmatmul.mubr.f32.gmra.mxu0 %v29
  %v182 = vpop.f32.mrf.mxu0
  %v183 = vadd.f32 %v54, %v182
  %v184 = vpop.f32.mrf.mxu0
  %185 = vmatprep.mubr.f32.mxu0 0.0
  %186 = vmatmul.mubr.f32.gmra.mxu0 %v30
  %v187 = vpop.f32.mrf.mxu0
  %v188 = vadd.f32 %v54, %v187
  %v189 = vpop.f32.mrf.mxu0
  %190 = vmatprep.mubr.f32.mxu0 0.0
  %191 = vmatmul.mubr.f32.gmra.mxu0 %v31
  %v192 = vpop.f32.mrf.mxu0
  %v193 = vadd.f32 %v54, %v192
  %v194 = vpop.f32.mrf.mxu0
  %195 = vmatprep.mubr.f32.mxu0 0.0
  %196 = vmatmul.mubr.f32.gmra.mxu0 %v32
  %v197 = vpop.f32.mrf.mxu0
  %v198 = vadd.f32 %v54, %v197
  %v199 = vpop.f32.mrf.mxu0
  %200 = vdwg.mxu0
  %v201 = vld [vmem:[%s3] sm:$0xff]
  %v202 = vld [vmem:[%s3 + $0x8] sm:$0xff]
  %v203 = vld [vmem:[%s3 + $0x10] sm:$0xff]
  %v204 = vld [vmem:[%s3 + $0x18] sm:$0xff]
  %v205 = vld [vmem:[%s3 + $0x20] sm:$0xff]
  %v206 = vld [vmem:[%s3 + $0x28] sm:$0xff]
  %v207 = vld [vmem:[%s3 + $0x30] sm:$0xff]
  %v208 = vld [vmem:[%s3 + $0x38] sm:$0xff]
  %v209 = vld [vmem:[%s3 + $0x40] sm:$0xff]
  %v210 = vld [vmem:[%s3 + $0x48] sm:$0xff]
  %v211 = vld [vmem:[%s3 + $0x50] sm:$0xff]
  %v212 = vld [vmem:[%s3 + $0x58] sm:$0xff]
  %v213 = vld [vmem:[%s3 + $0x60] sm:$0xff]
  %v214 = vld [vmem:[%s3 + $0x68] sm:$0xff]
  %v215 = vld [vmem:[%s3 + $0x70] sm:$0xff]
  %v216 = vld [vmem:[%s3 + $0x78] sm:$0xff]
  %v217 = vadd.f32 %v123, %v201
  %v218 = vadd.f32 %v128, %v202
  %v219 = vadd.f32 %v133, %v203
  %v220 = vadd.f32 %v138, %v204
  %v221 = vadd.f32 %v143, %v205
  %v222 = vadd.f32 %v148, %v206
  %v223 = vadd.f32 %v153, %v207
  %v224 = vadd.f32 %v158, %v208
  %v225 = vadd.f32 %v163, %v209
  %v226 = vadd.f32 %v168, %v210
  %v227 = vadd.f32 %v173, %v211
  %v228 = vadd.f32 %v178, %v212
  %v229 = vadd.f32 %v183, %v213
  %v230 = vadd.f32 %v188, %v214
  %v231 = vadd.f32 %v193, %v215
  %v232 = vadd.f32 %v198, %v216
  %vm233 = vcmask 261120
  %234 = vst.msk [vmem:[%s4] sm:$0xff] %vm233, %v217
  %235 = vst.msk [vmem:[%s4 + $0x8] sm:$0xff] %vm233, %v218
  %236 = vst.msk [vmem:[%s4 + $0x10] sm:$0xff] %vm233, %v219
  %237 = vst.msk [vmem:[%s4 + $0x18] sm:$0xff] %vm233, %v220
  %238 = vst.msk [vmem:[%s4 + $0x20] sm:$0xff] %vm233, %v221
  %239 = vst.msk [vmem:[%s4 + $0x28] sm:$0xff] %vm233, %v222
  %240 = vst.msk [vmem:[%s4 + $0x30] sm:$0xff] %vm233, %v223
  %241 = vst.msk [vmem:[%s4 + $0x38] sm:$0xff] %vm233, %v224
  %242 = vst.msk [vmem:[%s4 + $0x40] sm:$0xff] %vm233, %v225
  %243 = vst.msk [vmem:[%s4 + $0x48] sm:$0xff] %vm233, %v226
  %244 = vst.msk [vmem:[%s4 + $0x50] sm:$0xff] %vm233, %v227
  %245 = vst.msk [vmem:[%s4 + $0x58] sm:$0xff] %vm233, %v228
  %246 = vst.msk [vmem:[%s4 + $0x60] sm:$0xff] %vm233, %v229
  %247 = vst.msk [vmem:[%s4 + $0x68] sm:$0xff] %vm233, %v230
  %248 = vst.msk [vmem:[%s4 + $0x70] sm:$0xff] %vm233, %v231
  %249 = vst.msk [vmem:[%s4 + $0x78] sm:$0xff] %vm233, %v232
  // Predicated region
  $region18: #{na_transformer_layer_forward.9} parent=0 // pred_check
    _
  $region19: #{na_transformer_layer_forward.9} parent=0 // pred_check_branch
    %251 = sbr.rel (0) target = $region21
  $region20: #{na_transformer_layer_forward.9} parent=0 // pred_region
    _
  $region21: #{na_transformer_layer_forward.9} parent=0 // pred_fallthru
    _
  // Predicated region
  $region22: #{na_transformer_layer_forward.9} parent=0 // pred_check
    _
  $region23: #{na_transformer_layer_forward.9} parent=0 // pred_check_branch
    %253 = sbr.rel (0) target = $region25
  $region24: #{na_transformer_layer_forward.9} parent=0 // pred_region
    _
  $region25: #{na_transformer_layer_forward.9} parent=0 // pred_fallthru
    _

</llo_original>
